<compile_context>
chip_gen: v6e
topology: v6e:2x2x1
jax: 0.10.0
libtpu: 0.0.40
codegen_flags: <defaults>
</compile_context>

<pallas_src>
import functools
import math

import jax
import jax.numpy as jnp
from jax.experimental import pallas as pl
from jax.experimental.pallas import tpu as pltpu


# Tile targets: multiples of the (8, 128) vreg tiling, sized so double-buffered
# blocks stay well inside v7x's 64 MiB VMEM (and v5e/v6e scoped defaults).
_BM = 256
_BN = 256
_BK = 512


def _round_up(x, m):
    return (x + m - 1) // m * m


def _pick_block(dim, target, align):
    """Full dim if it fits one tile; else the largest `align`-multiple tile <= target
    that divides dim (falls back to `target` + zero padding)."""
    if dim <= target:
        return dim
    cand = target
    while cand >= align:
        if dim % cand == 0:
            return cand
        cand -= align
    return target


# ---------------------------------------------------------------------------
# Kernel 1: tiled matmul + bias (+ optional ReLU) epilogue.
# ---------------------------------------------------------------------------
def _matmul_bias_kernel(x_ref, w_ref, b_ref, o_ref, acc_ref, *, activation):
    k = pl.program_id(2)

    @pl.when(k == 0)
    def _():
        acc_ref[...] = jnp.zeros_like(acc_ref)

    acc_ref[...] += jnp.dot(x_ref[...], w_ref[...],
                            preferred_element_type=jnp.float32)

    @pl.when(k == pl.num_programs(2) - 1)
    def _():
        y = acc_ref[...] + b_ref[...].astype(jnp.float32)
        if activation == "relu":
            y = jnp.maximum(y, 0.0)
        o_ref[...] = y.astype(o_ref.dtype)


def matmul_bias(x, w, b, activation=None, out_dtype=jnp.bfloat16,
                bm=_BM, bn=_BN, bk=_BK):
    """x: [M, K] (bf16), w: [K, N] (bf16), b: [N] (f32) -> [M, N]."""
    M, K = x.shape
    N = w.shape[1]
    bm = _pick_block(M, bm, 8)
    bn = _pick_block(N, bn, 128)
    bk = _pick_block(K, bk, 128)
    Mp, Np, Kp = _round_up(M, bm), _round_up(N, bn), _round_up(K, bk)
    if (Mp, Kp) != (M, K):
        x = jnp.pad(x, ((0, Mp - M), (0, Kp - K)))
    if (Kp, Np) != (K, N):
        w = jnp.pad(w, ((0, Kp - K), (0, Np - N)))
    if Np != N:
        b = jnp.pad(b, (0, Np - N))

    out = pl.pallas_call(
        functools.partial(_matmul_bias_kernel, activation=activation),
        out_shape=jax.ShapeDtypeStruct((Mp, Np), out_dtype),
        grid=(Mp // bm, Np // bn, Kp // bk),
        in_specs=[
            pl.BlockSpec((bm, bk), lambda i, j, k: (i, k)),
            pl.BlockSpec((bk, bn), lambda i, j, k: (k, j)),
            pl.BlockSpec((1, bn), lambda i, j, k: (0, j)),
        ],
        out_specs=pl.BlockSpec((bm, bn), lambda i, j, k: (i, j)),
        scratch_shapes=[pltpu.VMEM((bm, bn), jnp.float32)],
        compiler_params=pltpu.CompilerParams(
            dimension_semantics=("parallel", "parallel", "arbitrary")),
    )(x, w, b.reshape(1, Np))
    if (Mp, Np) != (M, N):
        out = out[:M, :N]
    return out


# ---------------------------------------------------------------------------
# Kernel 2: tiled matmul with fused bias + residual-add + LayerNorm epilogue.
# The N (feature) dimension stays fully resident so LN stats are exact.
# ---------------------------------------------------------------------------
def _matmul_res_ln_kernel(x_ref, w_ref, b_ref, r_ref, g_ref, bb_ref,
                          o_ref, acc_ref):
    k = pl.program_id(1)

    @pl.when(k == 0)
    def _():
        acc_ref[...] = jnp.zeros_like(acc_ref)

    acc_ref[...] += jnp.dot(x_ref[...], w_ref[...],
                            preferred_element_type=jnp.float32)

    @pl.when(k == pl.num_programs(1) - 1)
    def _():
        y = (acc_ref[...] + b_ref[...].astype(jnp.float32)
             + r_ref[...].astype(jnp.float32))
        mu = jnp.mean(y, axis=-1, keepdims=True)
        var = jnp.mean(jnp.square(y - mu), axis=-1, keepdims=True)
        yn = (y - mu) * jax.lax.rsqrt(var + 1e-5)
        o_ref[...] = (yn * g_ref[...].astype(jnp.float32)
                      + bb_ref[...].astype(jnp.float32)).astype(o_ref.dtype)


def matmul_res_layernorm(x, w, b, res, gamma, beta,
                         out_dtype=jnp.bfloat16, bm=_BM, bk=_BK):
    """LayerNorm((x @ w + b) + res), x: [M, K], w: [K, N], res: [M, N]."""
    M, K = x.shape
    N = w.shape[1]
    bm = _pick_block(M, bm, 8)
    bk = _pick_block(K, bk, 128)
    Mp, Kp = _round_up(M, bm), _round_up(K, bk)
    if (Mp, Kp) != (M, K):
        x = jnp.pad(x, ((0, Mp - M), (0, Kp - K)))
    if Kp != K:
        w = jnp.pad(w, ((0, Kp - K), (0, 0)))
    if Mp != M:
        res = jnp.pad(res, ((0, Mp - M), (0, 0)))

    out = pl.pallas_call(
        _matmul_res_ln_kernel,
        out_shape=jax.ShapeDtypeStruct((Mp, N), out_dtype),
        grid=(Mp // bm, Kp // bk),
        in_specs=[
            pl.BlockSpec((bm, bk), lambda i, k: (i, k)),
            pl.BlockSpec((bk, N), lambda i, k: (k, 0)),
            pl.BlockSpec((1, N), lambda i, k: (0, 0)),
            pl.BlockSpec((bm, N), lambda i, k: (i, 0)),
            pl.BlockSpec((1, N), lambda i, k: (0, 0)),
            pl.BlockSpec((1, N), lambda i, k: (0, 0)),
        ],
        out_specs=pl.BlockSpec((bm, N), lambda i, k: (i, 0)),
        scratch_shapes=[pltpu.VMEM((bm, N), jnp.float32)],
        compiler_params=pltpu.CompilerParams(
            dimension_semantics=("parallel", "arbitrary")),
    )(x, w, b.reshape(1, N), res, gamma.reshape(1, N), beta.reshape(1, N))
    if Mp != M:
        out = out[:M]
    return out


# ---------------------------------------------------------------------------
# Kernel 3: multi-head scaled-dot-product attention.
# One grid step per batch element; all heads processed as a batched MXU matmul.
# Causal mask generated in-kernel (no mask DMA); no mask for encoder/cross attn.
# ---------------------------------------------------------------------------
def _attention_kernel(q_ref, k_ref, v_ref, o_ref, *, causal):
    q = q_ref[0]                                            # [H, Sq, Dh] bf16
    k = k_ref[0]                                            # [H, Skv, Dh] bf16
    v = v_ref[0]                                            # [H, Skv, Dh] bf16
    scale = 1.0 / math.sqrt(q.shape[-1])
    s = jnp.einsum("hqd,hkd->hqk", q, k,
                   preferred_element_type=jnp.float32) * scale
    if causal:
        sq, skv = s.shape[-2], s.shape[-1]
        row = jax.lax.broadcasted_iota(jnp.int32, (sq, skv), 0)
        col = jax.lax.broadcasted_iota(jnp.int32, (sq, skv), 1)
        s = jnp.where((row >= col)[None, :, :], s, -1e30)
    m = jnp.max(s, axis=-1, keepdims=True)
    p = jnp.exp(s - m)
    l = jnp.sum(p, axis=-1, keepdims=True)
    o = jnp.einsum("hqk,hkd->hqd", p.astype(v.dtype), v,
                   preferred_element_type=jnp.float32)
    o_ref[0] = (o * pl.reciprocal(l, approx=True)).astype(o_ref.dtype)


def attention(q, k, v, *, causal):
    """q: [B, H, Sq, Dh], k/v: [B, H, Skv, Dh] -> [B, H, Sq, Dh]."""
    # TODO(synk): for long encoder sequences switch to an online-softmax (flash)
    # loop over Skv tiles instead of materialising the full [H, Sq, Skv] scores.
    B, H, Sq, Dh = q.shape
    Skv = k.shape[2]
    return pl.pallas_call(
        functools.partial(_attention_kernel, causal=causal),
        out_shape=jax.ShapeDtypeStruct((B, H, Sq, Dh), q.dtype),
        grid=(B,),
        in_specs=[
            pl.BlockSpec((1, H, Sq, Dh), lambda b: (b, 0, 0, 0)),
            pl.BlockSpec((1, H, Skv, Dh), lambda b: (b, 0, 0, 0)),
            pl.BlockSpec((1, H, Skv, Dh), lambda b: (b, 0, 0, 0)),
        ],
        out_specs=pl.BlockSpec((1, H, Sq, Dh), lambda b: (b, 0, 0, 0)),
        compiler_params=pltpu.CompilerParams(
            dimension_semantics=("parallel",)),
    )(q, k, v)


# ---------------------------------------------------------------------------
# Transformer blocks built from the kernels (glue: reshapes / head transposes)
# ---------------------------------------------------------------------------
def mha_self(x, p, ln_g, ln_b, n_heads, *, causal):
    """Fused-QKV self-attention + output-proj + residual + LN. x: [B, S, D]."""
    B, S, D = x.shape
    Dh = D // n_heads
    x2 = x.reshape(B * S, D)
    qkv = matmul_bias(x2, p["w_qkv"], p["b_qkv"])           # [B*S, 3D]
    qkv = qkv.reshape(B, S, 3, n_heads, Dh).transpose(2, 0, 3, 1, 4)
    o = attention(qkv[0], qkv[1], qkv[2], causal=causal)    # [B, H, S, Dh]
    o = o.transpose(0, 2, 1, 3).reshape(B * S, D)
    y = matmul_res_layernorm(o, p["wo"], p["bo"], x2, ln_g, ln_b)
    return y.reshape(B, S, D)


def mha_cross(x, mem, p, ln_g, ln_b, n_heads):
    """Cross-attention (fused KV) + output-proj + residual + LN."""
    B, Sq, D = x.shape
    Skv = mem.shape[1]
    Dh = D // n_heads
    x2 = x.reshape(B * Sq, D)
    m2 = mem.reshape(B * Skv, D)
    q = matmul_bias(x2, p["wq"], p["bq"])                   # [B*Sq, D]
    kv = matmul_bias(m2, p["w_kv"], p["b_kv"])              # [B*Skv, 2D]
    q = q.reshape(B, Sq, n_heads, Dh).transpose(0, 2, 1, 3)
    kv = kv.reshape(B, Skv, 2, n_heads, Dh).transpose(2, 0, 3, 1, 4)
    o = attention(q, kv[0], kv[1], causal=False)
    o = o.transpose(0, 2, 1, 3).reshape(B * Sq, D)
    y = matmul_res_layernorm(o, p["wo"], p["bo"], x2, ln_g, ln_b)
    return y.reshape(B, Sq, D)


def ffn_block(x, p, ln_g, ln_b):
    """relu(x@w1+b1)@w2+b2, fused residual + LN on the second matmul."""
    B, S, D = x.shape
    x2 = x.reshape(B * S, D)
    h = matmul_bias(x2, p["w1"], p["b1"], activation="relu")   # [M, F]
    y = matmul_res_layernorm(h, p["w2"], p["b2"], x2, ln_g, ln_b)
    return y.reshape(B, S, D)


def encoder_layer(x, p, n_heads):
    # post-norm (PyTorch default norm_first=False); dropout is identity in eval
    x = mha_self(x, p["attn"], p["ln1_g"], p["ln1_b"], n_heads, causal=False)
    x = ffn_block(x, p, p["ln2_g"], p["ln2_b"])
    return x


def decoder_layer(x, mem, p, n_heads):
    x = mha_self(x, p["self_attn"], p["ln1_g"], p["ln1_b"], n_heads, causal=True)
    x = mha_cross(x, mem, p["cross_attn"], p["ln2_g"], p["ln2_b"], n_heads)
    x = ffn_block(x, p, p["ln3_g"], p["ln3_b"])
    return x


def encoder_forward(p, images, n_heads, patch):
    # images: [B, 3, H, W] (NCHW, like PyTorch)
    B, C, H, W = images.shape
    nh, nw = H // patch, W // patch
    # patchify -> [B*Np, C*P*P]  (equivalent to Conv2d(C, D, P, stride=P))
    patches = images.reshape(B, C, nh, patch, nw, patch)
    patches = patches.transpose(0, 2, 4, 1, 3, 5).reshape(B * nh * nw, C * patch * patch)
    D = p["patch_w"].shape[1]
    x = matmul_bias(patches.astype(jnp.bfloat16), p["patch_w"], p["patch_b"],
                    out_dtype=jnp.float32).reshape(B, nh * nw, D)
    cls = jnp.broadcast_to(p["cls"], (B, 1, D))
    x = (jnp.concatenate([cls, x], axis=1) + p["pos"]).astype(jnp.bfloat16)
    for lp in p["layers"]:
        x = encoder_layer(x, lp, n_heads)
    return x                                                 # memory for decoder


def sinusoidal_pe(seq_len, d_model):
    # assumes even d_model (as in the reference module)
    pos = jnp.arange(seq_len)[:, None].astype(jnp.float32)
    i = jnp.arange(d_model // 2)[None, :].astype(jnp.float32)
    angles = pos / jnp.power(10000.0, 2.0 * i / d_model)
    pe = jnp.zeros((seq_len, d_model), jnp.float32)
    pe = pe.at[:, 0::2].set(jnp.sin(angles))
    pe = pe.at[:, 1::2].set(jnp.cos(angles))
    return pe


def decoder_forward(p, memory, captions, n_heads):
    # captions: [B, T] int32 token ids
    B, T = captions.shape
    D = p["embed"].shape[1]
    x = jnp.take(p["embed"], captions, axis=0) * math.sqrt(D)   # [B, T, D]
    x = (x + sinusoidal_pe(T, D)[None]).astype(jnp.bfloat16)
    for lp in p["layers"]:
        x = decoder_layer(x, memory, lp, n_heads)
    V = p["fc_w"].shape[1]
    logits = matmul_bias(x.reshape(B * T, D), p["fc_w"], p["fc_b"],
                         out_dtype=jnp.float32, bn=512)          # vocab tiled lane-dense
    return logits.reshape(B, T, V)


def captioner_forward(params, images, captions, n_heads, patch):
    features = encoder_forward(params["encoder"], images, n_heads, patch)
    outputs = decoder_forward(params["decoder"], features, captions, n_heads)
    return outputs
    # TODO(synk): autoregressive `sample()` (greedy decode loop) not implemented.


# ---------------------------------------------------------------------------
# Deterministic parameter init (synthetic; shapes follow the module structure)
# Matmul weights stored bf16 (MXU inputs); biases / LN params / embeddings f32.
# ---------------------------------------------------------------------------
def _uniform(key, shape, fan_in, dtype=jnp.float32):
    lim = 1.0 / math.sqrt(fan_in)
    return jax.random.uniform(key, shape, jnp.float32, -lim, lim).astype(dtype)


def _init_linear(key, fan_in, fan_out, w_dtype=jnp.bfloat16):
    kw, kb = jax.random.split(key)
    w = _uniform(kw, (fan_in, fan_out), fan_in, w_dtype)
    b = _uniform(kb, (fan_out,), fan_in, jnp.float32)
    return w, b


def _init_self_attn(key, D):
    ks = jax.random.split(key, 2)
    w_qkv, b_qkv = _init_linear(ks[0], D, 3 * D)
    wo, bo = _init_linear(ks[1], D, D)
    return dict(w_qkv=w_qkv, b_qkv=b_qkv, wo=wo, bo=bo)


def _init_cross_attn(key, D):
    ks = jax.random.split(key, 3)
    wq, bq = _init_linear(ks[0], D, D)
    w_kv, b_kv = _init_linear(ks[1], D, 2 * D)
    wo, bo = _init_linear(ks[2], D, D)
    return dict(wq=wq, bq=bq, w_kv=w_kv, b_kv=b_kv, wo=wo, bo=bo)


def _init_enc_layer(key, D, F):
    ks = jax.random.split(key, 3)
    w1, b1 = _init_linear(ks[1], D, F)
    w2, b2 = _init_linear(ks[2], F, D)
    return dict(attn=_init_self_attn(ks[0], D),
                ln1_g=jnp.ones((D,), jnp.float32), ln1_b=jnp.zeros((D,), jnp.float32),
                w1=w1, b1=b1, w2=w2, b2=b2,
                ln2_g=jnp.ones((D,), jnp.float32), ln2_b=jnp.zeros((D,), jnp.float32))


def _init_dec_layer(key, D, F):
    ks = jax.random.split(key, 4)
    w1, b1 = _init_linear(ks[2], D, F)
    w2, b2 = _init_linear(ks[3], F, D)
    return dict(self_attn=_init_self_attn(ks[0], D),
                cross_attn=_init_cross_attn(ks[1], D),
                ln1_g=jnp.ones((D,), jnp.float32), ln1_b=jnp.zeros((D,), jnp.float32),
                ln2_g=jnp.ones((D,), jnp.float32), ln2_b=jnp.zeros((D,), jnp.float32),
                w1=w1, b1=b1, w2=w2, b2=b2,
                ln3_g=jnp.ones((D,), jnp.float32), ln3_b=jnp.zeros((D,), jnp.float32))


def init_params(key, embed_size, vocab_size, num_layers, num_enc_layers,
                patch, img_hw, in_ch=3):
    D = embed_size
    F = 4 * D
    n_patches = (img_hw // patch) ** 2
    k_enc, k_dec = jax.random.split(key)

    ke = jax.random.split(k_enc, 3 + num_enc_layers)
    patch_w, patch_b = _init_linear(ke[0], in_ch * patch * patch, D)
    enc = dict(
        patch_w=patch_w, patch_b=patch_b,
        cls=0.02 * jax.random.normal(ke[1], (1, 1, D), jnp.float32),
        pos=0.02 * jax.random.normal(ke[2], (1, 1 + n_patches, D), jnp.float32),
        layers=[_init_enc_layer(ke[3 + i], D, F) for i in range(num_enc_layers)],
    )

    kd = jax.random.split(k_dec, 2 + num_layers)
    fc_w, fc_b = _init_linear(kd[1], D, vocab_size)
    dec = dict(
        embed=0.02 * jax.random.normal(kd[0], (vocab_size, D), jnp.float32),
        layers=[_init_dec_layer(kd[2 + i], D, F) for i in range(num_layers)],
        fc_w=fc_w, fc_b=fc_b,
    )
    return dict(encoder=enc, decoder=dec)


# ---------------------------------------------------------------------------
if __name__ == "__main__":
    # small shapes consistent with the module (embed must divide by n_heads)
    B, C, HW = 2, 3, 16
    PATCH = 8
    EMBED = 32
    VOCAB = 50
    N_HEADS = 4
    NUM_LAYERS = 2      # decoder layers (module default is 6; small for the demo)
    NUM_ENC_LAYERS = 2  # ViT encoder depth (synthetic)
    T = 8               # caption length

    key = jax.random.PRNGKey(0)
    k_img, k_cap, k_par = jax.random.split(key, 3)

    images = jax.random.normal(k_img, (B, C, HW, HW), jnp.float32)   # NCHW
    captions = jax.random.randint(k_cap, (B, T), 0, VOCAB, jnp.int32)
    params = init_params(k_par, EMBED, VOCAB, NUM_LAYERS, NUM_ENC_LAYERS, PATCH, HW, C)

    fwd = jax.jit(functools.partial(captioner_forward, n_heads=N_HEADS, patch=PATCH))
    logits = fwd(params, images, captions)
    jax.block_until_ready(logits)

    assert logits.shape == (B, T, VOCAB), logits.shape
    assert jnp.all(jnp.isfinite(logits))
    print("KERNEL_OK")
</pallas_src>

<mosaic_0001>
module attributes {stable_mosaic.version = 11 : i64} {
  func.func @_matmul_bias_kernel(%arg0: i32, %arg1: i32, %arg2: i32, %arg3: memref<16x32xbf16, #tpu.memory_space<vmem>>, %arg4: memref<32x96xbf16, #tpu.memory_space<vmem>>, %arg5: memref<1x96xf32, #tpu.memory_space<vmem>>, %arg6: memref<16x96xbf16, #tpu.memory_space<vmem>>, %arg7: memref<16x96xf32, #tpu.memory_space<vmem>>) attributes {dimension_semantics = [#tpu.dimension_semantics<parallel>, #tpu.dimension_semantics<parallel>, #tpu.dimension_semantics<arbitrary>], iteration_bounds = array<i64: 1, 1, 1>, scalar_prefetch = 0 : i64, scratch_operands = 1 : i64, tpu.core_type = #tpu.core_type<tc>, window_params = [{transform_indices = @transform_0, window_bounds = array<i64: 16, 32>}, {transform_indices = @transform_1, window_bounds = array<i64: 32, 96>}, {transform_indices = @transform_2, window_bounds = array<i64: 1, 96>}, {transform_indices = @transform_3, window_bounds = array<i64: 16, 96>}]} {
    %c0_i32 = arith.constant 0 : i32
    %0 = arith.cmpi eq, %arg2, %c0_i32 : i32
    %1 = arith.extui %0 : i1 to i32
    %c0_i32_0 = arith.constant 0 : i32
    %2 = arith.cmpi ne, %1, %c0_i32_0 : i32
    scf.if %2 {
      %cst_10 = arith.constant 0.000000e+00 : f32
      %12 = vector.broadcast %cst_10 : f32 to vector<16x96xf32>
      %c0_11 = arith.constant 0 : index
      %c0_12 = arith.constant 0 : index
      %13 = vector.load %arg7[%c0_11, %c0_12] : memref<16x96xf32, #tpu.memory_space<vmem>>, vector<16x96xf32>
      tpu.vector_store %arg7[%c0_11, %c0_12], %12 {strides = array<i32>} : memref<16x96xf32, #tpu.memory_space<vmem>>, vector<16x96xf32>,
    } else {
    }
    %c0 = arith.constant 0 : index
    %c0_1 = arith.constant 0 : index
    %3 = vector.load %arg7[%c0, %c0_1] : memref<16x96xf32, #tpu.memory_space<vmem>>, vector<16x96xf32>
    %c0_2 = arith.constant 0 : index
    %c0_3 = arith.constant 0 : index
    %4 = vector.load %arg3[%c0_2, %c0_3] : memref<16x32xbf16, #tpu.memory_space<vmem>>, vector<16x32xbf16>
    %c0_4 = arith.constant 0 : index
    %c0_5 = arith.constant 0 : index
    %5 = vector.load %arg4[%c0_4, %c0_5] : memref<32x96xbf16, #tpu.memory_space<vmem>>, vector<32x96xbf16>
    %cst = arith.constant dense<0.000000e+00> : vector<16x96xf32>
    %6 = tpu.matmul %4, %5, %cst {dimension_numbers = #tpu.dot_dimension_numbers<[1], [0], [0], [1], [0, 0, 1, 1], [], []>} : vector<16x32xbf16>, vector<32x96xbf16>, vector<16x96xf32> -> vector<16x96xf32>
    %7 = arith.addf %3, %6 : vector<16x96xf32>
    %c0_6 = arith.constant 0 : index
    %c0_7 = arith.constant 0 : index
    %8 = vector.load %arg7[%c0_6, %c0_7] : memref<16x96xf32, #tpu.memory_space<vmem>>, vector<16x96xf32>
    tpu.vector_store %arg7[%c0_6, %c0_7], %7 {strides = array<i32>} : memref<16x96xf32, #tpu.memory_space<vmem>>, vector<16x96xf32>,
    %c0_i32_8 = arith.constant 0 : i32
    %9 = arith.cmpi eq, %arg2, %c0_i32_8 : i32
    %10 = arith.extui %9 : i1 to i32
    %c0_i32_9 = arith.constant 0 : i32
    %11 = arith.cmpi ne, %10, %c0_i32_9 : i32
    scf.if %11 {
      %c0_10 = arith.constant 0 : index
      %c0_11 = arith.constant 0 : index
      %12 = vector.load %arg7[%c0_10, %c0_11] : memref<16x96xf32, #tpu.memory_space<vmem>>, vector<16x96xf32>
      %c0_12 = arith.constant 0 : index
      %c0_13 = arith.constant 0 : index
      %13 = vector.load %arg5[%c0_12, %c0_13] : memref<1x96xf32, #tpu.memory_space<vmem>>, vector<1x96xf32>
      %14 = vector.broadcast %13 : vector<1x96xf32> to vector<16x96xf32>
      %15 = arith.addf %12, %14 : vector<16x96xf32>
      %16 = arith.truncf %15 : vector<16x96xf32> to vector<16x96xbf16>
      %c0_14 = arith.constant 0 : index
      %c0_15 = arith.constant 0 : index
      %17 = vector.load %arg6[%c0_14, %c0_15] : memref<16x96xbf16, #tpu.memory_space<vmem>>, vector<16x96xbf16>
      tpu.vector_store %arg6[%c0_14, %c0_15], %16 {strides = array<i32>} : memref<16x96xbf16, #tpu.memory_space<vmem>>, vector<16x96xbf16>,
    } else {
    }
    return
  }
  func.func @transform_0(%arg0: i32, %arg1: i32, %arg2: i32) -> (i32, i32) {
    %c0_i32 = arith.constant 0 : i32
    return %arg0, %arg2 : i32, i32
  }
  func.func @transform_1(%arg0: i32, %arg1: i32, %arg2: i32) -> (i32, i32) {
    %c0_i32 = arith.constant 0 : i32
    return %arg2, %arg1 : i32, i32
  }
  func.func @transform_2(%arg0: i32, %arg1: i32, %arg2: i32) -> (i32, i32) {
    %c0_i32 = arith.constant 0 : i32
    %c0_i32_0 = arith.constant 0 : i32
    return %c0_i32, %arg1 : i32, i32
  }
  func.func @transform_3(%arg0: i32, %arg1: i32, %arg2: i32) -> (i32, i32) {
    %c0_i32 = arith.constant 0 : i32
    return %arg0, %arg1 : i32, i32
  }
}

module attributes {stable_mosaic.version = 11 : i64} {
  func.func @_attention_kernel(%arg0: i32, %arg1: memref<1x4x8x8xbf16, #tpu.memory_space<vmem>>, %arg2: memref<1x4x8x8xbf16, #tpu.memory_space<vmem>>, %arg3: memref<1x4x8x8xbf16, #tpu.memory_space<vmem>>, %arg4: memref<1x4x8x8xbf16, #tpu.memory_space<vmem>>) attributes {dimension_semantics = [#tpu.dimension_semantics<parallel>], iteration_bounds = array<i64: 2>, scalar_prefetch = 0 : i64, scratch_operands = 0 : i64, tpu.core_type = #tpu.core_type<tc>, window_params = [{transform_indices = @transform_0, window_bounds = array<i64: 1, 4, 8, 8>}, {transform_indices = @transform_1, window_bounds = array<i64: 1, 4, 8, 8>}, {transform_indices = @transform_2, window_bounds = array<i64: 1, 4, 8, 8>}, {transform_indices = @transform_3, window_bounds = array<i64: 1, 4, 8, 8>}]} {
    %c0 = arith.constant 0 : index
    %c0_0 = arith.constant 0 : index
    %c0_1 = arith.constant 0 : index
    %c0_2 = arith.constant 0 : index
    %0 = vector.load %arg1[%c0, %c0_0, %c0_1, %c0_2] : memref<1x4x8x8xbf16, #tpu.memory_space<vmem>>, vector<1x4x8x8xbf16>
    %1 = vector.shape_cast %0 : vector<1x4x8x8xbf16> to vector<4x8x8xbf16>
    %c0_3 = arith.constant 0 : index
    %c0_4 = arith.constant 0 : index
    %c0_5 = arith.constant 0 : index
    %c0_6 = arith.constant 0 : index
    %2 = vector.load %arg2[%c0_3, %c0_4, %c0_5, %c0_6] : memref<1x4x8x8xbf16, #tpu.memory_space<vmem>>, vector<1x4x8x8xbf16>
    %3 = vector.shape_cast %2 : vector<1x4x8x8xbf16> to vector<4x8x8xbf16>
    %c0_7 = arith.constant 0 : index
    %c0_8 = arith.constant 0 : index
    %c0_9 = arith.constant 0 : index
    %c0_10 = arith.constant 0 : index
    %4 = vector.load %arg3[%c0_7, %c0_8, %c0_9, %c0_10] : memref<1x4x8x8xbf16, #tpu.memory_space<vmem>>, vector<1x4x8x8xbf16>
    %5 = vector.shape_cast %4 : vector<1x4x8x8xbf16> to vector<4x8x8xbf16>
    "tpu.trace_start"() <{level = 10 : i32, message = "hqd,hkd->hqk"}> : () -> ()
    %cst = arith.constant dense<0.000000e+00> : vector<4x8x8xf32>
    %6 = tpu.matmul %1, %3, %cst {dimension_numbers = #tpu.dot_dimension_numbers<[2], [2], [1], [1], [0, 0, 0, 1, 1, 1], [0], [0]>} : vector<4x8x8xbf16>, vector<4x8x8xbf16>, vector<4x8x8xf32> -> vector<4x8x8xf32>
    "tpu.trace_stop"() : () -> ()
    %cst_11 = arith.constant 0.353553385 : f32
    %7 = vector.broadcast %cst_11 : f32 to vector<4x8x8xf32>
    %8 = arith.mulf %6, %7 : vector<4x8x8xf32>
    %9 = tpu.iota {dimensions = array<i32: 0>} : vector<8x8xi32>
    %10 = tpu.iota {dimensions = array<i32: 1>} : vector<8x8xi32>
    %11 = arith.cmpi sge, %9, %10 : vector<8x8xi32>
    %12 = vector.shape_cast %11 : vector<8x8xi1> to vector<1x8x8xi1>
    %cst_12 = arith.constant -1.000000e+30 : f32
    %13 = vector.shape_cast %12 : vector<1x8x8xi1> to vector<1x8x8xi1>
    %14 = vector.broadcast %13 : vector<1x8x8xi1> to vector<4x8x8xi1>
    %15 = vector.broadcast %cst_12 : f32 to vector<4x8x8xf32>
    %16 = arith.select %14, %8, %15 : vector<4x8x8xi1>, vector<4x8x8xf32>
    %cst_13 = arith.constant dense<0xFF800000> : vector<4x8xf32>
    %17 = vector.multi_reduction <maximumf>, %16, %cst_13 [2] : vector<4x8x8xf32> to vector<4x8xf32>
    %18 = vector.shape_cast %17 : vector<4x8xf32> to vector<4x8x1xf32>
    %19 = vector.broadcast %18 : vector<4x8x1xf32> to vector<4x8x8xf32>
    %20 = arith.subf %16, %19 : vector<4x8x8xf32>
    %21 = math.exp %20 : vector<4x8x8xf32>
    %cst_14 = arith.constant dense<0.000000e+00> : vector<4x8xf32>
    %22 = vector.multi_reduction <add>, %21, %cst_14 [2] : vector<4x8x8xf32> to vector<4x8xf32>
    %23 = vector.shape_cast %22 : vector<4x8xf32> to vector<4x8x1xf32>
    %24 = arith.truncf %21 : vector<4x8x8xf32> to vector<4x8x8xbf16>
    "tpu.trace_start"() <{level = 10 : i32, message = "hqk,hkd->hqd"}> : () -> ()
    %cst_15 = arith.constant dense<0.000000e+00> : vector<4x8x8xf32>
    %25 = tpu.matmul %24, %5, %cst_15 {dimension_numbers = #tpu.dot_dimension_numbers<[2], [1], [1], [2], [0, 0, 0, 1, 1, 2], [0], [0]>} : vector<4x8x8xbf16>, vector<4x8x8xbf16>, vector<4x8x8xf32> -> vector<4x8x8xf32>
    "tpu.trace_stop"() : () -> ()
    %26 = tpu.reciprocal %23 {approx = true} : vector<4x8x1xf32> -> vector<4x8x1xf32>
    %27 = vector.broadcast %26 : vector<4x8x1xf32> to vector<4x8x8xf32>
    %28 = arith.mulf %25, %27 : vector<4x8x8xf32>
    %29 = arith.truncf %28 : vector<4x8x8xf32> to vector<4x8x8xbf16>
    %c0_16 = arith.constant 0 : index
    %c0_17 = arith.constant 0 : index
    %c0_18 = arith.constant 0 : index
    %c0_19 = arith.constant 0 : index
    %30 = vector.load %arg4[%c0_16, %c0_17, %c0_18, %c0_19] : memref<1x4x8x8xbf16, #tpu.memory_space<vmem>>, vector<1x4x8x8xbf16>
    %31 = vector.shape_cast %30 : vector<1x4x8x8xbf16> to vector<4x8x8xbf16>
    %32 = vector.shape_cast %29 : vector<4x8x8xbf16> to vector<1x4x8x8xbf16>
    tpu.vector_store %arg4[%c0_16, %c0_17, %c0_18, %c0_19], %32 {strides = array<i32>} : memref<1x4x8x8xbf16, #tpu.memory_space<vmem>>, vector<1x4x8x8xbf16>,
    return
  }
  func.func @transform_0(%arg0: i32) -> (i32, i32, i32, i32) {
    %c0_i32 = arith.constant 0 : i32
    %c0_i32_0 = arith.constant 0 : i32
    %c0_i32_1 = arith.constant 0 : i32
    %c0_i32_2 = arith.constant 0 : i32
    return %arg0, %c0_i32, %c0_i32_0, %c0_i32_1 : i32, i32, i32, i32
  }
  func.func @transform_1(%arg0: i32) -> (i32, i32, i32, i32) {
    %c0_i32 = arith.constant 0 : i32
    %c0_i32_0 = arith.constant 0 : i32
    %c0_i32_1 = arith.constant 0 : i32
    %c0_i32_2 = arith.constant 0 : i32
    return %arg0, %c0_i32, %c0_i32_0, %c0_i32_1 : i32, i32, i32, i32
  }
  func.func @transform_2(%arg0: i32) -> (i32, i32, i32, i32) {
    %c0_i32 = arith.constant 0 : i32
    %c0_i32_0 = arith.constant 0 : i32
    %c0_i32_1 = arith.constant 0 : i32
    %c0_i32_2 = arith.constant 0 : i32
    return %arg0, %c0_i32, %c0_i32_0, %c0_i32_1 : i32, i32, i32, i32
  }
  func.func @transform_3(%arg0: i32) -> (i32, i32, i32, i32) {
    %c0_i32 = arith.constant 0 : i32
    %c0_i32_0 = arith.constant 0 : i32
    %c0_i32_1 = arith.constant 0 : i32
    %c0_i32_2 = arith.constant 0 : i32
    return %arg0, %c0_i32, %c0_i32_0, %c0_i32_1 : i32, i32, i32, i32
  }
}

module attributes {stable_mosaic.version = 11 : i64} {
  func.func @_matmul_res_ln_kernel(%arg0: i32, %arg1: i32, %arg2: memref<16x32xbf16, #tpu.memory_space<vmem>>, %arg3: memref<32x32xbf16, #tpu.memory_space<vmem>>, %arg4: memref<1x32xf32, #tpu.memory_space<vmem>>, %arg5: memref<16x32xbf16, #tpu.memory_space<vmem>>, %arg6: memref<1x32xf32, #tpu.memory_space<vmem>>, %arg7: memref<1x32xf32, #tpu.memory_space<vmem>>, %arg8: memref<16x32xbf16, #tpu.memory_space<vmem>>, %arg9: memref<16x32xf32, #tpu.memory_space<vmem>>) attributes {dimension_semantics = [#tpu.dimension_semantics<parallel>, #tpu.dimension_semantics<arbitrary>], iteration_bounds = array<i64: 1, 1>, scalar_prefetch = 0 : i64, scratch_operands = 1 : i64, tpu.core_type = #tpu.core_type<tc>, window_params = [{transform_indices = @transform_0, window_bounds = array<i64: 16, 32>}, {transform_indices = @transform_1, window_bounds = array<i64: 32, 32>}, {pipeline_mode = #tpu.pipeline_mode<synchronous>, transform_indices = @transform_2, window_bounds = array<i64: 1, 32>}, {transform_indices = @transform_3, window_bounds = array<i64: 16, 32>}, {pipeline_mode = #tpu.pipeline_mode<synchronous>, transform_indices = @transform_4, window_bounds = array<i64: 1, 32>}, {pipeline_mode = #tpu.pipeline_mode<synchronous>, transform_indices = @transform_5, window_bounds = array<i64: 1, 32>}, {transform_indices = @transform_6, window_bounds = array<i64: 16, 32>}]} {
    %c0_i32 = arith.constant 0 : i32
    %0 = arith.cmpi eq, %arg1, %c0_i32 : i32
    %1 = arith.extui %0 : i1 to i32
    %c0_i32_0 = arith.constant 0 : i32
    %2 = arith.cmpi ne, %1, %c0_i32_0 : i32
    scf.if %2 {
      %cst_10 = arith.constant 0.000000e+00 : f32
      %12 = vector.broadcast %cst_10 : f32 to vector<16x32xf32>
      %c0_11 = arith.constant 0 : index
      %c0_12 = arith.constant 0 : index
      %13 = vector.load %arg9[%c0_11, %c0_12] : memref<16x32xf32, #tpu.memory_space<vmem>>, vector<16x32xf32>
      tpu.vector_store %arg9[%c0_11, %c0_12], %12 {strides = array<i32>} : memref<16x32xf32, #tpu.memory_space<vmem>>, vector<16x32xf32>,
    } else {
    }
    %c0 = arith.constant 0 : index
    %c0_1 = arith.constant 0 : index
    %3 = vector.load %arg9[%c0, %c0_1] : memref<16x32xf32, #tpu.memory_space<vmem>>, vector<16x32xf32>
    %c0_2 = arith.constant 0 : index
    %c0_3 = arith.constant 0 : index
    %4 = vector.load %arg2[%c0_2, %c0_3] : memref<16x32xbf16, #tpu.memory_space<vmem>>, vector<16x32xbf16>
    %c0_4 = arith.constant 0 : index
    %c0_5 = arith.constant 0 : index
    %5 = vector.load %arg3[%c0_4, %c0_5] : memref<32x32xbf16, #tpu.memory_space<vmem>>, vector<32x32xbf16>
    %cst = arith.constant dense<0.000000e+00> : vector<16x32xf32>
    %6 = tpu.matmul %4, %5, %cst {dimension_numbers = #tpu.dot_dimension_numbers<[1], [0], [0], [1], [0, 0, 1, 1], [], []>} : vector<16x32xbf16>, vector<32x32xbf16>, vector<16x32xf32> -> vector<16x32xf32>
    %7 = arith.addf %3, %6 : vector<16x32xf32>
    %c0_6 = arith.constant 0 : index
    %c0_7 = arith.constant 0 : index
    %8 = vector.load %arg9[%c0_6, %c0_7] : memref<16x32xf32, #tpu.memory_space<vmem>>, vector<16x32xf32>
    tpu.vector_store %arg9[%c0_6, %c0_7], %7 {strides = array<i32>} : memref<16x32xf32, #tpu.memory_space<vmem>>, vector<16x32xf32>,
    %c0_i32_8 = arith.constant 0 : i32
    %9 = arith.cmpi eq, %arg1, %c0_i32_8 : i32
    %10 = arith.extui %9 : i1 to i32
    %c0_i32_9 = arith.constant 0 : i32
    %11 = arith.cmpi ne, %10, %c0_i32_9 : i32
    scf.if %11 {
      %c0_10 = arith.constant 0 : index
      %c0_11 = arith.constant 0 : index
      %12 = vector.load %arg9[%c0_10, %c0_11] : memref<16x32xf32, #tpu.memory_space<vmem>>, vector<16x32xf32>
      %c0_12 = arith.constant 0 : index
      %c0_13 = arith.constant 0 : index
      %13 = vector.load %arg4[%c0_12, %c0_13] : memref<1x32xf32, #tpu.memory_space<vmem>>, vector<1x32xf32>
      %14 = vector.broadcast %13 : vector<1x32xf32> to vector<16x32xf32>
      %15 = arith.addf %12, %14 : vector<16x32xf32>
      %c0_14 = arith.constant 0 : index
      %c0_15 = arith.constant 0 : index
      %16 = vector.load %arg5[%c0_14, %c0_15] : memref<16x32xbf16, #tpu.memory_space<vmem>>, vector<16x32xbf16>
      %17 = arith.extf %16 : vector<16x32xbf16> to vector<16x32xf32>
      %18 = arith.addf %15, %17 : vector<16x32xf32>
      %cst_16 = arith.constant dense<0.000000e+00> : vector<16xf32>
      %19 = vector.multi_reduction <add>, %18, %cst_16 [1] : vector<16x32xf32> to vector<16xf32>
      %20 = vector.shape_cast %19 : vector<16xf32> to vector<16x1xf32>
      %cst_17 = arith.constant 3.200000e+01 : f32
      %21 = vector.broadcast %cst_17 : f32 to vector<16x1xf32>
      %22 = arith.divf %20, %21 : vector<16x1xf32>
      %23 = vector.broadcast %22 : vector<16x1xf32> to vector<16x32xf32>
      %24 = arith.subf %18, %23 : vector<16x32xf32>
      %25 = arith.mulf %24, %24 : vector<16x32xf32>
      %cst_18 = arith.constant dense<0.000000e+00> : vector<16xf32>
      %26 = vector.multi_reduction <add>, %25, %cst_18 [1] : vector<16x32xf32> to vector<16xf32>
      %27 = vector.shape_cast %26 : vector<16xf32> to vector<16x1xf32>
      %cst_19 = arith.constant 3.200000e+01 : f32
      %28 = vector.broadcast %cst_19 : f32 to vector<16x1xf32>
      %29 = arith.divf %27, %28 : vector<16x1xf32>
      %30 = vector.broadcast %22 : vector<16x1xf32> to vector<16x32xf32>
      %31 = arith.subf %18, %30 : vector<16x32xf32>
      %cst_20 = arith.constant 9.99999974E-6 : f32
      %32 = vector.broadcast %cst_20 : f32 to vector<16x1xf32>
      %33 = arith.addf %29, %32 : vector<16x1xf32>
      %34 = math.rsqrt %33 : vector<16x1xf32>
      %35 = vector.broadcast %34 : vector<16x1xf32> to vector<16x32xf32>
      %36 = arith.mulf %31, %35 : vector<16x32xf32>
      %c0_21 = arith.constant 0 : index
      %c0_22 = arith.constant 0 : index
      %37 = vector.load %arg6[%c0_21, %c0_22] : memref<1x32xf32, #tpu.memory_space<vmem>>, vector<1x32xf32>
      %38 = vector.broadcast %37 : vector<1x32xf32> to vector<16x32xf32>
      %39 = arith.mulf %36, %38 : vector<16x32xf32>
      %c0_23 = arith.constant 0 : index
      %c0_24 = arith.constant 0 : index
      %40 = vector.load %arg7[%c0_23, %c0_24] : memref<1x32xf32, #tpu.memory_space<vmem>>, vector<1x32xf32>
      %41 = vector.broadcast %40 : vector<1x32xf32> to vector<16x32xf32>
      %42 = arith.addf %39, %41 : vector<16x32xf32>
      %43 = arith.truncf %42 : vector<16x32xf32> to vector<16x32xbf16>
      %c0_25 = arith.constant 0 : index
      %c0_26 = arith.constant 0 : index
      %44 = vector.load %arg8[%c0_25, %c0_26] : memref<16x32xbf16, #tpu.memory_space<vmem>>, vector<16x32xbf16>
      tpu.vector_store %arg8[%c0_25, %c0_26], %43 {strides = array<i32>} : memref<16x32xbf16, #tpu.memory_space<vmem>>, vector<16x32xbf16>,
    } else {
    }
    return
  }
  func.func @transform_0(%arg0: i32, %arg1: i32) -> (i32, i32) {
    %c0_i32 = arith.constant 0 : i32
    return %arg0, %arg1 : i32, i32
  }
  func.func @transform_1(%arg0: i32, %arg1: i32) -> (i32, i32) {
    %c0_i32 = arith.constant 0 : i32
    %c0_i32_0 = arith.constant 0 : i32
    return %arg1, %c0_i32 : i32, i32
  }
  func.func @transform_2(%arg0: i32, %arg1: i32) -> (i32, i32) {
    %c0_i32 = arith.constant 0 : i32
    %c0_i32_0 = arith.constant 0 : i32
    %c0_i32_1 = arith.constant 0 : i32
    return %c0_i32, %c0_i32_0 : i32, i32
  }
  func.func @transform_3(%arg0: i32, %arg1: i32) -> (i32, i32) {
    %c0_i32 = arith.constant 0 : i32
    %c0_i32_0 = arith.constant 0 : i32
    return %arg0, %c0_i32 : i32, i32
  }
  func.func @transform_4(%arg0: i32, %arg1: i32) -> (i32, i32) {
    %c0_i32 = arith.constant 0 : i32
    %c0_i32_0 = arith.constant 0 : i32
    %c0_i32_1 = arith.constant 0 : i32
    return %c0_i32, %c0_i32_0 : i32, i32
  }
  func.func @transform_5(%arg0: i32, %arg1: i32) -> (i32, i32) {
    %c0_i32 = arith.constant 0 : i32
    %c0_i32_0 = arith.constant 0 : i32
    %c0_i32_1 = arith.constant 0 : i32
    return %c0_i32, %c0_i32_0 : i32, i32
  }
  func.func @transform_6(%arg0: i32, %arg1: i32) -> (i32, i32) {
    %c0_i32 = arith.constant 0 : i32
    %c0_i32_0 = arith.constant 0 : i32
    return %arg0, %c0_i32 : i32, i32
  }
}

module attributes {stable_mosaic.version = 11 : i64} {
  func.func @_matmul_bias_kernel(%arg0: i32, %arg1: i32, %arg2: i32, %arg3: memref<16x32xbf16, #tpu.memory_space<vmem>>, %arg4: memref<32x32xbf16, #tpu.memory_space<vmem>>, %arg5: memref<1x32xf32, #tpu.memory_space<vmem>>, %arg6: memref<16x32xbf16, #tpu.memory_space<vmem>>, %arg7: memref<16x32xf32, #tpu.memory_space<vmem>>) attributes {dimension_semantics = [#tpu.dimension_semantics<parallel>, #tpu.dimension_semantics<parallel>, #tpu.dimension_semantics<arbitrary>], iteration_bounds = array<i64: 1, 1, 1>, scalar_prefetch = 0 : i64, scratch_operands = 1 : i64, tpu.core_type = #tpu.core_type<tc>, window_params = [{transform_indices = @transform_0, window_bounds = array<i64: 16, 32>}, {transform_indices = @transform_1, window_bounds = array<i64: 32, 32>}, {transform_indices = @transform_2, window_bounds = array<i64: 1, 32>}, {transform_indices = @transform_3, window_bounds = array<i64: 16, 32>}]} {
    %c0_i32 = arith.constant 0 : i32
    %0 = arith.cmpi eq, %arg2, %c0_i32 : i32
    %1 = arith.extui %0 : i1 to i32
    %c0_i32_0 = arith.constant 0 : i32
    %2 = arith.cmpi ne, %1, %c0_i32_0 : i32
    scf.if %2 {
      %cst_10 = arith.constant 0.000000e+00 : f32
      %12 = vector.broadcast %cst_10 : f32 to vector<16x32xf32>
      %c0_11 = arith.constant 0 : index
      %c0_12 = arith.constant 0 : index
      %13 = vector.load %arg7[%c0_11, %c0_12] : memref<16x32xf32, #tpu.memory_space<vmem>>, vector<16x32xf32>
      tpu.vector_store %arg7[%c0_11, %c0_12], %12 {strides = array<i32>} : memref<16x32xf32, #tpu.memory_space<vmem>>, vector<16x32xf32>,
    } else {
    }
    %c0 = arith.constant 0 : index
    %c0_1 = arith.constant 0 : index
    %3 = vector.load %arg7[%c0, %c0_1] : memref<16x32xf32, #tpu.memory_space<vmem>>, vector<16x32xf32>
    %c0_2 = arith.constant 0 : index
    %c0_3 = arith.constant 0 : index
    %4 = vector.load %arg3[%c0_2, %c0_3] : memref<16x32xbf16, #tpu.memory_space<vmem>>, vector<16x32xbf16>
    %c0_4 = arith.constant 0 : index
    %c0_5 = arith.constant 0 : index
    %5 = vector.load %arg4[%c0_4, %c0_5] : memref<32x32xbf16, #tpu.memory_space<vmem>>, vector<32x32xbf16>
    %cst = arith.constant dense<0.000000e+00> : vector<16x32xf32>
    %6 = tpu.matmul %4, %5, %cst {dimension_numbers = #tpu.dot_dimension_numbers<[1], [0], [0], [1], [0, 0, 1, 1], [], []>} : vector<16x32xbf16>, vector<32x32xbf16>, vector<16x32xf32> -> vector<16x32xf32>
    %7 = arith.addf %3, %6 : vector<16x32xf32>
    %c0_6 = arith.constant 0 : index
    %c0_7 = arith.constant 0 : index
    %8 = vector.load %arg7[%c0_6, %c0_7] : memref<16x32xf32, #tpu.memory_space<vmem>>, vector<16x32xf32>
    tpu.vector_store %arg7[%c0_6, %c0_7], %7 {strides = array<i32>} : memref<16x32xf32, #tpu.memory_space<vmem>>, vector<16x32xf32>,
    %c0_i32_8 = arith.constant 0 : i32
    %9 = arith.cmpi eq, %arg2, %c0_i32_8 : i32
    %10 = arith.extui %9 : i1 to i32
    %c0_i32_9 = arith.constant 0 : i32
    %11 = arith.cmpi ne, %10, %c0_i32_9 : i32
    scf.if %11 {
      %c0_10 = arith.constant 0 : index
      %c0_11 = arith.constant 0 : index
      %12 = vector.load %arg7[%c0_10, %c0_11] : memref<16x32xf32, #tpu.memory_space<vmem>>, vector<16x32xf32>
      %c0_12 = arith.constant 0 : index
      %c0_13 = arith.constant 0 : index
      %13 = vector.load %arg5[%c0_12, %c0_13] : memref<1x32xf32, #tpu.memory_space<vmem>>, vector<1x32xf32>
      %14 = vector.broadcast %13 : vector<1x32xf32> to vector<16x32xf32>
      %15 = arith.addf %12, %14 : vector<16x32xf32>
      %16 = arith.truncf %15 : vector<16x32xf32> to vector<16x32xbf16>
      %c0_14 = arith.constant 0 : index
      %c0_15 = arith.constant 0 : index
      %17 = vector.load %arg6[%c0_14, %c0_15] : memref<16x32xbf16, #tpu.memory_space<vmem>>, vector<16x32xbf16>
      tpu.vector_store %arg6[%c0_14, %c0_15], %16 {strides = array<i32>} : memref<16x32xbf16, #tpu.memory_space<vmem>>, vector<16x32xbf16>,
    } else {
    }
    return
  }
  func.func @transform_0(%arg0: i32, %arg1: i32, %arg2: i32) -> (i32, i32) {
    %c0_i32 = arith.constant 0 : i32
    return %arg0, %arg2 : i32, i32
  }
  func.func @transform_1(%arg0: i32, %arg1: i32, %arg2: i32) -> (i32, i32) {
    %c0_i32 = arith.constant 0 : i32
    return %arg2, %arg1 : i32, i32
  }
  func.func @transform_2(%arg0: i32, %arg1: i32, %arg2: i32) -> (i32, i32) {
    %c0_i32 = arith.constant 0 : i32
    %c0_i32_0 = arith.constant 0 : i32
    return %c0_i32, %arg1 : i32, i32
  }
  func.func @transform_3(%arg0: i32, %arg1: i32, %arg2: i32) -> (i32, i32) {
    %c0_i32 = arith.constant 0 : i32
    return %arg0, %arg1 : i32, i32
  }
}

module attributes {stable_mosaic.version = 11 : i64} {
  func.func @_matmul_bias_kernel(%arg0: i32, %arg1: i32, %arg2: i32, %arg3: memref<8x192xbf16, #tpu.memory_space<vmem>>, %arg4: memref<192x32xbf16, #tpu.memory_space<vmem>>, %arg5: memref<1x32xf32, #tpu.memory_space<vmem>>, %arg6: memref<8x32xf32, #tpu.memory_space<vmem>>, %arg7: memref<8x32xf32, #tpu.memory_space<vmem>>) attributes {dimension_semantics = [#tpu.dimension_semantics<parallel>, #tpu.dimension_semantics<parallel>, #tpu.dimension_semantics<arbitrary>], iteration_bounds = array<i64: 1, 1, 1>, scalar_prefetch = 0 : i64, scratch_operands = 1 : i64, tpu.core_type = #tpu.core_type<tc>, window_params = [{transform_indices = @transform_0, window_bounds = array<i64: 8, 192>}, {transform_indices = @transform_1, window_bounds = array<i64: 192, 32>}, {transform_indices = @transform_2, window_bounds = array<i64: 1, 32>}, {transform_indices = @transform_3, window_bounds = array<i64: 8, 32>}]} {
    %c0_i32 = arith.constant 0 : i32
    %0 = arith.cmpi eq, %arg2, %c0_i32 : i32
    %1 = arith.extui %0 : i1 to i32
    %c0_i32_0 = arith.constant 0 : i32
    %2 = arith.cmpi ne, %1, %c0_i32_0 : i32
    scf.if %2 {
      %cst_10 = arith.constant 0.000000e+00 : f32
      %12 = vector.broadcast %cst_10 : f32 to vector<8x32xf32>
      %c0_11 = arith.constant 0 : index
      %c0_12 = arith.constant 0 : index
      %13 = vector.load %arg7[%c0_11, %c0_12] : memref<8x32xf32, #tpu.memory_space<vmem>>, vector<8x32xf32>
      tpu.vector_store %arg7[%c0_11, %c0_12], %12 {strides = array<i32>} : memref<8x32xf32, #tpu.memory_space<vmem>>, vector<8x32xf32>,
    } else {
    }
    %c0 = arith.constant 0 : index
    %c0_1 = arith.constant 0 : index
    %3 = vector.load %arg7[%c0, %c0_1] : memref<8x32xf32, #tpu.memory_space<vmem>>, vector<8x32xf32>
    %c0_2 = arith.constant 0 : index
    %c0_3 = arith.constant 0 : index
    %4 = vector.load %arg3[%c0_2, %c0_3] : memref<8x192xbf16, #tpu.memory_space<vmem>>, vector<8x192xbf16>
    %c0_4 = arith.constant 0 : index
    %c0_5 = arith.constant 0 : index
    %5 = vector.load %arg4[%c0_4, %c0_5] : memref<192x32xbf16, #tpu.memory_space<vmem>>, vector<192x32xbf16>
    %cst = arith.constant dense<0.000000e+00> : vector<8x32xf32>
    %6 = tpu.matmul %4, %5, %cst {dimension_numbers = #tpu.dot_dimension_numbers<[1], [0], [0], [1], [0, 0, 1, 1], [], []>} : vector<8x192xbf16>, vector<192x32xbf16>, vector<8x32xf32> -> vector<8x32xf32>
    %7 = arith.addf %3, %6 : vector<8x32xf32>
    %c0_6 = arith.constant 0 : index
    %c0_7 = arith.constant 0 : index
    %8 = vector.load %arg7[%c0_6, %c0_7] : memref<8x32xf32, #tpu.memory_space<vmem>>, vector<8x32xf32>
    tpu.vector_store %arg7[%c0_6, %c0_7], %7 {strides = array<i32>} : memref<8x32xf32, #tpu.memory_space<vmem>>, vector<8x32xf32>,
    %c0_i32_8 = arith.constant 0 : i32
    %9 = arith.cmpi eq, %arg2, %c0_i32_8 : i32
    %10 = arith.extui %9 : i1 to i32
    %c0_i32_9 = arith.constant 0 : i32
    %11 = arith.cmpi ne, %10, %c0_i32_9 : i32
    scf.if %11 {
      %c0_10 = arith.constant 0 : index
      %c0_11 = arith.constant 0 : index
      %12 = vector.load %arg7[%c0_10, %c0_11] : memref<8x32xf32, #tpu.memory_space<vmem>>, vector<8x32xf32>
      %c0_12 = arith.constant 0 : index
      %c0_13 = arith.constant 0 : index
      %13 = vector.load %arg5[%c0_12, %c0_13] : memref<1x32xf32, #tpu.memory_space<vmem>>, vector<1x32xf32>
      %14 = vector.broadcast %13 : vector<1x32xf32> to vector<8x32xf32>
      %15 = arith.addf %12, %14 : vector<8x32xf32>
      %c0_14 = arith.constant 0 : index
      %c0_15 = arith.constant 0 : index
      %16 = vector.load %arg6[%c0_14, %c0_15] : memref<8x32xf32, #tpu.memory_space<vmem>>, vector<8x32xf32>
      tpu.vector_store %arg6[%c0_14, %c0_15], %15 {strides = array<i32>} : memref<8x32xf32, #tpu.memory_space<vmem>>, vector<8x32xf32>,
    } else {
    }
    return
  }
  func.func @transform_0(%arg0: i32, %arg1: i32, %arg2: i32) -> (i32, i32) {
    %c0_i32 = arith.constant 0 : i32
    return %arg0, %arg2 : i32, i32
  }
  func.func @transform_1(%arg0: i32, %arg1: i32, %arg2: i32) -> (i32, i32) {
    %c0_i32 = arith.constant 0 : i32
    return %arg2, %arg1 : i32, i32
  }
  func.func @transform_2(%arg0: i32, %arg1: i32, %arg2: i32) -> (i32, i32) {
    %c0_i32 = arith.constant 0 : i32
    %c0_i32_0 = arith.constant 0 : i32
    return %c0_i32, %arg1 : i32, i32
  }
  func.func @transform_3(%arg0: i32, %arg1: i32, %arg2: i32) -> (i32, i32) {
    %c0_i32 = arith.constant 0 : i32
    return %arg0, %arg1 : i32, i32
  }
}

module attributes {stable_mosaic.version = 11 : i64} {
  func.func @_matmul_bias_kernel(%arg0: i32, %arg1: i32, %arg2: i32, %arg3: memref<10x32xbf16, #tpu.memory_space<vmem>>, %arg4: memref<32x96xbf16, #tpu.memory_space<vmem>>, %arg5: memref<1x96xf32, #tpu.memory_space<vmem>>, %arg6: memref<10x96xbf16, #tpu.memory_space<vmem>>, %arg7: memref<10x96xf32, #tpu.memory_space<vmem>>) attributes {dimension_semantics = [#tpu.dimension_semantics<parallel>, #tpu.dimension_semantics<parallel>, #tpu.dimension_semantics<arbitrary>], iteration_bounds = array<i64: 1, 1, 1>, scalar_prefetch = 0 : i64, scratch_operands = 1 : i64, tpu.core_type = #tpu.core_type<tc>, window_params = [{transform_indices = @transform_0, window_bounds = array<i64: 10, 32>}, {transform_indices = @transform_1, window_bounds = array<i64: 32, 96>}, {transform_indices = @transform_2, window_bounds = array<i64: 1, 96>}, {transform_indices = @transform_3, window_bounds = array<i64: 10, 96>}]} {
    %c0_i32 = arith.constant 0 : i32
    %0 = arith.cmpi eq, %arg2, %c0_i32 : i32
    %1 = arith.extui %0 : i1 to i32
    %c0_i32_0 = arith.constant 0 : i32
    %2 = arith.cmpi ne, %1, %c0_i32_0 : i32
    scf.if %2 {
      %cst_10 = arith.constant 0.000000e+00 : f32
      %12 = vector.broadcast %cst_10 : f32 to vector<10x96xf32>
      %c0_11 = arith.constant 0 : index
      %c0_12 = arith.constant 0 : index
      %13 = vector.load %arg7[%c0_11, %c0_12] : memref<10x96xf32, #tpu.memory_space<vmem>>, vector<10x96xf32>
      tpu.vector_store %arg7[%c0_11, %c0_12], %12 {strides = array<i32>} : memref<10x96xf32, #tpu.memory_space<vmem>>, vector<10x96xf32>,
    } else {
    }
    %c0 = arith.constant 0 : index
    %c0_1 = arith.constant 0 : index
    %3 = vector.load %arg7[%c0, %c0_1] : memref<10x96xf32, #tpu.memory_space<vmem>>, vector<10x96xf32>
    %c0_2 = arith.constant 0 : index
    %c0_3 = arith.constant 0 : index
    %4 = vector.load %arg3[%c0_2, %c0_3] : memref<10x32xbf16, #tpu.memory_space<vmem>>, vector<10x32xbf16>
    %c0_4 = arith.constant 0 : index
    %c0_5 = arith.constant 0 : index
    %5 = vector.load %arg4[%c0_4, %c0_5] : memref<32x96xbf16, #tpu.memory_space<vmem>>, vector<32x96xbf16>
    %cst = arith.constant dense<0.000000e+00> : vector<10x96xf32>
    %6 = tpu.matmul %4, %5, %cst {dimension_numbers = #tpu.dot_dimension_numbers<[1], [0], [0], [1], [0, 0, 1, 1], [], []>} : vector<10x32xbf16>, vector<32x96xbf16>, vector<10x96xf32> -> vector<10x96xf32>
    %7 = arith.addf %3, %6 : vector<10x96xf32>
    %c0_6 = arith.constant 0 : index
    %c0_7 = arith.constant 0 : index
    %8 = vector.load %arg7[%c0_6, %c0_7] : memref<10x96xf32, #tpu.memory_space<vmem>>, vector<10x96xf32>
    tpu.vector_store %arg7[%c0_6, %c0_7], %7 {strides = array<i32>} : memref<10x96xf32, #tpu.memory_space<vmem>>, vector<10x96xf32>,
    %c0_i32_8 = arith.constant 0 : i32
    %9 = arith.cmpi eq, %arg2, %c0_i32_8 : i32
    %10 = arith.extui %9 : i1 to i32
    %c0_i32_9 = arith.constant 0 : i32
    %11 = arith.cmpi ne, %10, %c0_i32_9 : i32
    scf.if %11 {
      %c0_10 = arith.constant 0 : index
      %c0_11 = arith.constant 0 : index
      %12 = vector.load %arg7[%c0_10, %c0_11] : memref<10x96xf32, #tpu.memory_space<vmem>>, vector<10x96xf32>
      %c0_12 = arith.constant 0 : index
      %c0_13 = arith.constant 0 : index
      %13 = vector.load %arg5[%c0_12, %c0_13] : memref<1x96xf32, #tpu.memory_space<vmem>>, vector<1x96xf32>
      %14 = vector.broadcast %13 : vector<1x96xf32> to vector<10x96xf32>
      %15 = arith.addf %12, %14 : vector<10x96xf32>
      %16 = arith.truncf %15 : vector<10x96xf32> to vector<10x96xbf16>
      %c0_14 = arith.constant 0 : index
      %c0_15 = arith.constant 0 : index
      %17 = vector.load %arg6[%c0_14, %c0_15] : memref<10x96xbf16, #tpu.memory_space<vmem>>, vector<10x96xbf16>
      tpu.vector_store %arg6[%c0_14, %c0_15], %16 {strides = array<i32>} : memref<10x96xbf16, #tpu.memory_space<vmem>>, vector<10x96xbf16>,
    } else {
    }
    return
  }
  func.func @transform_0(%arg0: i32, %arg1: i32, %arg2: i32) -> (i32, i32) {
    %c0_i32 = arith.constant 0 : i32
    return %arg0, %arg2 : i32, i32
  }
  func.func @transform_1(%arg0: i32, %arg1: i32, %arg2: i32) -> (i32, i32) {
    %c0_i32 = arith.constant 0 : i32
    return %arg2, %arg1 : i32, i32
  }
  func.func @transform_2(%arg0: i32, %arg1: i32, %arg2: i32) -> (i32, i32) {
    %c0_i32 = arith.constant 0 : i32
    %c0_i32_0 = arith.constant 0 : i32
    return %c0_i32, %arg1 : i32, i32
  }
  func.func @transform_3(%arg0: i32, %arg1: i32, %arg2: i32) -> (i32, i32) {
    %c0_i32 = arith.constant 0 : i32
    return %arg0, %arg1 : i32, i32
  }
}

module attributes {stable_mosaic.version = 11 : i64} {
  func.func @_attention_kernel(%arg0: i32, %arg1: memref<1x4x5x8xbf16, #tpu.memory_space<vmem>>, %arg2: memref<1x4x5x8xbf16, #tpu.memory_space<vmem>>, %arg3: memref<1x4x5x8xbf16, #tpu.memory_space<vmem>>, %arg4: memref<1x4x5x8xbf16, #tpu.memory_space<vmem>>) attributes {dimension_semantics = [#tpu.dimension_semantics<parallel>], iteration_bounds = array<i64: 2>, scalar_prefetch = 0 : i64, scratch_operands = 0 : i64, tpu.core_type = #tpu.core_type<tc>, window_params = [{transform_indices = @transform_0, window_bounds = array<i64: 1, 4, 5, 8>}, {transform_indices = @transform_1, window_bounds = array<i64: 1, 4, 5, 8>}, {transform_indices = @transform_2, window_bounds = array<i64: 1, 4, 5, 8>}, {transform_indices = @transform_3, window_bounds = array<i64: 1, 4, 5, 8>}]} {
    %c0 = arith.constant 0 : index
    %c0_0 = arith.constant 0 : index
    %c0_1 = arith.constant 0 : index
    %c0_2 = arith.constant 0 : index
    %0 = vector.load %arg1[%c0, %c0_0, %c0_1, %c0_2] : memref<1x4x5x8xbf16, #tpu.memory_space<vmem>>, vector<1x4x5x8xbf16>
    %1 = vector.shape_cast %0 : vector<1x4x5x8xbf16> to vector<4x5x8xbf16>
    %c0_3 = arith.constant 0 : index
    %c0_4 = arith.constant 0 : index
    %c0_5 = arith.constant 0 : index
    %c0_6 = arith.constant 0 : index
    %2 = vector.load %arg2[%c0_3, %c0_4, %c0_5, %c0_6] : memref<1x4x5x8xbf16, #tpu.memory_space<vmem>>, vector<1x4x5x8xbf16>
    %3 = vector.shape_cast %2 : vector<1x4x5x8xbf16> to vector<4x5x8xbf16>
    %c0_7 = arith.constant 0 : index
    %c0_8 = arith.constant 0 : index
    %c0_9 = arith.constant 0 : index
    %c0_10 = arith.constant 0 : index
    %4 = vector.load %arg3[%c0_7, %c0_8, %c0_9, %c0_10] : memref<1x4x5x8xbf16, #tpu.memory_space<vmem>>, vector<1x4x5x8xbf16>
    %5 = vector.shape_cast %4 : vector<1x4x5x8xbf16> to vector<4x5x8xbf16>
    "tpu.trace_start"() <{level = 10 : i32, message = "hqd,hkd->hqk"}> : () -> ()
    %cst = arith.constant dense<0.000000e+00> : vector<4x5x5xf32>
    %6 = tpu.matmul %1, %3, %cst {dimension_numbers = #tpu.dot_dimension_numbers<[2], [2], [1], [1], [0, 0, 0, 1, 1, 1], [0], [0]>} : vector<4x5x8xbf16>, vector<4x5x8xbf16>, vector<4x5x5xf32> -> vector<4x5x5xf32>
    "tpu.trace_stop"() : () -> ()
    %cst_11 = arith.constant 0.353553385 : f32
    %7 = vector.broadcast %cst_11 : f32 to vector<4x5x5xf32>
    %8 = arith.mulf %6, %7 : vector<4x5x5xf32>
    %cst_12 = arith.constant dense<0xFF800000> : vector<4x5xf32>
    %9 = vector.multi_reduction <maximumf>, %8, %cst_12 [2] : vector<4x5x5xf32> to vector<4x5xf32>
    %10 = vector.shape_cast %9 : vector<4x5xf32> to vector<4x5x1xf32>
    %11 = vector.broadcast %10 : vector<4x5x1xf32> to vector<4x5x5xf32>
    %12 = arith.subf %8, %11 : vector<4x5x5xf32>
    %13 = math.exp %12 : vector<4x5x5xf32>
    %cst_13 = arith.constant dense<0.000000e+00> : vector<4x5xf32>
    %14 = vector.multi_reduction <add>, %13, %cst_13 [2] : vector<4x5x5xf32> to vector<4x5xf32>
    %15 = vector.shape_cast %14 : vector<4x5xf32> to vector<4x5x1xf32>
    %16 = arith.truncf %13 : vector<4x5x5xf32> to vector<4x5x5xbf16>
    "tpu.trace_start"() <{level = 10 : i32, message = "hqk,hkd->hqd"}> : () -> ()
    %cst_14 = arith.constant dense<0.000000e+00> : vector<4x5x8xf32>
    %17 = tpu.matmul %16, %5, %cst_14 {dimension_numbers = #tpu.dot_dimension_numbers<[2], [1], [1], [2], [0, 0, 0, 1, 1, 2], [0], [0]>} : vector<4x5x5xbf16>, vector<4x5x8xbf16>, vector<4x5x8xf32> -> vector<4x5x8xf32>
    "tpu.trace_stop"() : () -> ()
    %18 = tpu.reciprocal %15 {approx = true} : vector<4x5x1xf32> -> vector<4x5x1xf32>
    %19 = vector.broadcast %18 : vector<4x5x1xf32> to vector<4x5x8xf32>
    %20 = arith.mulf %17, %19 : vector<4x5x8xf32>
    %21 = arith.truncf %20 : vector<4x5x8xf32> to vector<4x5x8xbf16>
    %c0_15 = arith.constant 0 : index
    %c0_16 = arith.constant 0 : index
    %c0_17 = arith.constant 0 : index
    %c0_18 = arith.constant 0 : index
    %22 = vector.load %arg4[%c0_15, %c0_16, %c0_17, %c0_18] : memref<1x4x5x8xbf16, #tpu.memory_space<vmem>>, vector<1x4x5x8xbf16>
    %23 = vector.shape_cast %22 : vector<1x4x5x8xbf16> to vector<4x5x8xbf16>
    %24 = vector.shape_cast %21 : vector<4x5x8xbf16> to vector<1x4x5x8xbf16>
    tpu.vector_store %arg4[%c0_15, %c0_16, %c0_17, %c0_18], %24 {strides = array<i32>} : memref<1x4x5x8xbf16, #tpu.memory_space<vmem>>, vector<1x4x5x8xbf16>,
    return
  }
  func.func @transform_0(%arg0: i32) -> (i32, i32, i32, i32) {
    %c0_i32 = arith.constant 0 : i32
    %c0_i32_0 = arith.constant 0 : i32
    %c0_i32_1 = arith.constant 0 : i32
    %c0_i32_2 = arith.constant 0 : i32
    return %arg0, %c0_i32, %c0_i32_0, %c0_i32_1 : i32, i32, i32, i32
  }
  func.func @transform_1(%arg0: i32) -> (i32, i32, i32, i32) {
    %c0_i32 = arith.constant 0 : i32
    %c0_i32_0 = arith.constant 0 : i32
    %c0_i32_1 = arith.constant 0 : i32
    %c0_i32_2 = arith.constant 0 : i32
    return %arg0, %c0_i32, %c0_i32_0, %c0_i32_1 : i32, i32, i32, i32
  }
  func.func @transform_2(%arg0: i32) -> (i32, i32, i32, i32) {
    %c0_i32 = arith.constant 0 : i32
    %c0_i32_0 = arith.constant 0 : i32
    %c0_i32_1 = arith.constant 0 : i32
    %c0_i32_2 = arith.constant 0 : i32
    return %arg0, %c0_i32, %c0_i32_0, %c0_i32_1 : i32, i32, i32, i32
  }
  func.func @transform_3(%arg0: i32) -> (i32, i32, i32, i32) {
    %c0_i32 = arith.constant 0 : i32
    %c0_i32_0 = arith.constant 0 : i32
    %c0_i32_1 = arith.constant 0 : i32
    %c0_i32_2 = arith.constant 0 : i32
    return %arg0, %c0_i32, %c0_i32_0, %c0_i32_1 : i32, i32, i32, i32
  }
}

module attributes {stable_mosaic.version = 11 : i64} {
  func.func @_matmul_res_ln_kernel(%arg0: i32, %arg1: i32, %arg2: memref<10x32xbf16, #tpu.memory_space<vmem>>, %arg3: memref<32x32xbf16, #tpu.memory_space<vmem>>, %arg4: memref<1x32xf32, #tpu.memory_space<vmem>>, %arg5: memref<10x32xbf16, #tpu.memory_space<vmem>>, %arg6: memref<1x32xf32, #tpu.memory_space<vmem>>, %arg7: memref<1x32xf32, #tpu.memory_space<vmem>>, %arg8: memref<10x32xbf16, #tpu.memory_space<vmem>>, %arg9: memref<10x32xf32, #tpu.memory_space<vmem>>) attributes {dimension_semantics = [#tpu.dimension_semantics<parallel>, #tpu.dimension_semantics<arbitrary>], iteration_bounds = array<i64: 1, 1>, scalar_prefetch = 0 : i64, scratch_operands = 1 : i64, tpu.core_type = #tpu.core_type<tc>, window_params = [{transform_indices = @transform_0, window_bounds = array<i64: 10, 32>}, {transform_indices = @transform_1, window_bounds = array<i64: 32, 32>}, {pipeline_mode = #tpu.pipeline_mode<synchronous>, transform_indices = @transform_2, window_bounds = array<i64: 1, 32>}, {transform_indices = @transform_3, window_bounds = array<i64: 10, 32>}, {pipeline_mode = #tpu.pipeline_mode<synchronous>, transform_indices = @transform_4, window_bounds = array<i64: 1, 32>}, {pipeline_mode = #tpu.pipeline_mode<synchronous>, transform_indices = @transform_5, window_bounds = array<i64: 1, 32>}, {transform_indices = @transform_6, window_bounds = array<i64: 10, 32>}]} {
    %c0_i32 = arith.constant 0 : i32
    %0 = arith.cmpi eq, %arg1, %c0_i32 : i32
    %1 = arith.extui %0 : i1 to i32
    %c0_i32_0 = arith.constant 0 : i32
    %2 = arith.cmpi ne, %1, %c0_i32_0 : i32
    scf.if %2 {
      %cst_10 = arith.constant 0.000000e+00 : f32
      %12 = vector.broadcast %cst_10 : f32 to vector<10x32xf32>
      %c0_11 = arith.constant 0 : index
      %c0_12 = arith.constant 0 : index
      %13 = vector.load %arg9[%c0_11, %c0_12] : memref<10x32xf32, #tpu.memory_space<vmem>>, vector<10x32xf32>
      tpu.vector_store %arg9[%c0_11, %c0_12], %12 {strides = array<i32>} : memref<10x32xf32, #tpu.memory_space<vmem>>, vector<10x32xf32>,
    } else {
    }
    %c0 = arith.constant 0 : index
    %c0_1 = arith.constant 0 : index
    %3 = vector.load %arg9[%c0, %c0_1] : memref<10x32xf32, #tpu.memory_space<vmem>>, vector<10x32xf32>
    %c0_2 = arith.constant 0 : index
    %c0_3 = arith.constant 0 : index
    %4 = vector.load %arg2[%c0_2, %c0_3] : memref<10x32xbf16, #tpu.memory_space<vmem>>, vector<10x32xbf16>
    %c0_4 = arith.constant 0 : index
    %c0_5 = arith.constant 0 : index
    %5 = vector.load %arg3[%c0_4, %c0_5] : memref<32x32xbf16, #tpu.memory_space<vmem>>, vector<32x32xbf16>
    %cst = arith.constant dense<0.000000e+00> : vector<10x32xf32>
    %6 = tpu.matmul %4, %5, %cst {dimension_numbers = #tpu.dot_dimension_numbers<[1], [0], [0], [1], [0, 0, 1, 1], [], []>} : vector<10x32xbf16>, vector<32x32xbf16>, vector<10x32xf32> -> vector<10x32xf32>
    %7 = arith.addf %3, %6 : vector<10x32xf32>
    %c0_6 = arith.constant 0 : index
    %c0_7 = arith.constant 0 : index
    %8 = vector.load %arg9[%c0_6, %c0_7] : memref<10x32xf32, #tpu.memory_space<vmem>>, vector<10x32xf32>
    tpu.vector_store %arg9[%c0_6, %c0_7], %7 {strides = array<i32>} : memref<10x32xf32, #tpu.memory_space<vmem>>, vector<10x32xf32>,
    %c0_i32_8 = arith.constant 0 : i32
    %9 = arith.cmpi eq, %arg1, %c0_i32_8 : i32
    %10 = arith.extui %9 : i1 to i32
    %c0_i32_9 = arith.constant 0 : i32
    %11 = arith.cmpi ne, %10, %c0_i32_9 : i32
    scf.if %11 {
      %c0_10 = arith.constant 0 : index
      %c0_11 = arith.constant 0 : index
      %12 = vector.load %arg9[%c0_10, %c0_11] : memref<10x32xf32, #tpu.memory_space<vmem>>, vector<10x32xf32>
      %c0_12 = arith.constant 0 : index
      %c0_13 = arith.constant 0 : index
      %13 = vector.load %arg4[%c0_12, %c0_13] : memref<1x32xf32, #tpu.memory_space<vmem>>, vector<1x32xf32>
      %14 = vector.broadcast %13 : vector<1x32xf32> to vector<10x32xf32>
      %15 = arith.addf %12, %14 : vector<10x32xf32>
      %c0_14 = arith.constant 0 : index
      %c0_15 = arith.constant 0 : index
      %16 = vector.load %arg5[%c0_14, %c0_15] : memref<10x32xbf16, #tpu.memory_space<vmem>>, vector<10x32xbf16>
      %17 = arith.extf %16 : vector<10x32xbf16> to vector<10x32xf32>
      %18 = arith.addf %15, %17 : vector<10x32xf32>
      %cst_16 = arith.constant dense<0.000000e+00> : vector<10xf32>
      %19 = vector.multi_reduction <add>, %18, %cst_16 [1] : vector<10x32xf32> to vector<10xf32>
      %20 = vector.shape_cast %19 : vector<10xf32> to vector<10x1xf32>
      %cst_17 = arith.constant 3.200000e+01 : f32
      %21 = vector.broadcast %cst_17 : f32 to vector<10x1xf32>
      %22 = arith.divf %20, %21 : vector<10x1xf32>
      %23 = vector.broadcast %22 : vector<10x1xf32> to vector<10x32xf32>
      %24 = arith.subf %18, %23 : vector<10x32xf32>
      %25 = arith.mulf %24, %24 : vector<10x32xf32>
      %cst_18 = arith.constant dense<0.000000e+00> : vector<10xf32>
      %26 = vector.multi_reduction <add>, %25, %cst_18 [1] : vector<10x32xf32> to vector<10xf32>
      %27 = vector.shape_cast %26 : vector<10xf32> to vector<10x1xf32>
      %cst_19 = arith.constant 3.200000e+01 : f32
      %28 = vector.broadcast %cst_19 : f32 to vector<10x1xf32>
      %29 = arith.divf %27, %28 : vector<10x1xf32>
      %30 = vector.broadcast %22 : vector<10x1xf32> to vector<10x32xf32>
      %31 = arith.subf %18, %30 : vector<10x32xf32>
      %cst_20 = arith.constant 9.99999974E-6 : f32
      %32 = vector.broadcast %cst_20 : f32 to vector<10x1xf32>
      %33 = arith.addf %29, %32 : vector<10x1xf32>
      %34 = math.rsqrt %33 : vector<10x1xf32>
      %35 = vector.broadcast %34 : vector<10x1xf32> to vector<10x32xf32>
      %36 = arith.mulf %31, %35 : vector<10x32xf32>
      %c0_21 = arith.constant 0 : index
      %c0_22 = arith.constant 0 : index
      %37 = vector.load %arg6[%c0_21, %c0_22] : memref<1x32xf32, #tpu.memory_space<vmem>>, vector<1x32xf32>
      %38 = vector.broadcast %37 : vector<1x32xf32> to vector<10x32xf32>
      %39 = arith.mulf %36, %38 : vector<10x32xf32>
      %c0_23 = arith.constant 0 : index
      %c0_24 = arith.constant 0 : index
      %40 = vector.load %arg7[%c0_23, %c0_24] : memref<1x32xf32, #tpu.memory_space<vmem>>, vector<1x32xf32>
      %41 = vector.broadcast %40 : vector<1x32xf32> to vector<10x32xf32>
      %42 = arith.addf %39, %41 : vector<10x32xf32>
      %43 = arith.truncf %42 : vector<10x32xf32> to vector<10x32xbf16>
      %c0_25 = arith.constant 0 : index
      %c0_26 = arith.constant 0 : index
      %44 = vector.load %arg8[%c0_25, %c0_26] : memref<10x32xbf16, #tpu.memory_space<vmem>>, vector<10x32xbf16>
      tpu.vector_store %arg8[%c0_25, %c0_26], %43 {strides = array<i32>} : memref<10x32xbf16, #tpu.memory_space<vmem>>, vector<10x32xbf16>,
    } else {
    }
    return
  }
  func.func @transform_0(%arg0: i32, %arg1: i32) -> (i32, i32) {
    %c0_i32 = arith.constant 0 : i32
    return %arg0, %arg1 : i32, i32
  }
  func.func @transform_1(%arg0: i32, %arg1: i32) -> (i32, i32) {
    %c0_i32 = arith.constant 0 : i32
    %c0_i32_0 = arith.constant 0 : i32
    return %arg1, %c0_i32 : i32, i32
  }
  func.func @transform_2(%arg0: i32, %arg1: i32) -> (i32, i32) {
    %c0_i32 = arith.constant 0 : i32
    %c0_i32_0 = arith.constant 0 : i32
    %c0_i32_1 = arith.constant 0 : i32
    return %c0_i32, %c0_i32_0 : i32, i32
  }
  func.func @transform_3(%arg0: i32, %arg1: i32) -> (i32, i32) {
    %c0_i32 = arith.constant 0 : i32
    %c0_i32_0 = arith.constant 0 : i32
    return %arg0, %c0_i32 : i32, i32
  }
  func.func @transform_4(%arg0: i32, %arg1: i32) -> (i32, i32) {
    %c0_i32 = arith.constant 0 : i32
    %c0_i32_0 = arith.constant 0 : i32
    %c0_i32_1 = arith.constant 0 : i32
    return %c0_i32, %c0_i32_0 : i32, i32
  }
  func.func @transform_5(%arg0: i32, %arg1: i32) -> (i32, i32) {
    %c0_i32 = arith.constant 0 : i32
    %c0_i32_0 = arith.constant 0 : i32
    %c0_i32_1 = arith.constant 0 : i32
    return %c0_i32, %c0_i32_0 : i32, i32
  }
  func.func @transform_6(%arg0: i32, %arg1: i32) -> (i32, i32) {
    %c0_i32 = arith.constant 0 : i32
    %c0_i32_0 = arith.constant 0 : i32
    return %arg0, %c0_i32 : i32, i32
  }
}

module attributes {stable_mosaic.version = 11 : i64} {
  func.func @_matmul_bias_kernel(%arg0: i32, %arg1: i32, %arg2: i32, %arg3: memref<10x32xbf16, #tpu.memory_space<vmem>>, %arg4: memref<32x128xbf16, #tpu.memory_space<vmem>>, %arg5: memref<1x128xf32, #tpu.memory_space<vmem>>, %arg6: memref<10x128xbf16, #tpu.memory_space<vmem>>, %arg7: memref<10x128xf32, #tpu.memory_space<vmem>>) attributes {dimension_semantics = [#tpu.dimension_semantics<parallel>, #tpu.dimension_semantics<parallel>, #tpu.dimension_semantics<arbitrary>], iteration_bounds = array<i64: 1, 1, 1>, scalar_prefetch = 0 : i64, scratch_operands = 1 : i64, tpu.core_type = #tpu.core_type<tc>, window_params = [{transform_indices = @transform_0, window_bounds = array<i64: 10, 32>}, {transform_indices = @transform_1, window_bounds = array<i64: 32, 128>}, {transform_indices = @transform_2, window_bounds = array<i64: 1, 128>}, {transform_indices = @transform_3, window_bounds = array<i64: 10, 128>}]} {
    %c0_i32 = arith.constant 0 : i32
    %0 = arith.cmpi eq, %arg2, %c0_i32 : i32
    %1 = arith.extui %0 : i1 to i32
    %c0_i32_0 = arith.constant 0 : i32
    %2 = arith.cmpi ne, %1, %c0_i32_0 : i32
    scf.if %2 {
      %cst_10 = arith.constant 0.000000e+00 : f32
      %12 = vector.broadcast %cst_10 : f32 to vector<10x128xf32>
      %c0_11 = arith.constant 0 : index
      %c0_12 = arith.constant 0 : index
      %13 = vector.load %arg7[%c0_11, %c0_12] : memref<10x128xf32, #tpu.memory_space<vmem>>, vector<10x128xf32>
      tpu.vector_store %arg7[%c0_11, %c0_12], %12 {strides = array<i32>} : memref<10x128xf32, #tpu.memory_space<vmem>>, vector<10x128xf32>,
    } else {
    }
    %c0 = arith.constant 0 : index
    %c0_1 = arith.constant 0 : index
    %3 = vector.load %arg7[%c0, %c0_1] : memref<10x128xf32, #tpu.memory_space<vmem>>, vector<10x128xf32>
    %c0_2 = arith.constant 0 : index
    %c0_3 = arith.constant 0 : index
    %4 = vector.load %arg3[%c0_2, %c0_3] : memref<10x32xbf16, #tpu.memory_space<vmem>>, vector<10x32xbf16>
    %c0_4 = arith.constant 0 : index
    %c0_5 = arith.constant 0 : index
    %5 = vector.load %arg4[%c0_4, %c0_5] : memref<32x128xbf16, #tpu.memory_space<vmem>>, vector<32x128xbf16>
    %cst = arith.constant dense<0.000000e+00> : vector<10x128xf32>
    %6 = tpu.matmul %4, %5, %cst {dimension_numbers = #tpu.dot_dimension_numbers<[1], [0], [0], [1], [0, 0, 1, 1], [], []>} : vector<10x32xbf16>, vector<32x128xbf16>, vector<10x128xf32> -> vector<10x128xf32>
    %7 = arith.addf %3, %6 : vector<10x128xf32>
    %c0_6 = arith.constant 0 : index
    %c0_7 = arith.constant 0 : index
    %8 = vector.load %arg7[%c0_6, %c0_7] : memref<10x128xf32, #tpu.memory_space<vmem>>, vector<10x128xf32>
    tpu.vector_store %arg7[%c0_6, %c0_7], %7 {strides = array<i32>} : memref<10x128xf32, #tpu.memory_space<vmem>>, vector<10x128xf32>,
    %c0_i32_8 = arith.constant 0 : i32
    %9 = arith.cmpi eq, %arg2, %c0_i32_8 : i32
    %10 = arith.extui %9 : i1 to i32
    %c0_i32_9 = arith.constant 0 : i32
    %11 = arith.cmpi ne, %10, %c0_i32_9 : i32
    scf.if %11 {
      %c0_10 = arith.constant 0 : index
      %c0_11 = arith.constant 0 : index
      %12 = vector.load %arg7[%c0_10, %c0_11] : memref<10x128xf32, #tpu.memory_space<vmem>>, vector<10x128xf32>
      %c0_12 = arith.constant 0 : index
      %c0_13 = arith.constant 0 : index
      %13 = vector.load %arg5[%c0_12, %c0_13] : memref<1x128xf32, #tpu.memory_space<vmem>>, vector<1x128xf32>
      %14 = vector.broadcast %13 : vector<1x128xf32> to vector<10x128xf32>
      %15 = arith.addf %12, %14 : vector<10x128xf32>
      %cst_14 = arith.constant 0.000000e+00 : f32
      %16 = vector.broadcast %cst_14 : f32 to vector<10x128xf32>
      %17 = arith.maximumf %15, %16 : vector<10x128xf32>
      %18 = arith.truncf %17 : vector<10x128xf32> to vector<10x128xbf16>
      %c0_15 = arith.constant 0 : index
      %c0_16 = arith.constant 0 : index
      %19 = vector.load %arg6[%c0_15, %c0_16] : memref<10x128xbf16, #tpu.memory_space<vmem>>, vector<10x128xbf16>
      tpu.vector_store %arg6[%c0_15, %c0_16], %18 {strides = array<i32>} : memref<10x128xbf16, #tpu.memory_space<vmem>>, vector<10x128xbf16>,
    } else {
    }
    return
  }
  func.func @transform_0(%arg0: i32, %arg1: i32, %arg2: i32) -> (i32, i32) {
    %c0_i32 = arith.constant 0 : i32
    return %arg0, %arg2 : i32, i32
  }
  func.func @transform_1(%arg0: i32, %arg1: i32, %arg2: i32) -> (i32, i32) {
    %c0_i32 = arith.constant 0 : i32
    return %arg2, %arg1 : i32, i32
  }
  func.func @transform_2(%arg0: i32, %arg1: i32, %arg2: i32) -> (i32, i32) {
    %c0_i32 = arith.constant 0 : i32
    %c0_i32_0 = arith.constant 0 : i32
    return %c0_i32, %arg1 : i32, i32
  }
  func.func @transform_3(%arg0: i32, %arg1: i32, %arg2: i32) -> (i32, i32) {
    %c0_i32 = arith.constant 0 : i32
    return %arg0, %arg1 : i32, i32
  }
}

module attributes {stable_mosaic.version = 11 : i64} {
  func.func @_matmul_res_ln_kernel(%arg0: i32, %arg1: i32, %arg2: memref<10x128xbf16, #tpu.memory_space<vmem>>, %arg3: memref<128x32xbf16, #tpu.memory_space<vmem>>, %arg4: memref<1x32xf32, #tpu.memory_space<vmem>>, %arg5: memref<10x32xbf16, #tpu.memory_space<vmem>>, %arg6: memref<1x32xf32, #tpu.memory_space<vmem>>, %arg7: memref<1x32xf32, #tpu.memory_space<vmem>>, %arg8: memref<10x32xbf16, #tpu.memory_space<vmem>>, %arg9: memref<10x32xf32, #tpu.memory_space<vmem>>) attributes {dimension_semantics = [#tpu.dimension_semantics<parallel>, #tpu.dimension_semantics<arbitrary>], iteration_bounds = array<i64: 1, 1>, scalar_prefetch = 0 : i64, scratch_operands = 1 : i64, tpu.core_type = #tpu.core_type<tc>, window_params = [{transform_indices = @transform_0, window_bounds = array<i64: 10, 128>}, {transform_indices = @transform_1, window_bounds = array<i64: 128, 32>}, {pipeline_mode = #tpu.pipeline_mode<synchronous>, transform_indices = @transform_2, window_bounds = array<i64: 1, 32>}, {transform_indices = @transform_3, window_bounds = array<i64: 10, 32>}, {pipeline_mode = #tpu.pipeline_mode<synchronous>, transform_indices = @transform_4, window_bounds = array<i64: 1, 32>}, {pipeline_mode = #tpu.pipeline_mode<synchronous>, transform_indices = @transform_5, window_bounds = array<i64: 1, 32>}, {transform_indices = @transform_6, window_bounds = array<i64: 10, 32>}]} {
    %c0_i32 = arith.constant 0 : i32
    %0 = arith.cmpi eq, %arg1, %c0_i32 : i32
    %1 = arith.extui %0 : i1 to i32
    %c0_i32_0 = arith.constant 0 : i32
    %2 = arith.cmpi ne, %1, %c0_i32_0 : i32
    scf.if %2 {
      %cst_10 = arith.constant 0.000000e+00 : f32
      %12 = vector.broadcast %cst_10 : f32 to vector<10x32xf32>
      %c0_11 = arith.constant 0 : index
      %c0_12 = arith.constant 0 : index
      %13 = vector.load %arg9[%c0_11, %c0_12] : memref<10x32xf32, #tpu.memory_space<vmem>>, vector<10x32xf32>
      tpu.vector_store %arg9[%c0_11, %c0_12], %12 {strides = array<i32>} : memref<10x32xf32, #tpu.memory_space<vmem>>, vector<10x32xf32>,
    } else {
    }
    %c0 = arith.constant 0 : index
    %c0_1 = arith.constant 0 : index
    %3 = vector.load %arg9[%c0, %c0_1] : memref<10x32xf32, #tpu.memory_space<vmem>>, vector<10x32xf32>
    %c0_2 = arith.constant 0 : index
    %c0_3 = arith.constant 0 : index
    %4 = vector.load %arg2[%c0_2, %c0_3] : memref<10x128xbf16, #tpu.memory_space<vmem>>, vector<10x128xbf16>
    %c0_4 = arith.constant 0 : index
    %c0_5 = arith.constant 0 : index
    %5 = vector.load %arg3[%c0_4, %c0_5] : memref<128x32xbf16, #tpu.memory_space<vmem>>, vector<128x32xbf16>
    %cst = arith.constant dense<0.000000e+00> : vector<10x32xf32>
    %6 = tpu.matmul %4, %5, %cst {dimension_numbers = #tpu.dot_dimension_numbers<[1], [0], [0], [1], [0, 0, 1, 1], [], []>} : vector<10x128xbf16>, vector<128x32xbf16>, vector<10x32xf32> -> vector<10x32xf32>
    %7 = arith.addf %3, %6 : vector<10x32xf32>
    %c0_6 = arith.constant 0 : index
    %c0_7 = arith.constant 0 : index
    %8 = vector.load %arg9[%c0_6, %c0_7] : memref<10x32xf32, #tpu.memory_space<vmem>>, vector<10x32xf32>
    tpu.vector_store %arg9[%c0_6, %c0_7], %7 {strides = array<i32>} : memref<10x32xf32, #tpu.memory_space<vmem>>, vector<10x32xf32>,
    %c0_i32_8 = arith.constant 0 : i32
    %9 = arith.cmpi eq, %arg1, %c0_i32_8 : i32
    %10 = arith.extui %9 : i1 to i32
    %c0_i32_9 = arith.constant 0 : i32
    %11 = arith.cmpi ne, %10, %c0_i32_9 : i32
    scf.if %11 {
      %c0_10 = arith.constant 0 : index
      %c0_11 = arith.constant 0 : index
      %12 = vector.load %arg9[%c0_10, %c0_11] : memref<10x32xf32, #tpu.memory_space<vmem>>, vector<10x32xf32>
      %c0_12 = arith.constant 0 : index
      %c0_13 = arith.constant 0 : index
      %13 = vector.load %arg4[%c0_12, %c0_13] : memref<1x32xf32, #tpu.memory_space<vmem>>, vector<1x32xf32>
      %14 = vector.broadcast %13 : vector<1x32xf32> to vector<10x32xf32>
      %15 = arith.addf %12, %14 : vector<10x32xf32>
      %c0_14 = arith.constant 0 : index
      %c0_15 = arith.constant 0 : index
      %16 = vector.load %arg5[%c0_14, %c0_15] : memref<10x32xbf16, #tpu.memory_space<vmem>>, vector<10x32xbf16>
      %17 = arith.extf %16 : vector<10x32xbf16> to vector<10x32xf32>
      %18 = arith.addf %15, %17 : vector<10x32xf32>
      %cst_16 = arith.constant dense<0.000000e+00> : vector<10xf32>
      %19 = vector.multi_reduction <add>, %18, %cst_16 [1] : vector<10x32xf32> to vector<10xf32>
      %20 = vector.shape_cast %19 : vector<10xf32> to vector<10x1xf32>
      %cst_17 = arith.constant 3.200000e+01 : f32
      %21 = vector.broadcast %cst_17 : f32 to vector<10x1xf32>
      %22 = arith.divf %20, %21 : vector<10x1xf32>
      %23 = vector.broadcast %22 : vector<10x1xf32> to vector<10x32xf32>
      %24 = arith.subf %18, %23 : vector<10x32xf32>
      %25 = arith.mulf %24, %24 : vector<10x32xf32>
      %cst_18 = arith.constant dense<0.000000e+00> : vector<10xf32>
      %26 = vector.multi_reduction <add>, %25, %cst_18 [1] : vector<10x32xf32> to vector<10xf32>
      %27 = vector.shape_cast %26 : vector<10xf32> to vector<10x1xf32>
      %cst_19 = arith.constant 3.200000e+01 : f32
      %28 = vector.broadcast %cst_19 : f32 to vector<10x1xf32>
      %29 = arith.divf %27, %28 : vector<10x1xf32>
      %30 = vector.broadcast %22 : vector<10x1xf32> to vector<10x32xf32>
      %31 = arith.subf %18, %30 : vector<10x32xf32>
      %cst_20 = arith.constant 9.99999974E-6 : f32
      %32 = vector.broadcast %cst_20 : f32 to vector<10x1xf32>
      %33 = arith.addf %29, %32 : vector<10x1xf32>
      %34 = math.rsqrt %33 : vector<10x1xf32>
      %35 = vector.broadcast %34 : vector<10x1xf32> to vector<10x32xf32>
      %36 = arith.mulf %31, %35 : vector<10x32xf32>
      %c0_21 = arith.constant 0 : index
      %c0_22 = arith.constant 0 : index
      %37 = vector.load %arg6[%c0_21, %c0_22] : memref<1x32xf32, #tpu.memory_space<vmem>>, vector<1x32xf32>
      %38 = vector.broadcast %37 : vector<1x32xf32> to vector<10x32xf32>
      %39 = arith.mulf %36, %38 : vector<10x32xf32>
      %c0_23 = arith.constant 0 : index
      %c0_24 = arith.constant 0 : index
      %40 = vector.load %arg7[%c0_23, %c0_24] : memref<1x32xf32, #tpu.memory_space<vmem>>, vector<1x32xf32>
      %41 = vector.broadcast %40 : vector<1x32xf32> to vector<10x32xf32>
      %42 = arith.addf %39, %41 : vector<10x32xf32>
      %43 = arith.truncf %42 : vector<10x32xf32> to vector<10x32xbf16>
      %c0_25 = arith.constant 0 : index
      %c0_26 = arith.constant 0 : index
      %44 = vector.load %arg8[%c0_25, %c0_26] : memref<10x32xbf16, #tpu.memory_space<vmem>>, vector<10x32xbf16>
      tpu.vector_store %arg8[%c0_25, %c0_26], %43 {strides = array<i32>} : memref<10x32xbf16, #tpu.memory_space<vmem>>, vector<10x32xbf16>,
    } else {
    }
    return
  }
  func.func @transform_0(%arg0: i32, %arg1: i32) -> (i32, i32) {
    %c0_i32 = arith.constant 0 : i32
    return %arg0, %arg1 : i32, i32
  }
  func.func @transform_1(%arg0: i32, %arg1: i32) -> (i32, i32) {
    %c0_i32 = arith.constant 0 : i32
    %c0_i32_0 = arith.constant 0 : i32
    return %arg1, %c0_i32 : i32, i32
  }
  func.func @transform_2(%arg0: i32, %arg1: i32) -> (i32, i32) {
    %c0_i32 = arith.constant 0 : i32
    %c0_i32_0 = arith.constant 0 : i32
    %c0_i32_1 = arith.constant 0 : i32
    return %c0_i32, %c0_i32_0 : i32, i32
  }
  func.func @transform_3(%arg0: i32, %arg1: i32) -> (i32, i32) {
    %c0_i32 = arith.constant 0 : i32
    %c0_i32_0 = arith.constant 0 : i32
    return %arg0, %c0_i32 : i32, i32
  }
  func.func @transform_4(%arg0: i32, %arg1: i32) -> (i32, i32) {
    %c0_i32 = arith.constant 0 : i32
    %c0_i32_0 = arith.constant 0 : i32
    %c0_i32_1 = arith.constant 0 : i32
    return %c0_i32, %c0_i32_0 : i32, i32
  }
  func.func @transform_5(%arg0: i32, %arg1: i32) -> (i32, i32) {
    %c0_i32 = arith.constant 0 : i32
    %c0_i32_0 = arith.constant 0 : i32
    %c0_i32_1 = arith.constant 0 : i32
    return %c0_i32, %c0_i32_0 : i32, i32
  }
  func.func @transform_6(%arg0: i32, %arg1: i32) -> (i32, i32) {
    %c0_i32 = arith.constant 0 : i32
    %c0_i32_0 = arith.constant 0 : i32
    return %arg0, %c0_i32 : i32, i32
  }
}

module attributes {stable_mosaic.version = 11 : i64} {
  func.func @_matmul_bias_kernel(%arg0: i32, %arg1: i32, %arg2: i32, %arg3: memref<10x32xbf16, #tpu.memory_space<vmem>>, %arg4: memref<32x64xbf16, #tpu.memory_space<vmem>>, %arg5: memref<1x64xf32, #tpu.memory_space<vmem>>, %arg6: memref<10x64xbf16, #tpu.memory_space<vmem>>, %arg7: memref<10x64xf32, #tpu.memory_space<vmem>>) attributes {dimension_semantics = [#tpu.dimension_semantics<parallel>, #tpu.dimension_semantics<parallel>, #tpu.dimension_semantics<arbitrary>], iteration_bounds = array<i64: 1, 1, 1>, scalar_prefetch = 0 : i64, scratch_operands = 1 : i64, tpu.core_type = #tpu.core_type<tc>, window_params = [{transform_indices = @transform_0, window_bounds = array<i64: 10, 32>}, {transform_indices = @transform_1, window_bounds = array<i64: 32, 64>}, {transform_indices = @transform_2, window_bounds = array<i64: 1, 64>}, {transform_indices = @transform_3, window_bounds = array<i64: 10, 64>}]} {
    %c0_i32 = arith.constant 0 : i32
    %0 = arith.cmpi eq, %arg2, %c0_i32 : i32
    %1 = arith.extui %0 : i1 to i32
    %c0_i32_0 = arith.constant 0 : i32
    %2 = arith.cmpi ne, %1, %c0_i32_0 : i32
    scf.if %2 {
      %cst_10 = arith.constant 0.000000e+00 : f32
      %12 = vector.broadcast %cst_10 : f32 to vector<10x64xf32>
      %c0_11 = arith.constant 0 : index
      %c0_12 = arith.constant 0 : index
      %13 = vector.load %arg7[%c0_11, %c0_12] : memref<10x64xf32, #tpu.memory_space<vmem>>, vector<10x64xf32>
      tpu.vector_store %arg7[%c0_11, %c0_12], %12 {strides = array<i32>} : memref<10x64xf32, #tpu.memory_space<vmem>>, vector<10x64xf32>,
    } else {
    }
    %c0 = arith.constant 0 : index
    %c0_1 = arith.constant 0 : index
    %3 = vector.load %arg7[%c0, %c0_1] : memref<10x64xf32, #tpu.memory_space<vmem>>, vector<10x64xf32>
    %c0_2 = arith.constant 0 : index
    %c0_3 = arith.constant 0 : index
    %4 = vector.load %arg3[%c0_2, %c0_3] : memref<10x32xbf16, #tpu.memory_space<vmem>>, vector<10x32xbf16>
    %c0_4 = arith.constant 0 : index
    %c0_5 = arith.constant 0 : index
    %5 = vector.load %arg4[%c0_4, %c0_5] : memref<32x64xbf16, #tpu.memory_space<vmem>>, vector<32x64xbf16>
    %cst = arith.constant dense<0.000000e+00> : vector<10x64xf32>
    %6 = tpu.matmul %4, %5, %cst {dimension_numbers = #tpu.dot_dimension_numbers<[1], [0], [0], [1], [0, 0, 1, 1], [], []>} : vector<10x32xbf16>, vector<32x64xbf16>, vector<10x64xf32> -> vector<10x64xf32>
    %7 = arith.addf %3, %6 : vector<10x64xf32>
    %c0_6 = arith.constant 0 : index
    %c0_7 = arith.constant 0 : index
    %8 = vector.load %arg7[%c0_6, %c0_7] : memref<10x64xf32, #tpu.memory_space<vmem>>, vector<10x64xf32>
    tpu.vector_store %arg7[%c0_6, %c0_7], %7 {strides = array<i32>} : memref<10x64xf32, #tpu.memory_space<vmem>>, vector<10x64xf32>,
    %c0_i32_8 = arith.constant 0 : i32
    %9 = arith.cmpi eq, %arg2, %c0_i32_8 : i32
    %10 = arith.extui %9 : i1 to i32
    %c0_i32_9 = arith.constant 0 : i32
    %11 = arith.cmpi ne, %10, %c0_i32_9 : i32
    scf.if %11 {
      %c0_10 = arith.constant 0 : index
      %c0_11 = arith.constant 0 : index
      %12 = vector.load %arg7[%c0_10, %c0_11] : memref<10x64xf32, #tpu.memory_space<vmem>>, vector<10x64xf32>
      %c0_12 = arith.constant 0 : index
      %c0_13 = arith.constant 0 : index
      %13 = vector.load %arg5[%c0_12, %c0_13] : memref<1x64xf32, #tpu.memory_space<vmem>>, vector<1x64xf32>
      %14 = vector.broadcast %13 : vector<1x64xf32> to vector<10x64xf32>
      %15 = arith.addf %12, %14 : vector<10x64xf32>
      %16 = arith.truncf %15 : vector<10x64xf32> to vector<10x64xbf16>
      %c0_14 = arith.constant 0 : index
      %c0_15 = arith.constant 0 : index
      %17 = vector.load %arg6[%c0_14, %c0_15] : memref<10x64xbf16, #tpu.memory_space<vmem>>, vector<10x64xbf16>
      tpu.vector_store %arg6[%c0_14, %c0_15], %16 {strides = array<i32>} : memref<10x64xbf16, #tpu.memory_space<vmem>>, vector<10x64xbf16>,
    } else {
    }
    return
  }
  func.func @transform_0(%arg0: i32, %arg1: i32, %arg2: i32) -> (i32, i32) {
    %c0_i32 = arith.constant 0 : i32
    return %arg0, %arg2 : i32, i32
  }
  func.func @transform_1(%arg0: i32, %arg1: i32, %arg2: i32) -> (i32, i32) {
    %c0_i32 = arith.constant 0 : i32
    return %arg2, %arg1 : i32, i32
  }
  func.func @transform_2(%arg0: i32, %arg1: i32, %arg2: i32) -> (i32, i32) {
    %c0_i32 = arith.constant 0 : i32
    %c0_i32_0 = arith.constant 0 : i32
    return %c0_i32, %arg1 : i32, i32
  }
  func.func @transform_3(%arg0: i32, %arg1: i32, %arg2: i32) -> (i32, i32) {
    %c0_i32 = arith.constant 0 : i32
    return %arg0, %arg1 : i32, i32
  }
}

module attributes {stable_mosaic.version = 11 : i64} {
  func.func @_matmul_bias_kernel(%arg0: i32, %arg1: i32, %arg2: i32, %arg3: memref<16x32xbf16, #tpu.memory_space<vmem>>, %arg4: memref<32x128xbf16, #tpu.memory_space<vmem>>, %arg5: memref<1x128xf32, #tpu.memory_space<vmem>>, %arg6: memref<16x128xbf16, #tpu.memory_space<vmem>>, %arg7: memref<16x128xf32, #tpu.memory_space<vmem>>) attributes {dimension_semantics = [#tpu.dimension_semantics<parallel>, #tpu.dimension_semantics<parallel>, #tpu.dimension_semantics<arbitrary>], iteration_bounds = array<i64: 1, 1, 1>, scalar_prefetch = 0 : i64, scratch_operands = 1 : i64, tpu.core_type = #tpu.core_type<tc>, window_params = [{transform_indices = @transform_0, window_bounds = array<i64: 16, 32>}, {transform_indices = @transform_1, window_bounds = array<i64: 32, 128>}, {transform_indices = @transform_2, window_bounds = array<i64: 1, 128>}, {transform_indices = @transform_3, window_bounds = array<i64: 16, 128>}]} {
    %c0_i32 = arith.constant 0 : i32
    %0 = arith.cmpi eq, %arg2, %c0_i32 : i32
    %1 = arith.extui %0 : i1 to i32
    %c0_i32_0 = arith.constant 0 : i32
    %2 = arith.cmpi ne, %1, %c0_i32_0 : i32
    scf.if %2 {
      %cst_10 = arith.constant 0.000000e+00 : f32
      %12 = vector.broadcast %cst_10 : f32 to vector<16x128xf32>
      %c0_11 = arith.constant 0 : index
      %c0_12 = arith.constant 0 : index
      %13 = vector.load %arg7[%c0_11, %c0_12] : memref<16x128xf32, #tpu.memory_space<vmem>>, vector<16x128xf32>
      tpu.vector_store %arg7[%c0_11, %c0_12], %12 {strides = array<i32>} : memref<16x128xf32, #tpu.memory_space<vmem>>, vector<16x128xf32>,
    } else {
    }
    %c0 = arith.constant 0 : index
    %c0_1 = arith.constant 0 : index
    %3 = vector.load %arg7[%c0, %c0_1] : memref<16x128xf32, #tpu.memory_space<vmem>>, vector<16x128xf32>
    %c0_2 = arith.constant 0 : index
    %c0_3 = arith.constant 0 : index
    %4 = vector.load %arg3[%c0_2, %c0_3] : memref<16x32xbf16, #tpu.memory_space<vmem>>, vector<16x32xbf16>
    %c0_4 = arith.constant 0 : index
    %c0_5 = arith.constant 0 : index
    %5 = vector.load %arg4[%c0_4, %c0_5] : memref<32x128xbf16, #tpu.memory_space<vmem>>, vector<32x128xbf16>
    %cst = arith.constant dense<0.000000e+00> : vector<16x128xf32>
    %6 = tpu.matmul %4, %5, %cst {dimension_numbers = #tpu.dot_dimension_numbers<[1], [0], [0], [1], [0, 0, 1, 1], [], []>} : vector<16x32xbf16>, vector<32x128xbf16>, vector<16x128xf32> -> vector<16x128xf32>
    %7 = arith.addf %3, %6 : vector<16x128xf32>
    %c0_6 = arith.constant 0 : index
    %c0_7 = arith.constant 0 : index
    %8 = vector.load %arg7[%c0_6, %c0_7] : memref<16x128xf32, #tpu.memory_space<vmem>>, vector<16x128xf32>
    tpu.vector_store %arg7[%c0_6, %c0_7], %7 {strides = array<i32>} : memref<16x128xf32, #tpu.memory_space<vmem>>, vector<16x128xf32>,
    %c0_i32_8 = arith.constant 0 : i32
    %9 = arith.cmpi eq, %arg2, %c0_i32_8 : i32
    %10 = arith.extui %9 : i1 to i32
    %c0_i32_9 = arith.constant 0 : i32
    %11 = arith.cmpi ne, %10, %c0_i32_9 : i32
    scf.if %11 {
      %c0_10 = arith.constant 0 : index
      %c0_11 = arith.constant 0 : index
      %12 = vector.load %arg7[%c0_10, %c0_11] : memref<16x128xf32, #tpu.memory_space<vmem>>, vector<16x128xf32>
      %c0_12 = arith.constant 0 : index
      %c0_13 = arith.constant 0 : index
      %13 = vector.load %arg5[%c0_12, %c0_13] : memref<1x128xf32, #tpu.memory_space<vmem>>, vector<1x128xf32>
      %14 = vector.broadcast %13 : vector<1x128xf32> to vector<16x128xf32>
      %15 = arith.addf %12, %14 : vector<16x128xf32>
      %cst_14 = arith.constant 0.000000e+00 : f32
      %16 = vector.broadcast %cst_14 : f32 to vector<16x128xf32>
      %17 = arith.maximumf %15, %16 : vector<16x128xf32>
      %18 = arith.truncf %17 : vector<16x128xf32> to vector<16x128xbf16>
      %c0_15 = arith.constant 0 : index
      %c0_16 = arith.constant 0 : index
      %19 = vector.load %arg6[%c0_15, %c0_16] : memref<16x128xbf16, #tpu.memory_space<vmem>>, vector<16x128xbf16>
      tpu.vector_store %arg6[%c0_15, %c0_16], %18 {strides = array<i32>} : memref<16x128xbf16, #tpu.memory_space<vmem>>, vector<16x128xbf16>,
    } else {
    }
    return
  }
  func.func @transform_0(%arg0: i32, %arg1: i32, %arg2: i32) -> (i32, i32) {
    %c0_i32 = arith.constant 0 : i32
    return %arg0, %arg2 : i32, i32
  }
  func.func @transform_1(%arg0: i32, %arg1: i32, %arg2: i32) -> (i32, i32) {
    %c0_i32 = arith.constant 0 : i32
    return %arg2, %arg1 : i32, i32
  }
  func.func @transform_2(%arg0: i32, %arg1: i32, %arg2: i32) -> (i32, i32) {
    %c0_i32 = arith.constant 0 : i32
    %c0_i32_0 = arith.constant 0 : i32
    return %c0_i32, %arg1 : i32, i32
  }
  func.func @transform_3(%arg0: i32, %arg1: i32, %arg2: i32) -> (i32, i32) {
    %c0_i32 = arith.constant 0 : i32
    return %arg0, %arg1 : i32, i32
  }
}

module attributes {stable_mosaic.version = 11 : i64} {
  func.func @_attention_kernel(%arg0: i32, %arg1: memref<1x4x8x8xbf16, #tpu.memory_space<vmem>>, %arg2: memref<1x4x5x8xbf16, #tpu.memory_space<vmem>>, %arg3: memref<1x4x5x8xbf16, #tpu.memory_space<vmem>>, %arg4: memref<1x4x8x8xbf16, #tpu.memory_space<vmem>>) attributes {dimension_semantics = [#tpu.dimension_semantics<parallel>], iteration_bounds = array<i64: 2>, scalar_prefetch = 0 : i64, scratch_operands = 0 : i64, tpu.core_type = #tpu.core_type<tc>, window_params = [{transform_indices = @transform_0, window_bounds = array<i64: 1, 4, 8, 8>}, {transform_indices = @transform_1, window_bounds = array<i64: 1, 4, 5, 8>}, {transform_indices = @transform_2, window_bounds = array<i64: 1, 4, 5, 8>}, {transform_indices = @transform_3, window_bounds = array<i64: 1, 4, 8, 8>}]} {
    %c0 = arith.constant 0 : index
    %c0_0 = arith.constant 0 : index
    %c0_1 = arith.constant 0 : index
    %c0_2 = arith.constant 0 : index
    %0 = vector.load %arg1[%c0, %c0_0, %c0_1, %c0_2] : memref<1x4x8x8xbf16, #tpu.memory_space<vmem>>, vector<1x4x8x8xbf16>
    %1 = vector.shape_cast %0 : vector<1x4x8x8xbf16> to vector<4x8x8xbf16>
    %c0_3 = arith.constant 0 : index
    %c0_4 = arith.constant 0 : index
    %c0_5 = arith.constant 0 : index
    %c0_6 = arith.constant 0 : index
    %2 = vector.load %arg2[%c0_3, %c0_4, %c0_5, %c0_6] : memref<1x4x5x8xbf16, #tpu.memory_space<vmem>>, vector<1x4x5x8xbf16>
    %3 = vector.shape_cast %2 : vector<1x4x5x8xbf16> to vector<4x5x8xbf16>
    %c0_7 = arith.constant 0 : index
    %c0_8 = arith.constant 0 : index
    %c0_9 = arith.constant 0 : index
    %c0_10 = arith.constant 0 : index
    %4 = vector.load %arg3[%c0_7, %c0_8, %c0_9, %c0_10] : memref<1x4x5x8xbf16, #tpu.memory_space<vmem>>, vector<1x4x5x8xbf16>
    %5 = vector.shape_cast %4 : vector<1x4x5x8xbf16> to vector<4x5x8xbf16>
    "tpu.trace_start"() <{level = 10 : i32, message = "hqd,hkd->hqk"}> : () -> ()
    %cst = arith.constant dense<0.000000e+00> : vector<4x8x5xf32>
    %6 = tpu.matmul %1, %3, %cst {dimension_numbers = #tpu.dot_dimension_numbers<[2], [2], [1], [1], [0, 0, 0, 1, 1, 1], [0], [0]>} : vector<4x8x8xbf16>, vector<4x5x8xbf16>, vector<4x8x5xf32> -> vector<4x8x5xf32>
    "tpu.trace_stop"() : () -> ()
    %cst_11 = arith.constant 0.353553385 : f32
    %7 = vector.broadcast %cst_11 : f32 to vector<4x8x5xf32>
    %8 = arith.mulf %6, %7 : vector<4x8x5xf32>
    %cst_12 = arith.constant dense<0xFF800000> : vector<4x8xf32>
    %9 = vector.multi_reduction <maximumf>, %8, %cst_12 [2] : vector<4x8x5xf32> to vector<4x8xf32>
    %10 = vector.shape_cast %9 : vector<4x8xf32> to vector<4x8x1xf32>
    %11 = vector.broadcast %10 : vector<4x8x1xf32> to vector<4x8x5xf32>
    %12 = arith.subf %8, %11 : vector<4x8x5xf32>
    %13 = math.exp %12 : vector<4x8x5xf32>
    %cst_13 = arith.constant dense<0.000000e+00> : vector<4x8xf32>
    %14 = vector.multi_reduction <add>, %13, %cst_13 [2] : vector<4x8x5xf32> to vector<4x8xf32>
    %15 = vector.shape_cast %14 : vector<4x8xf32> to vector<4x8x1xf32>
    %16 = arith.truncf %13 : vector<4x8x5xf32> to vector<4x8x5xbf16>
    "tpu.trace_start"() <{level = 10 : i32, message = "hqk,hkd->hqd"}> : () -> ()
    %cst_14 = arith.constant dense<0.000000e+00> : vector<4x8x8xf32>
    %17 = tpu.matmul %16, %5, %cst_14 {dimension_numbers = #tpu.dot_dimension_numbers<[2], [1], [1], [2], [0, 0, 0, 1, 1, 2], [0], [0]>} : vector<4x8x5xbf16>, vector<4x5x8xbf16>, vector<4x8x8xf32> -> vector<4x8x8xf32>
    "tpu.trace_stop"() : () -> ()
    %18 = tpu.reciprocal %15 {approx = true} : vector<4x8x1xf32> -> vector<4x8x1xf32>
    %19 = vector.broadcast %18 : vector<4x8x1xf32> to vector<4x8x8xf32>
    %20 = arith.mulf %17, %19 : vector<4x8x8xf32>
    %21 = arith.truncf %20 : vector<4x8x8xf32> to vector<4x8x8xbf16>
    %c0_15 = arith.constant 0 : index
    %c0_16 = arith.constant 0 : index
    %c0_17 = arith.constant 0 : index
    %c0_18 = arith.constant 0 : index
    %22 = vector.load %arg4[%c0_15, %c0_16, %c0_17, %c0_18] : memref<1x4x8x8xbf16, #tpu.memory_space<vmem>>, vector<1x4x8x8xbf16>
    %23 = vector.shape_cast %22 : vector<1x4x8x8xbf16> to vector<4x8x8xbf16>
    %24 = vector.shape_cast %21 : vector<4x8x8xbf16> to vector<1x4x8x8xbf16>
    tpu.vector_store %arg4[%c0_15, %c0_16, %c0_17, %c0_18], %24 {strides = array<i32>} : memref<1x4x8x8xbf16, #tpu.memory_space<vmem>>, vector<1x4x8x8xbf16>,
    return
  }
  func.func @transform_0(%arg0: i32) -> (i32, i32, i32, i32) {
    %c0_i32 = arith.constant 0 : i32
    %c0_i32_0 = arith.constant 0 : i32
    %c0_i32_1 = arith.constant 0 : i32
    %c0_i32_2 = arith.constant 0 : i32
    return %arg0, %c0_i32, %c0_i32_0, %c0_i32_1 : i32, i32, i32, i32
  }
  func.func @transform_1(%arg0: i32) -> (i32, i32, i32, i32) {
    %c0_i32 = arith.constant 0 : i32
    %c0_i32_0 = arith.constant 0 : i32
    %c0_i32_1 = arith.constant 0 : i32
    %c0_i32_2 = arith.constant 0 : i32
    return %arg0, %c0_i32, %c0_i32_0, %c0_i32_1 : i32, i32, i32, i32
  }
  func.func @transform_2(%arg0: i32) -> (i32, i32, i32, i32) {
    %c0_i32 = arith.constant 0 : i32
    %c0_i32_0 = arith.constant 0 : i32
    %c0_i32_1 = arith.constant 0 : i32
    %c0_i32_2 = arith.constant 0 : i32
    return %arg0, %c0_i32, %c0_i32_0, %c0_i32_1 : i32, i32, i32, i32
  }
  func.func @transform_3(%arg0: i32) -> (i32, i32, i32, i32) {
    %c0_i32 = arith.constant 0 : i32
    %c0_i32_0 = arith.constant 0 : i32
    %c0_i32_1 = arith.constant 0 : i32
    %c0_i32_2 = arith.constant 0 : i32
    return %arg0, %c0_i32, %c0_i32_0, %c0_i32_1 : i32, i32, i32, i32
  }
}

module attributes {stable_mosaic.version = 11 : i64} {
  func.func @_matmul_res_ln_kernel(%arg0: i32, %arg1: i32, %arg2: memref<16x128xbf16, #tpu.memory_space<vmem>>, %arg3: memref<128x32xbf16, #tpu.memory_space<vmem>>, %arg4: memref<1x32xf32, #tpu.memory_space<vmem>>, %arg5: memref<16x32xbf16, #tpu.memory_space<vmem>>, %arg6: memref<1x32xf32, #tpu.memory_space<vmem>>, %arg7: memref<1x32xf32, #tpu.memory_space<vmem>>, %arg8: memref<16x32xbf16, #tpu.memory_space<vmem>>, %arg9: memref<16x32xf32, #tpu.memory_space<vmem>>) attributes {dimension_semantics = [#tpu.dimension_semantics<parallel>, #tpu.dimension_semantics<arbitrary>], iteration_bounds = array<i64: 1, 1>, scalar_prefetch = 0 : i64, scratch_operands = 1 : i64, tpu.core_type = #tpu.core_type<tc>, window_params = [{transform_indices = @transform_0, window_bounds = array<i64: 16, 128>}, {transform_indices = @transform_1, window_bounds = array<i64: 128, 32>}, {pipeline_mode = #tpu.pipeline_mode<synchronous>, transform_indices = @transform_2, window_bounds = array<i64: 1, 32>}, {transform_indices = @transform_3, window_bounds = array<i64: 16, 32>}, {pipeline_mode = #tpu.pipeline_mode<synchronous>, transform_indices = @transform_4, window_bounds = array<i64: 1, 32>}, {pipeline_mode = #tpu.pipeline_mode<synchronous>, transform_indices = @transform_5, window_bounds = array<i64: 1, 32>}, {transform_indices = @transform_6, window_bounds = array<i64: 16, 32>}]} {
    %c0_i32 = arith.constant 0 : i32
    %0 = arith.cmpi eq, %arg1, %c0_i32 : i32
    %1 = arith.extui %0 : i1 to i32
    %c0_i32_0 = arith.constant 0 : i32
    %2 = arith.cmpi ne, %1, %c0_i32_0 : i32
    scf.if %2 {
      %cst_10 = arith.constant 0.000000e+00 : f32
      %12 = vector.broadcast %cst_10 : f32 to vector<16x32xf32>
      %c0_11 = arith.constant 0 : index
      %c0_12 = arith.constant 0 : index
      %13 = vector.load %arg9[%c0_11, %c0_12] : memref<16x32xf32, #tpu.memory_space<vmem>>, vector<16x32xf32>
      tpu.vector_store %arg9[%c0_11, %c0_12], %12 {strides = array<i32>} : memref<16x32xf32, #tpu.memory_space<vmem>>, vector<16x32xf32>,
    } else {
    }
    %c0 = arith.constant 0 : index
    %c0_1 = arith.constant 0 : index
    %3 = vector.load %arg9[%c0, %c0_1] : memref<16x32xf32, #tpu.memory_space<vmem>>, vector<16x32xf32>
    %c0_2 = arith.constant 0 : index
    %c0_3 = arith.constant 0 : index
    %4 = vector.load %arg2[%c0_2, %c0_3] : memref<16x128xbf16, #tpu.memory_space<vmem>>, vector<16x128xbf16>
    %c0_4 = arith.constant 0 : index
    %c0_5 = arith.constant 0 : index
    %5 = vector.load %arg3[%c0_4, %c0_5] : memref<128x32xbf16, #tpu.memory_space<vmem>>, vector<128x32xbf16>
    %cst = arith.constant dense<0.000000e+00> : vector<16x32xf32>
    %6 = tpu.matmul %4, %5, %cst {dimension_numbers = #tpu.dot_dimension_numbers<[1], [0], [0], [1], [0, 0, 1, 1], [], []>} : vector<16x128xbf16>, vector<128x32xbf16>, vector<16x32xf32> -> vector<16x32xf32>
    %7 = arith.addf %3, %6 : vector<16x32xf32>
    %c0_6 = arith.constant 0 : index
    %c0_7 = arith.constant 0 : index
    %8 = vector.load %arg9[%c0_6, %c0_7] : memref<16x32xf32, #tpu.memory_space<vmem>>, vector<16x32xf32>
    tpu.vector_store %arg9[%c0_6, %c0_7], %7 {strides = array<i32>} : memref<16x32xf32, #tpu.memory_space<vmem>>, vector<16x32xf32>,
    %c0_i32_8 = arith.constant 0 : i32
    %9 = arith.cmpi eq, %arg1, %c0_i32_8 : i32
    %10 = arith.extui %9 : i1 to i32
    %c0_i32_9 = arith.constant 0 : i32
    %11 = arith.cmpi ne, %10, %c0_i32_9 : i32
    scf.if %11 {
      %c0_10 = arith.constant 0 : index
      %c0_11 = arith.constant 0 : index
      %12 = vector.load %arg9[%c0_10, %c0_11] : memref<16x32xf32, #tpu.memory_space<vmem>>, vector<16x32xf32>
      %c0_12 = arith.constant 0 : index
      %c0_13 = arith.constant 0 : index
      %13 = vector.load %arg4[%c0_12, %c0_13] : memref<1x32xf32, #tpu.memory_space<vmem>>, vector<1x32xf32>
      %14 = vector.broadcast %13 : vector<1x32xf32> to vector<16x32xf32>
      %15 = arith.addf %12, %14 : vector<16x32xf32>
      %c0_14 = arith.constant 0 : index
      %c0_15 = arith.constant 0 : index
      %16 = vector.load %arg5[%c0_14, %c0_15] : memref<16x32xbf16, #tpu.memory_space<vmem>>, vector<16x32xbf16>
      %17 = arith.extf %16 : vector<16x32xbf16> to vector<16x32xf32>
      %18 = arith.addf %15, %17 : vector<16x32xf32>
      %cst_16 = arith.constant dense<0.000000e+00> : vector<16xf32>
      %19 = vector.multi_reduction <add>, %18, %cst_16 [1] : vector<16x32xf32> to vector<16xf32>
      %20 = vector.shape_cast %19 : vector<16xf32> to vector<16x1xf32>
      %cst_17 = arith.constant 3.200000e+01 : f32
      %21 = vector.broadcast %cst_17 : f32 to vector<16x1xf32>
      %22 = arith.divf %20, %21 : vector<16x1xf32>
      %23 = vector.broadcast %22 : vector<16x1xf32> to vector<16x32xf32>
      %24 = arith.subf %18, %23 : vector<16x32xf32>
      %25 = arith.mulf %24, %24 : vector<16x32xf32>
      %cst_18 = arith.constant dense<0.000000e+00> : vector<16xf32>
      %26 = vector.multi_reduction <add>, %25, %cst_18 [1] : vector<16x32xf32> to vector<16xf32>
      %27 = vector.shape_cast %26 : vector<16xf32> to vector<16x1xf32>
      %cst_19 = arith.constant 3.200000e+01 : f32
      %28 = vector.broadcast %cst_19 : f32 to vector<16x1xf32>
      %29 = arith.divf %27, %28 : vector<16x1xf32>
      %30 = vector.broadcast %22 : vector<16x1xf32> to vector<16x32xf32>
      %31 = arith.subf %18, %30 : vector<16x32xf32>
      %cst_20 = arith.constant 9.99999974E-6 : f32
      %32 = vector.broadcast %cst_20 : f32 to vector<16x1xf32>
      %33 = arith.addf %29, %32 : vector<16x1xf32>
      %34 = math.rsqrt %33 : vector<16x1xf32>
      %35 = vector.broadcast %34 : vector<16x1xf32> to vector<16x32xf32>
      %36 = arith.mulf %31, %35 : vector<16x32xf32>
      %c0_21 = arith.constant 0 : index
      %c0_22 = arith.constant 0 : index
      %37 = vector.load %arg6[%c0_21, %c0_22] : memref<1x32xf32, #tpu.memory_space<vmem>>, vector<1x32xf32>
      %38 = vector.broadcast %37 : vector<1x32xf32> to vector<16x32xf32>
      %39 = arith.mulf %36, %38 : vector<16x32xf32>
      %c0_23 = arith.constant 0 : index
      %c0_24 = arith.constant 0 : index
      %40 = vector.load %arg7[%c0_23, %c0_24] : memref<1x32xf32, #tpu.memory_space<vmem>>, vector<1x32xf32>
      %41 = vector.broadcast %40 : vector<1x32xf32> to vector<16x32xf32>
      %42 = arith.addf %39, %41 : vector<16x32xf32>
      %43 = arith.truncf %42 : vector<16x32xf32> to vector<16x32xbf16>
      %c0_25 = arith.constant 0 : index
      %c0_26 = arith.constant 0 : index
      %44 = vector.load %arg8[%c0_25, %c0_26] : memref<16x32xbf16, #tpu.memory_space<vmem>>, vector<16x32xbf16>
      tpu.vector_store %arg8[%c0_25, %c0_26], %43 {strides = array<i32>} : memref<16x32xbf16, #tpu.memory_space<vmem>>, vector<16x32xbf16>,
    } else {
    }
    return
  }
  func.func @transform_0(%arg0: i32, %arg1: i32) -> (i32, i32) {
    %c0_i32 = arith.constant 0 : i32
    return %arg0, %arg1 : i32, i32
  }
  func.func @transform_1(%arg0: i32, %arg1: i32) -> (i32, i32) {
    %c0_i32 = arith.constant 0 : i32
    %c0_i32_0 = arith.constant 0 : i32
    return %arg1, %c0_i32 : i32, i32
  }
  func.func @transform_2(%arg0: i32, %arg1: i32) -> (i32, i32) {
    %c0_i32 = arith.constant 0 : i32
    %c0_i32_0 = arith.constant 0 : i32
    %c0_i32_1 = arith.constant 0 : i32
    return %c0_i32, %c0_i32_0 : i32, i32
  }
  func.func @transform_3(%arg0: i32, %arg1: i32) -> (i32, i32) {
    %c0_i32 = arith.constant 0 : i32
    %c0_i32_0 = arith.constant 0 : i32
    return %arg0, %c0_i32 : i32, i32
  }
  func.func @transform_4(%arg0: i32, %arg1: i32) -> (i32, i32) {
    %c0_i32 = arith.constant 0 : i32
    %c0_i32_0 = arith.constant 0 : i32
    %c0_i32_1 = arith.constant 0 : i32
    return %c0_i32, %c0_i32_0 : i32, i32
  }
  func.func @transform_5(%arg0: i32, %arg1: i32) -> (i32, i32) {
    %c0_i32 = arith.constant 0 : i32
    %c0_i32_0 = arith.constant 0 : i32
    %c0_i32_1 = arith.constant 0 : i32
    return %c0_i32, %c0_i32_0 : i32, i32
  }
  func.func @transform_6(%arg0: i32, %arg1: i32) -> (i32, i32) {
    %c0_i32 = arith.constant 0 : i32
    %c0_i32_0 = arith.constant 0 : i32
    return %arg0, %c0_i32 : i32, i32
  }
}

module attributes {stable_mosaic.version = 11 : i64} {
  func.func @_matmul_bias_kernel(%arg0: i32, %arg1: i32, %arg2: i32, %arg3: memref<16x32xbf16, #tpu.memory_space<vmem>>, %arg4: memref<32x50xbf16, #tpu.memory_space<vmem>>, %arg5: memref<1x50xf32, #tpu.memory_space<vmem>>, %arg6: memref<16x50xf32, #tpu.memory_space<vmem>>, %arg7: memref<16x50xf32, #tpu.memory_space<vmem>>) attributes {dimension_semantics = [#tpu.dimension_semantics<parallel>, #tpu.dimension_semantics<parallel>, #tpu.dimension_semantics<arbitrary>], iteration_bounds = array<i64: 1, 1, 1>, scalar_prefetch = 0 : i64, scratch_operands = 1 : i64, tpu.core_type = #tpu.core_type<tc>, window_params = [{transform_indices = @transform_0, window_bounds = array<i64: 16, 32>}, {transform_indices = @transform_1, window_bounds = array<i64: 32, 50>}, {transform_indices = @transform_2, window_bounds = array<i64: 1, 50>}, {transform_indices = @transform_3, window_bounds = array<i64: 16, 50>}]} {
    %c0_i32 = arith.constant 0 : i32
    %0 = arith.cmpi eq, %arg2, %c0_i32 : i32
    %1 = arith.extui %0 : i1 to i32
    %c0_i32_0 = arith.constant 0 : i32
    %2 = arith.cmpi ne, %1, %c0_i32_0 : i32
    scf.if %2 {
      %cst_10 = arith.constant 0.000000e+00 : f32
      %12 = vector.broadcast %cst_10 : f32 to vector<16x50xf32>
      %c0_11 = arith.constant 0 : index
      %c0_12 = arith.constant 0 : index
      %13 = vector.load %arg7[%c0_11, %c0_12] : memref<16x50xf32, #tpu.memory_space<vmem>>, vector<16x50xf32>
      tpu.vector_store %arg7[%c0_11, %c0_12], %12 {strides = array<i32>} : memref<16x50xf32, #tpu.memory_space<vmem>>, vector<16x50xf32>,
    } else {
    }
    %c0 = arith.constant 0 : index
    %c0_1 = arith.constant 0 : index
    %3 = vector.load %arg7[%c0, %c0_1] : memref<16x50xf32, #tpu.memory_space<vmem>>, vector<16x50xf32>
    %c0_2 = arith.constant 0 : index
    %c0_3 = arith.constant 0 : index
    %4 = vector.load %arg3[%c0_2, %c0_3] : memref<16x32xbf16, #tpu.memory_space<vmem>>, vector<16x32xbf16>
    %c0_4 = arith.constant 0 : index
    %c0_5 = arith.constant 0 : index
    %5 = vector.load %arg4[%c0_4, %c0_5] : memref<32x50xbf16, #tpu.memory_space<vmem>>, vector<32x50xbf16>
    %cst = arith.constant dense<0.000000e+00> : vector<16x50xf32>
    %6 = tpu.matmul %4, %5, %cst {dimension_numbers = #tpu.dot_dimension_numbers<[1], [0], [0], [1], [0, 0, 1, 1], [], []>} : vector<16x32xbf16>, vector<32x50xbf16>, vector<16x50xf32> -> vector<16x50xf32>
    %7 = arith.addf %3, %6 : vector<16x50xf32>
    %c0_6 = arith.constant 0 : index
    %c0_7 = arith.constant 0 : index
    %8 = vector.load %arg7[%c0_6, %c0_7] : memref<16x50xf32, #tpu.memory_space<vmem>>, vector<16x50xf32>
    tpu.vector_store %arg7[%c0_6, %c0_7], %7 {strides = array<i32>} : memref<16x50xf32, #tpu.memory_space<vmem>>, vector<16x50xf32>,
    %c0_i32_8 = arith.constant 0 : i32
    %9 = arith.cmpi eq, %arg2, %c0_i32_8 : i32
    %10 = arith.extui %9 : i1 to i32
    %c0_i32_9 = arith.constant 0 : i32
    %11 = arith.cmpi ne, %10, %c0_i32_9 : i32
    scf.if %11 {
      %c0_10 = arith.constant 0 : index
      %c0_11 = arith.constant 0 : index
      %12 = vector.load %arg7[%c0_10, %c0_11] : memref<16x50xf32, #tpu.memory_space<vmem>>, vector<16x50xf32>
      %c0_12 = arith.constant 0 : index
      %c0_13 = arith.constant 0 : index
      %13 = vector.load %arg5[%c0_12, %c0_13] : memref<1x50xf32, #tpu.memory_space<vmem>>, vector<1x50xf32>
      %14 = vector.broadcast %13 : vector<1x50xf32> to vector<16x50xf32>
      %15 = arith.addf %12, %14 : vector<16x50xf32>
      %c0_14 = arith.constant 0 : index
      %c0_15 = arith.constant 0 : index
      %16 = vector.load %arg6[%c0_14, %c0_15] : memref<16x50xf32, #tpu.memory_space<vmem>>, vector<16x50xf32>
      tpu.vector_store %arg6[%c0_14, %c0_15], %15 {strides = array<i32>} : memref<16x50xf32, #tpu.memory_space<vmem>>, vector<16x50xf32>,
    } else {
    }
    return
  }
  func.func @transform_0(%arg0: i32, %arg1: i32, %arg2: i32) -> (i32, i32) {
    %c0_i32 = arith.constant 0 : i32
    return %arg0, %arg2 : i32, i32
  }
  func.func @transform_1(%arg0: i32, %arg1: i32, %arg2: i32) -> (i32, i32) {
    %c0_i32 = arith.constant 0 : i32
    return %arg2, %arg1 : i32, i32
  }
  func.func @transform_2(%arg0: i32, %arg1: i32, %arg2: i32) -> (i32, i32) {
    %c0_i32 = arith.constant 0 : i32
    %c0_i32_0 = arith.constant 0 : i32
    return %c0_i32, %arg1 : i32, i32
  }
  func.func @transform_3(%arg0: i32, %arg1: i32, %arg2: i32) -> (i32, i32) {
    %c0_i32 = arith.constant 0 : i32
    return %arg0, %arg1 : i32, i32
  }
}

</mosaic_0001>

<llo_original>
// kernel: captioner_forward.41
$region0: #{captioner_forward.41}
  #allocation0 [shape = 'u32[]', space=smem, size = 0x4, offset = 0x4, fixed_abs, tag = 'smem constant byte address 0x4 - core index']
  #allocation1 [shape = 'u32[144,128]{1,0:T(1,128)}', space=vmem, size = 0x12000, scoped, tag = 'internal scratch']
  #allocation2 [shape = 'f32[16,96]{1,0:T(8,128)}', space=vmem, size = 0x2000, scoped, tag = 'scratch operand']
  %s0 = inlined_call_operand.vmem [shape: bf16[16,32], index: 0, kind: input, shape index: {}]
  %s1 = inlined_call_operand.vmem [shape: bf16[32,96], index: 1, kind: input, shape index: {}]
  %s2 = inlined_call_operand.vmem [shape: f32[1,96], index: 2, kind: input, shape index: {}]
  %s3 = inlined_call_operand.vmem [shape: bf16[16,96], index: 3, kind: output, shape index: {}]
  %s4 = sld [smem:[#allocation0]]
  $region30: #{captioner_forward.41} parent=0
    _
  %s6 = ssub.s32 1, %s4
  %s7 = scalar_select 0, %s6, %s4
  // Predicated region
  $region2: #{captioner_forward.41} parent=0 // pred_check
    _
  $region3: #{captioner_forward.41} parent=0 // pred_check_branch
    %9 = sbr.rel (0) target = $region5
  $region4: #{captioner_forward.41} parent=0 // pred_region
    _
  $region5: #{captioner_forward.41} parent=0 // pred_fallthru
    _
  // Predicated region
  $region6: #{captioner_forward.41} parent=0 // pred_check
    _
  $region7: #{captioner_forward.41} parent=0 // pred_check_branch
    %11 = sbr.rel (0) target = $region9
  $region8: #{captioner_forward.41} parent=0 // pred_region
    _
  $region9: #{captioner_forward.41} parent=0 // pred_fallthru
    _
  // Predicated region
  $region10: #{captioner_forward.41} parent=0 // pred_check
    _
  $region11: #{captioner_forward.41} parent=0 // pred_check_branch
    %13 = sbr.rel (0) target = $region13
  $region12: #{captioner_forward.41} parent=0 // pred_region
    _
  $region13: #{captioner_forward.41} parent=0 // pred_fallthru
    _
  %p15 = scmp.eq.s32.totalorder 0, 0
  // Predicated region
  $region14: #{captioner_forward.41} parent=0 // pred_check
    %p16 = pneg %p15
  $region15: #{captioner_forward.41} parent=0 // pred_check_branch
    %18 = sbr.rel (%p16) target = $region17
  $region16: #{captioner_forward.41} parent=0 // pred_region
    %vm19 = vcmask 785408
    %20 = vst.msk [vmem:[#allocation2] sm:$0xff] %vm19, 0.0
    %21 = vst.msk [vmem:[#allocation2 + $0x8] sm:$0xff] %vm19, 0.0
  $region17: #{captioner_forward.41} parent=0 // pred_fallthru
    _
  %v22 = vld [vmem:[#allocation2] sm:$0xff]
  %v23 = vld [vmem:[#allocation2 + $0x8] sm:$0xff]
  %v24 = vld [vmem:[%s0] sm:$0xf]
  %v25 = vld [vmem:[%s0 + $0x4] sm:$0xf]
  %v26 = vld [vmem:[%s1] sm:$0xf]
  %v27 = vld [vmem:[%s1 + $0x4] sm:$0xf]
  %v28 = vld [vmem:[%s1 + $0x8] sm:$0xf]
  %v29 = vld [vmem:[%s1 + $0xc] sm:$0xf]
  %v32 = vunpack.c.l.b16 %v24
  %v33 = vunpack.c.l.b16 %v25
  %v34 = vpack.c.b16 %v33, %v32
  %v39 = vunpack.c.l.b16 %v26
  %v40 = vunpack.c.l.b16 %v27
  %v41 = vunpack.c.l.b16 %v28
  %v42 = vunpack.c.l.b16 %v29
  %v43 = vpack.c.b16 %v40, %v39
  %v44 = vpack.c.b16 %v42, %v41
  %vm47 = vcmask 261120
  %v49 = vsel %vm47, %v34, 0
  %51 = vmatprep.subr.bf16.mxu0 0
  %52 = vmatpush1.bf16.msra.mxu0 0
  %53 = vmatprep.subr.bf16.mxu0 0
  %54 = vmatpush1.bf16.msra.mxu0 0
  %55 = vmatprep.subr.bf16.mxu0 0
  %56 = vmatpush1.bf16.msra.mxu0 0
  %57 = vmatprep.subr.bf16.mxu0 0
  %58 = vmatpush1.bf16.msra.mxu0 0
  %59 = vmatprep.subr.bf16.mxu0 0
  %60 = vmatpush1.bf16.msra.mxu0 0
  %61 = vmatprep.subr.bf16.mxu0 0
  %62 = vmatpush1.bf16.msra.mxu0 0
  %63 = vmatprep.subr.bf16.mxu0 0
  %64 = vmatpush1.bf16.msra.mxu0 %v44
  %65 = vmatprep.subr.bf16.mxu0 0
  %66 = vmatpush1.bf16.msra.mxu0 %v43
  %67 = vmatprep.subr.bf16.mxu0 0
  %68 = vmatpush2.bf16.msra.mxu0 0
  %69 = vmatprep.subr.bf16.mxu0 0
  %70 = vmatpush2.bf16.msra.mxu0 0
  %71 = vmatprep.subr.bf16.mxu0 0
  %72 = vmatpush2.bf16.msra.mxu0 0
  %73 = vmatprep.subr.bf16.mxu0 0
  %74 = vmatpush2.bf16.msra.mxu0 0
  %75 = vmatprep.subr.bf16.mxu0 0
  %76 = vmatpush2.bf16.msra.mxu0 0
  %77 = vmatprep.subr.bf16.mxu0 0
  %78 = vmatpush2.bf16.msra.mxu0 0
  %79 = vmatprep.subr.bf16.mxu0 0
  %80 = vmatpush2.bf16.msra.mxu0 0
  %81 = vmatprep.subr.bf16.mxu0 0
  %82 = vmatpush2.bf16.msra.mxu0 0
  %83 = vmatprep.mubr.bf16.mxu0 0
  %84 = vmatmul.mubr.bf16.gmra.mxu0 %v49
  %v85 = vpop.f32.mrf.mxu0
  %v86 = vadd.f32 0.0, %v85
  %v87 = vpop.f32.mrf.mxu0
  %v88 = vpop.f32.mrf.mxu0
  %v89 = vadd.f32 0.0, %v88
  %v90 = vpop.f32.mrf.mxu0
  %91 = vdwg.mxu0
  %v92 = vadd.f32 %v22, %v86
  %v93 = vadd.f32 %v23, %v89
  %vm94 = vcmask 785408
  %95 = vst.msk [vmem:[#allocation2] sm:$0xff] %vm94, %v92
  %96 = vst.msk [vmem:[#allocation2 + $0x8] sm:$0xff] %vm94, %v93
  // Predicated region
  $region18: #{captioner_forward.41} parent=0 // pred_check
    %p97 = pneg %p15
  $region19: #{captioner_forward.41} parent=0 // pred_check_branch
    %99 = sbr.rel (%p97) target = $region21
  $region20: #{captioner_forward.41} parent=0 // pred_region
    %v100 = vld [vmem:[#allocation2] sm:$0xff]
    %v101 = vld [vmem:[#allocation2 + $0x8] sm:$0xff]
    %v102 = vld [vmem:[%s2] sm:$0x1]
    %v104 = vlaneseq
    %v105 = vshrl.u32 %v104, 7
    %v106 = vsub.s32 0, %v105
    %v107 = vrot.slane %v102, %v106
    %v109 = vadd.f32 %v100, %v107
    %v110 = vadd.f32 %v101, %v107
    %v111 = vpack.c.bf16 %v110, %v109
    %v113 = vunpack.c.l.b16 %v111
    %v114 = vunpack.c.h.b16 %v111
    %v115 = vpack.c.b16 %v113, %v113
    %v116 = vpack.c.b16 %v114, %v114
    %vm119 = vcmask 781312
    %120 = vst.msk [vmem:[%s3] sm:$0xf] %vm119, %v115
    %121 = vst.msk [vmem:[%s3 + $0x4] sm:$0xf] %vm119, %v116
  $region21: #{captioner_forward.41} parent=0 // pred_fallthru
    _
  // Predicated region
  $region22: #{captioner_forward.41} parent=0 // pred_check
    _
  $region23: #{captioner_forward.41} parent=0 // pred_check_branch
    %123 = sbr.rel (0) target = $region25
  $region24: #{captioner_forward.41} parent=0 // pred_region
    _
  $region25: #{captioner_forward.41} parent=0 // pred_fallthru
    _
  // Predicated region
  $region26: #{captioner_forward.41} parent=0 // pred_check
    _
  $region27: #{captioner_forward.41} parent=0 // pred_check_branch
    %125 = sbr.rel (0) target = $region29
  $region28: #{captioner_forward.41} parent=0 // pred_region
    _
  $region29: #{captioner_forward.41} parent=0 // pred_fallthru
    _

// kernel: captioner_forward.42
$region0: #{captioner_forward.42}
  #allocation0 [shape = 'u32[]', space=smem, size = 0x4, offset = 0x4, fixed_abs, tag = 'smem constant byte address 0x4 - core index']
  #allocation1 [shape = 'u32[144,128]{1,0:T(1,128)}', space=vmem, size = 0x12000, scoped, tag = 'internal scratch']
  %s0 = inlined_call_operand.vmem [shape: bf16[2,4,8,8], index: 0, kind: input, shape index: {}]
  %s1 = inlined_call_operand.vmem [shape: bf16[2,4,8,8], index: 1, kind: input, shape index: {}]
  %s2 = inlined_call_operand.vmem [shape: bf16[2,4,8,8], index: 2, kind: input, shape index: {}]
  %s3 = inlined_call_operand.vmem [shape: bf16[2,4,8,8], index: 3, kind: output, shape index: {}]
  %s4 = sld [smem:[#allocation0]]
  $region45: #{captioner_forward.42} parent=0
    _
  %s6 = ssub.s32 1, %s4
  %s7 = scalar_select 0, %s6, %s4
  loop: start=0, step=1, limit=4
  $region2: #{captioner_forward.42} parent=0 // loop_pre_header
    _
  $region3: #{captioner_forward.42} parent=0 // loop_header
    %s9 = sphi 0, %s13
    %p10 = scmp.ge.s32.totalorder %s9, 4
    %s19 = sphi 0, %s21
    %s22 = sphi 0, %s19
    %s23 = sphi 0, %s22
    %s39 = sphi 0, %s23
    %s45 = sphi 0, %s47
    %s48 = sphi 0, %s45
    %s49 = sphi 0, %s48
    %s65 = sphi 0, %s49
    %s71 = sphi 0, %s73
    %s74 = sphi 0, %s71
    %s75 = sphi 0, %s74
    %s91 = sphi 0, %s75
    %s97 = sphi 0, %s99
    %s100 = sphi 0, %s97
    %s101 = sphi 0, %s100
    %s117 = sphi 0, %s101
  $region4: #{captioner_forward.42} parent=0 // loop_header_branch
    %12 = sbr.rel (%p10) target = $region8
  $region5: #{captioner_forward.42} parent=0 // loop_body
    %s14 = ssub.s32 %s9, 1
    %s15 = ssub.s32 %s9, 2
    %s16 = sadd.s32 %s9, 1
    %s17 = ssub.s32 %s9, %s16
    %p18 = scmp.eq.s32.totalorder %s17, 0
    %s20 = sadd.s32 %s19, 1
    %s21 = scalar_select %p18, %s19, %s20
    %p24 = pneg %p18
    %p25 = scmp.eq.s32.totalorder %s9, 1
    %p26 = por %p24, %p25
    %p27 = scmp.ne.s32.totalorder %s19, %s22
    %p28 = scmp.eq.s32.totalorder %s9, 0
    %p29 = por %p27, %p28
    %p30 = scmp.ne.s32.totalorder %s19, %s22
    %p31 = scmp.eq.s32.totalorder %s14, 1
    %p32 = por %p30, %p31
    %p33 = scmp.ne.s32.totalorder %s22, %s23
    %p34 = scmp.eq.s32.totalorder %s14, 0
    %p35 = por %p33, %p34
    %p36 = scmp.ne.s32.totalorder %s22, %s23
    %p37 = scmp.eq.s32.totalorder %s15, 1
    %p38 = por %p36, %p37
    %p40 = scmp.ne.s32.totalorder %s23, %s39
    %p41 = scmp.eq.s32.totalorder %s15, 0
    %p42 = por %p40, %p41
    %s43 = ssub.s32 %s9, %s16
    %p44 = scmp.eq.s32.totalorder %s43, 0
    %s46 = sadd.s32 %s45, 1
    %s47 = scalar_select %p44, %s45, %s46
    %p50 = pneg %p44
    %p51 = scmp.eq.s32.totalorder %s9, 1
    %p52 = por %p50, %p51
    %p53 = scmp.ne.s32.totalorder %s45, %s48
    %p54 = scmp.eq.s32.totalorder %s9, 0
    %p55 = por %p53, %p54
    %p56 = scmp.ne.s32.totalorder %s45, %s48
    %p57 = scmp.eq.s32.totalorder %s14, 1
    %p58 = por %p56, %p57
    %p59 = scmp.ne.s32.totalorder %s48, %s49
    %p60 = scmp.eq.s32.totalorder %s14, 0
    %p61 = por %p59, %p60
    %p62 = scmp.ne.s32.totalorder %s48, %s49
    %p63 = scmp.eq.s32.totalorder %s15, 1
    %p64 = por %p62, %p63
    %p66 = scmp.ne.s32.totalorder %s49, %s65
    %p67 = scmp.eq.s32.totalorder %s15, 0
    %p68 = por %p66, %p67
    %s69 = ssub.s32 %s9, %s16
    %p70 = scmp.eq.s32.totalorder %s69, 0
    %s72 = sadd.s32 %s71, 1
    %s73 = scalar_select %p70, %s71, %s72
    %p76 = pneg %p70
    %p77 = scmp.eq.s32.totalorder %s9, 1
    %p78 = por %p76, %p77
    %p79 = scmp.ne.s32.totalorder %s71, %s74
    %p80 = scmp.eq.s32.totalorder %s9, 0
    %p81 = por %p79, %p80
    %p82 = scmp.ne.s32.totalorder %s71, %s74
    %p83 = scmp.eq.s32.totalorder %s14, 1
    %p84 = por %p82, %p83
    %p85 = scmp.ne.s32.totalorder %s74, %s75
    %p86 = scmp.eq.s32.totalorder %s14, 0
    %p87 = por %p85, %p86
    %p88 = scmp.ne.s32.totalorder %s74, %s75
    %p89 = scmp.eq.s32.totalorder %s15, 1
    %p90 = por %p88, %p89
    %p92 = scmp.ne.s32.totalorder %s75, %s91
    %p93 = scmp.eq.s32.totalorder %s15, 0
    %p94 = por %p92, %p93
    %s95 = ssub.s32 %s9, %s16
    %p96 = scmp.eq.s32.totalorder %s95, 0
    %s98 = sadd.s32 %s97, 1
    %s99 = scalar_select %p96, %s97, %s98
    %p102 = pneg %p96
    %p103 = scmp.eq.s32.totalorder %s9, 1
    %p104 = por %p102, %p103
    %p105 = scmp.ne.s32.totalorder %s97, %s100
    %p106 = scmp.eq.s32.totalorder %s9, 0
    %p107 = por %p105, %p106
    %p108 = scmp.ne.s32.totalorder %s97, %s100
    %p109 = scmp.eq.s32.totalorder %s14, 1
    %p110 = por %p108, %p109
    %p111 = scmp.ne.s32.totalorder %s100, %s101
    %p112 = scmp.eq.s32.totalorder %s14, 0
    %p113 = por %p111, %p112
    %p114 = scmp.ne.s32.totalorder %s100, %s101
    %p115 = scmp.eq.s32.totalorder %s15, 1
    %p116 = por %p114, %p115
    %p118 = scmp.ne.s32.totalorder %s101, %s117
    %p119 = scmp.eq.s32.totalorder %s15, 0
    %p120 = por %p118, %p119
    %p121 = scmp.le.s32.totalorder 1, %s9
    %p122 = scmp.lt.s32.totalorder %s9, 3
    %p123 = pnand %p121, %p122
    %p124 = pneg %p123
    // Predicated region
    $region9: #{captioner_forward.42} parent=5 // pred_check
      _
    $region10: #{captioner_forward.42} parent=5 // pred_check_branch
      %126 = sbr.rel (%p123) target = $region12
    $region11: #{captioner_forward.42} parent=5 // pred_region
      %s127 = ssub.s32 %s9, 1
    $region12: #{captioner_forward.42} parent=5 // pred_fallthru
      _
    %p128 = scmp.lt.s32.totalorder %s9, 2
    // Predicated region
    $region13: #{captioner_forward.42} parent=5 // pred_check
      %p129 = pneg %p128
    $region14: #{captioner_forward.42} parent=5 // pred_check_branch
      %131 = sbr.rel (%p129) target = $region16
    $region15: #{captioner_forward.42} parent=5 // pred_region
      // Predicated region
      $region17: #{captioner_forward.42} parent=15 // pred_check
        %p132 = pneg %p29
      $region18: #{captioner_forward.42} parent=15 // pred_check_branch
        %134 = sbr.rel (%p132) target = $region20
      $region19: #{captioner_forward.42} parent=15 // pred_region
        %p135 = scmp.lt.s32.totalorder %s9, 1
        %s136 = scalar_select %p135, %s9, 1
        %s137 = smul.addr %s136, 4
        %s138 = smul.addr %s137, 4
        %s139 = scalar_lea.vmem %s0, %s138
      $region20: #{captioner_forward.42} parent=15 // pred_fallthru
        _
      // Predicated region
      $region21: #{captioner_forward.42} parent=15 // pred_check
        %p140 = pneg %p55
      $region22: #{captioner_forward.42} parent=15 // pred_check_branch
        %142 = sbr.rel (%p140) target = $region24
      $region23: #{captioner_forward.42} parent=15 // pred_region
        %p143 = scmp.lt.s32.totalorder %s9, 1
        %s144 = scalar_select %p143, %s9, 1
        %s145 = smul.addr %s144, 4
        %s146 = smul.addr %s145, 4
        %s147 = scalar_lea.vmem %s1, %s146
      $region24: #{captioner_forward.42} parent=15 // pred_fallthru
        _
      // Predicated region
      $region25: #{captioner_forward.42} parent=15 // pred_check
        %p148 = pneg %p81
      $region26: #{captioner_forward.42} parent=15 // pred_check_branch
        %150 = sbr.rel (%p148) target = $region28
      $region27: #{captioner_forward.42} parent=15 // pred_region
        %p151 = scmp.lt.s32.totalorder %s9, 1
        %s152 = scalar_select %p151, %s9, 1
        %s153 = smul.addr %s152, 4
        %s154 = smul.addr %s153, 4
        %s155 = scalar_lea.vmem %s2, %s154
      $region28: #{captioner_forward.42} parent=15 // pred_fallthru
        _
    $region16: #{captioner_forward.42} parent=5 // pred_fallthru
      _
    %p156 = scmp.le.s32.totalorder 1, %s9
    %p157 = scmp.lt.s32.totalorder %s9, 3
    %p158 = pnand %p156, %p157
    %p159 = pneg %p158
    // Predicated region
    $region29: #{captioner_forward.42} parent=5 // pred_check
      _
    $region30: #{captioner_forward.42} parent=5 // pred_check_branch
      %161 = sbr.rel (%p158) target = $region32
    $region31: #{captioner_forward.42} parent=5 // pred_region
      %s162 = ssub.s32 %s9, 1
      %p163 = scmp.lt.s32.totalorder %s14, 1
      %s164 = scalar_select %p163, %s14, 1
      %s165 = smul.addr %s164, 4
      %s166 = smul.addr %s165, 4
      %s167 = scalar_lea.vmem %s0, %s166
      %p168 = pneg %p35
      %p169 = pneg %p32
      %p170 = scmp.lt.s32.totalorder %s14, 1
      %s171 = scalar_select %p170, %s14, 1
      %s172 = smul.addr %s171, 4
      %s173 = smul.addr %s172, 4
      %s174 = scalar_lea.vmem %s1, %s173
      %p175 = pneg %p61
      %p176 = pneg %p58
      %p177 = scmp.lt.s32.totalorder %s14, 1
      %s178 = scalar_select %p177, %s14, 1
      %s179 = smul.addr %s178, 4
      %s180 = smul.addr %s179, 4
      %s181 = scalar_lea.vmem %s2, %s180
      %p182 = pneg %p87
      %p183 = pneg %p84
      %p184 = pneg %p113
      %p185 = pneg %p110
      %p186 = scmp.lt.s32.totalorder %s14, 1
      %s187 = scalar_select %p186, %s14, 1
      %s188 = smul.addr %s187, 4
      %s189 = smul.addr %s188, 4
      %s190 = scalar_lea.vmem %s3, %s189
      %p191 = scmp.lt.s32.totalorder %s14, 1
      %s192 = scalar_select %p191, %s14, 1
      %s193 = smul.addr %s192, 4
      %s194 = smul.addr %s193, 4
      %s195 = scalar_lea.vmem %s0, %s194
      %p196 = scmp.lt.s32.totalorder %s14, 1
      %s197 = scalar_select %p196, %s14, 1
      %s198 = smul.addr %s197, 4
      %s199 = smul.addr %s198, 4
      %s200 = scalar_lea.vmem %s1, %s199
      %p201 = scmp.lt.s32.totalorder %s14, 1
      %s202 = scalar_select %p201, %s14, 1
      %s203 = smul.addr %s202, 4
      %s204 = smul.addr %s203, 4
      %s205 = scalar_lea.vmem %s2, %s204
      %p206 = scmp.lt.s32.totalorder %s14, 1
      %s207 = scalar_select %p206, %s14, 1
      %s208 = smul.addr %s207, 4
      %s209 = smul.addr %s208, 4
      %s210 = scalar_lea.vmem %s3, %s209
      %v212 = vld [vmem:[%s195] sm:$0xf]
      %v213 = vld [vmem:[%s195 + $0x4] sm:$0xf]
      %v214 = vld [vmem:[%s195 + $0x8] sm:$0xf]
      %v215 = vld [vmem:[%s195 + $0xc] sm:$0xf]
      %v216 = vld [vmem:[%s200] sm:$0xf]
      %v217 = vld [vmem:[%s200 + $0x4] sm:$0xf]
      %v218 = vld [vmem:[%s200 + $0x8] sm:$0xf]
      %v219 = vld [vmem:[%s200 + $0xc] sm:$0xf]
      %v220 = vld [vmem:[%s205] sm:$0xf]
      %v221 = vld [vmem:[%s205 + $0x4] sm:$0xf]
      %v222 = vld [vmem:[%s205 + $0x8] sm:$0xf]
      %v223 = vld [vmem:[%s205 + $0xc] sm:$0xf]
      %vm224 = vcmask 64512
      %v226 = vsel %vm224, %v212, 0
      %v229 = vsel %vm224, %v216, 0
      %231 = vmatprep.subr.bf16.mxu0 0
      %232 = vmatpush1.bf16.xpose.msra.mxu0 0
      %233 = vmatprep.subr.bf16.mxu0 0
      %234 = vmatpush1.bf16.xpose.msra.mxu0 0
      %235 = vmatprep.subr.bf16.mxu0 0
      %236 = vmatpush1.bf16.xpose.msra.mxu0 0
      %237 = vmatprep.subr.bf16.mxu0 0
      %238 = vmatpush1.bf16.xpose.msra.mxu0 0
      %239 = vmatprep.subr.bf16.mxu0 0
      %240 = vmatpush1.bf16.xpose.msra.mxu0 0
      %241 = vmatprep.subr.bf16.mxu0 0
      %242 = vmatpush1.bf16.xpose.msra.mxu0 0
      %243 = vmatprep.subr.bf16.mxu0 0
      %244 = vmatpush1.bf16.xpose.msra.mxu0 0
      %245 = vmatprep.subr.bf16.mxu0 0
      %246 = vmatpush1.bf16.xpose.msra.mxu0 %v229
      %247 = vmatprep.subr.bf16.mxu0 0
      %248 = vmatpush2.bf16.xpose.msra.mxu0 0
      %249 = vmatprep.subr.bf16.mxu0 0
      %250 = vmatpush2.bf16.xpose.msra.mxu0 0
      %251 = vmatprep.subr.bf16.mxu0 0
      %252 = vmatpush2.bf16.xpose.msra.mxu0 0
      %253 = vmatprep.subr.bf16.mxu0 0
      %254 = vmatpush2.bf16.xpose.msra.mxu0 0
      %255 = vmatprep.subr.bf16.mxu0 0
      %256 = vmatpush2.bf16.xpose.msra.mxu0 0
      %257 = vmatprep.subr.bf16.mxu0 0
      %258 = vmatpush2.bf16.xpose.msra.mxu0 0
      %259 = vmatprep.subr.bf16.mxu0 0
      %260 = vmatpush2.bf16.xpose.msra.mxu0 0
      %261 = vmatprep.subr.bf16.mxu0 0
      %262 = vmatpush2.bf16.xpose.msra.mxu0 0
      %263 = vmatprep.mubr.bf16.mxu0 0
      %264 = vmatmul.mubr.bf16.gmra.mxu0 %v226
      %v265 = vpop.f32.mrf.mxu0
      %v266 = vadd.f32 0.0, %v265
      %v267 = vpop.f32.mrf.mxu0
      %v268 = vpop.f32.mrf.mxu0
      %v269 = vpop.f32.mrf.mxu0
      %270 = vdwg.mxu0
      %v272 = vsel %vm224, %v213, 0
      %v275 = vsel %vm224, %v217, 0
      %277 = vmatprep.subr.bf16.mxu0 0
      %278 = vmatpush1.bf16.xpose.msra.mxu0 0
      %279 = vmatprep.subr.bf16.mxu0 0
      %280 = vmatpush1.bf16.xpose.msra.mxu0 0
      %281 = vmatprep.subr.bf16.mxu0 0
      %282 = vmatpush1.bf16.xpose.msra.mxu0 0
      %283 = vmatprep.subr.bf16.mxu0 0
      %284 = vmatpush1.bf16.xpose.msra.mxu0 0
      %285 = vmatprep.subr.bf16.mxu0 0
      %286 = vmatpush1.bf16.xpose.msra.mxu0 0
      %287 = vmatprep.subr.bf16.mxu0 0
      %288 = vmatpush1.bf16.xpose.msra.mxu0 0
      %289 = vmatprep.subr.bf16.mxu0 0
      %290 = vmatpush1.bf16.xpose.msra.mxu0 0
      %291 = vmatprep.subr.bf16.mxu0 0
      %292 = vmatpush1.bf16.xpose.msra.mxu0 %v275
      %293 = vmatprep.subr.bf16.mxu0 0
      %294 = vmatpush2.bf16.xpose.msra.mxu0 0
      %295 = vmatprep.subr.bf16.mxu0 0
      %296 = vmatpush2.bf16.xpose.msra.mxu0 0
      %297 = vmatprep.subr.bf16.mxu0 0
      %298 = vmatpush2.bf16.xpose.msra.mxu0 0
      %299 = vmatprep.subr.bf16.mxu0 0
      %300 = vmatpush2.bf16.xpose.msra.mxu0 0
      %301 = vmatprep.subr.bf16.mxu0 0
      %302 = vmatpush2.bf16.xpose.msra.mxu0 0
      %303 = vmatprep.subr.bf16.mxu0 0
      %304 = vmatpush2.bf16.xpose.msra.mxu0 0
      %305 = vmatprep.subr.bf16.mxu0 0
      %306 = vmatpush2.bf16.xpose.msra.mxu0 0
      %307 = vmatprep.subr.bf16.mxu0 0
      %308 = vmatpush2.bf16.xpose.msra.mxu0 0
      %309 = vmatprep.mubr.bf16.mxu0 0
      %310 = vmatmul.mubr.bf16.gmra.mxu0 %v272
      %v311 = vpop.f32.mrf.mxu0
      %v312 = vadd.f32 0.0, %v311
      %v313 = vpop.f32.mrf.mxu0
      %v314 = vpop.f32.mrf.mxu0
      %v315 = vpop.f32.mrf.mxu0
      %316 = vdwg.mxu0
      %v318 = vsel %vm224, %v214, 0
      %v321 = vsel %vm224, %v218, 0
      %323 = vmatprep.subr.bf16.mxu0 0
      %324 = vmatpush1.bf16.xpose.msra.mxu0 0
      %325 = vmatprep.subr.bf16.mxu0 0
      %326 = vmatpush1.bf16.xpose.msra.mxu0 0
      %327 = vmatprep.subr.bf16.mxu0 0
      %328 = vmatpush1.bf16.xpose.msra.mxu0 0
      %329 = vmatprep.subr.bf16.mxu0 0
      %330 = vmatpush1.bf16.xpose.msra.mxu0 0
      %331 = vmatprep.subr.bf16.mxu0 0
      %332 = vmatpush1.bf16.xpose.msra.mxu0 0
      %333 = vmatprep.subr.bf16.mxu0 0
      %334 = vmatpush1.bf16.xpose.msra.mxu0 0
      %335 = vmatprep.subr.bf16.mxu0 0
      %336 = vmatpush1.bf16.xpose.msra.mxu0 0
      %337 = vmatprep.subr.bf16.mxu0 0
      %338 = vmatpush1.bf16.xpose.msra.mxu0 %v321
      %339 = vmatprep.subr.bf16.mxu0 0
      %340 = vmatpush2.bf16.xpose.msra.mxu0 0
      %341 = vmatprep.subr.bf16.mxu0 0
      %342 = vmatpush2.bf16.xpose.msra.mxu0 0
      %343 = vmatprep.subr.bf16.mxu0 0
      %344 = vmatpush2.bf16.xpose.msra.mxu0 0
      %345 = vmatprep.subr.bf16.mxu0 0
      %346 = vmatpush2.bf16.xpose.msra.mxu0 0
      %347 = vmatprep.subr.bf16.mxu0 0
      %348 = vmatpush2.bf16.xpose.msra.mxu0 0
      %349 = vmatprep.subr.bf16.mxu0 0
      %350 = vmatpush2.bf16.xpose.msra.mxu0 0
      %351 = vmatprep.subr.bf16.mxu0 0
      %352 = vmatpush2.bf16.xpose.msra.mxu0 0
      %353 = vmatprep.subr.bf16.mxu0 0
      %354 = vmatpush2.bf16.xpose.msra.mxu0 0
      %355 = vmatprep.mubr.bf16.mxu0 0
      %356 = vmatmul.mubr.bf16.gmra.mxu0 %v318
      %v357 = vpop.f32.mrf.mxu0
      %v358 = vadd.f32 0.0, %v357
      %v359 = vpop.f32.mrf.mxu0
      %v360 = vpop.f32.mrf.mxu0
      %v361 = vpop.f32.mrf.mxu0
      %362 = vdwg.mxu0
      %v364 = vsel %vm224, %v215, 0
      %v367 = vsel %vm224, %v219, 0
      %369 = vmatprep.subr.bf16.mxu0 0
      %370 = vmatpush1.bf16.xpose.msra.mxu0 0
      %371 = vmatprep.subr.bf16.mxu0 0
      %372 = vmatpush1.bf16.xpose.msra.mxu0 0
      %373 = vmatprep.subr.bf16.mxu0 0
      %374 = vmatpush1.bf16.xpose.msra.mxu0 0
      %375 = vmatprep.subr.bf16.mxu0 0
      %376 = vmatpush1.bf16.xpose.msra.mxu0 0
      %377 = vmatprep.subr.bf16.mxu0 0
      %378 = vmatpush1.bf16.xpose.msra.mxu0 0
      %379 = vmatprep.subr.bf16.mxu0 0
      %380 = vmatpush1.bf16.xpose.msra.mxu0 0
      %381 = vmatprep.subr.bf16.mxu0 0
      %382 = vmatpush1.bf16.xpose.msra.mxu0 0
      %383 = vmatprep.subr.bf16.mxu0 0
      %384 = vmatpush1.bf16.xpose.msra.mxu0 %v367
      %385 = vmatprep.subr.bf16.mxu0 0
      %386 = vmatpush2.bf16.xpose.msra.mxu0 0
      %387 = vmatprep.subr.bf16.mxu0 0
      %388 = vmatpush2.bf16.xpose.msra.mxu0 0
      %389 = vmatprep.subr.bf16.mxu0 0
      %390 = vmatpush2.bf16.xpose.msra.mxu0 0
      %391 = vmatprep.subr.bf16.mxu0 0
      %392 = vmatpush2.bf16.xpose.msra.mxu0 0
      %393 = vmatprep.subr.bf16.mxu0 0
      %394 = vmatpush2.bf16.xpose.msra.mxu0 0
      %395 = vmatprep.subr.bf16.mxu0 0
      %396 = vmatpush2.bf16.xpose.msra.mxu0 0
      %397 = vmatprep.subr.bf16.mxu0 0
      %398 = vmatpush2.bf16.xpose.msra.mxu0 0
      %399 = vmatprep.subr.bf16.mxu0 0
      %400 = vmatpush2.bf16.xpose.msra.mxu0 0
      %401 = vmatprep.mubr.bf16.mxu0 0
      %402 = vmatmul.mubr.bf16.gmra.mxu0 %v364
      %v403 = vpop.f32.mrf.mxu0
      %v404 = vadd.f32 0.0, %v403
      %v405 = vpop.f32.mrf.mxu0
      %v406 = vpop.f32.mrf.mxu0
      %v407 = vpop.f32.mrf.mxu0
      %408 = vdwg.mxu0
      %v409 = vmul.f32 %v266, 0.35355338
      %v410 = vmul.f32 %v312, 0.35355338
      %v411 = vmul.f32 %v358, 0.35355338
      %v412 = vmul.f32 %v404, 0.35355338
      %v413 = vlaneseq
      %v414 = vshrl.u32 %v413, 7
      %v415 = vlaneseq
      %v416 = vand.u32 %v415, 127
      %vm417 = vcmp.ge.s32.totalorder %v414, %v416
      %v418 = vsel %vm417, 1, 0
      %vm419 = vcmp.eq.s32.totalorder %v418, 1
      %v420 = vsel %vm419, %v409, -1e+30
      %v421 = vsel %vm419, %v410, -1e+30
      %v422 = vsel %vm419, %v411, -1e+30
      %v423 = vsel %vm419, %v412, -1e+30
      %v424 = vsel %vm224, %v420, -inf
      %425 = vmax.xlane.f32.xlu0 %v424
      %v426 = vpop.xlane.xlu0 %425
      %v427 = vsel %vm224, %v421, -inf
      %428 = vmax.xlane.f32.xlu0 %v427
      %v429 = vpop.xlane.xlu0 %428
      %v430 = vsel %vm224, %v422, -inf
      %431 = vmax.xlane.f32.xlu0 %v430
      %v432 = vpop.xlane.xlu0 %431
      %v433 = vsel %vm224, %v423, -inf
      %434 = vmax.xlane.f32.xlu0 %v433
      %v435 = vpop.xlane.xlu0 %434
      %v436 = vsub.f32 %v420, %v426
      %v437 = vsub.f32 %v421, %v429
      %v438 = vsub.f32 %v422, %v432
      %v439 = vsub.f32 %v423, %v435
      %v440 = vmul.f32 %v436, 1.442695
      %v441 = vpow.pop %v440
      %v442 = vmul.f32 %v437, 1.442695
      %v443 = vpow.pop %v442
      %v444 = vmul.f32 %v438, 1.442695
      %v445 = vpow.pop %v444
      %v446 = vmul.f32 %v439, 1.442695
      %v447 = vpow.pop %v446
      %v448 = vsel %vm224, %v441, 0.0
      %449 = vadd.xlane.f32.xlu0 %v448
      %v450 = vpop.xlane.xlu0 %449
      %v451 = vsel %vm224, %v443, 0.0
      %452 = vadd.xlane.f32.xlu0 %v451
      %v453 = vpop.xlane.xlu0 %452
      %v454 = vsel %vm224, %v445, 0.0
      %455 = vadd.xlane.f32.xlu0 %v454
      %v456 = vpop.xlane.xlu0 %455
      %v457 = vsel %vm224, %v447, 0.0
      %458 = vadd.xlane.f32.xlu0 %v457
      %v459 = vpop.xlane.xlu0 %458
      %v460 = vpack.c.bf16 %v441, %v441
      %v461 = vpack.c.bf16 %v443, %v443
      %v462 = vpack.c.bf16 %v445, %v445
      %v463 = vpack.c.bf16 %v447, %v447
      %v465 = vsel %vm224, %v460, 0
      %vm467 = vcmask 1043456
      %v469 = vsel %vm467, %v220, 0
      %471 = vmatprep.subr.bf16.mxu0 0
      %472 = vmatpush1.bf16.msra.mxu0 0
      %473 = vmatprep.subr.bf16.mxu0 0
      %474 = vmatpush1.bf16.msra.mxu0 0
      %475 = vmatprep.subr.bf16.mxu0 0
      %476 = vmatpush1.bf16.msra.mxu0 0
      %477 = vmatprep.subr.bf16.mxu0 0
      %478 = vmatpush1.bf16.msra.mxu0 0
      %479 = vmatprep.subr.bf16.mxu0 0
      %480 = vmatpush1.bf16.msra.mxu0 0
      %481 = vmatprep.subr.bf16.mxu0 0
      %482 = vmatpush1.bf16.msra.mxu0 0
      %483 = vmatprep.subr.bf16.mxu0 0
      %484 = vmatpush1.bf16.msra.mxu0 0
      %485 = vmatprep.subr.bf16.mxu0 0
      %486 = vmatpush1.bf16.msra.mxu0 %v469
      %487 = vmatprep.subr.bf16.mxu0 0
      %488 = vmatpush2.bf16.msra.mxu0 0
      %489 = vmatprep.subr.bf16.mxu0 0
      %490 = vmatpush2.bf16.msra.mxu0 0
      %491 = vmatprep.subr.bf16.mxu0 0
      %492 = vmatpush2.bf16.msra.mxu0 0
      %493 = vmatprep.subr.bf16.mxu0 0
      %494 = vmatpush2.bf16.msra.mxu0 0
      %495 = vmatprep.subr.bf16.mxu0 0
      %496 = vmatpush2.bf16.msra.mxu0 0
      %497 = vmatprep.subr.bf16.mxu0 0
      %498 = vmatpush2.bf16.msra.mxu0 0
      %499 = vmatprep.subr.bf16.mxu0 0
      %500 = vmatpush2.bf16.msra.mxu0 0
      %501 = vmatprep.subr.bf16.mxu0 0
      %502 = vmatpush2.bf16.msra.mxu0 0
      %503 = vmatprep.mubr.bf16.mxu0 0
      %504 = vmatmul.mubr.bf16.gmra.mxu0 %v465
      %v505 = vpop.f32.mrf.mxu0
      %v506 = vadd.f32 0.0, %v505
      %v507 = vpop.f32.mrf.mxu0
      %v508 = vpop.f32.mrf.mxu0
      %v509 = vpop.f32.mrf.mxu0
      %510 = vdwg.mxu0
      %v512 = vsel %vm224, %v461, 0
      %v515 = vsel %vm467, %v221, 0
      %517 = vmatprep.subr.bf16.mxu0 0
      %518 = vmatpush1.bf16.msra.mxu0 0
      %519 = vmatprep.subr.bf16.mxu0 0
      %520 = vmatpush1.bf16.msra.mxu0 0
      %521 = vmatprep.subr.bf16.mxu0 0
      %522 = vmatpush1.bf16.msra.mxu0 0
      %523 = vmatprep.subr.bf16.mxu0 0
      %524 = vmatpush1.bf16.msra.mxu0 0
      %525 = vmatprep.subr.bf16.mxu0 0
      %526 = vmatpush1.bf16.msra.mxu0 0
      %527 = vmatprep.subr.bf16.mxu0 0
      %528 = vmatpush1.bf16.msra.mxu0 0
      %529 = vmatprep.subr.bf16.mxu0 0
      %530 = vmatpush1.bf16.msra.mxu0 0
      %531 = vmatprep.subr.bf16.mxu0 0
      %532 = vmatpush1.bf16.msra.mxu0 %v515
      %533 = vmatprep.subr.bf16.mxu0 0
      %534 = vmatpush2.bf16.msra.mxu0 0
      %535 = vmatprep.subr.bf16.mxu0 0
      %536 = vmatpush2.bf16.msra.mxu0 0
      %537 = vmatprep.subr.bf16.mxu0 0
      %538 = vmatpush2.bf16.msra.mxu0 0
      %539 = vmatprep.subr.bf16.mxu0 0
      %540 = vmatpush2.bf16.msra.mxu0 0
      %541 = vmatprep.subr.bf16.mxu0 0
      %542 = vmatpush2.bf16.msra.mxu0 0
      %543 = vmatprep.subr.bf16.mxu0 0
      %544 = vmatpush2.bf16.msra.mxu0 0
      %545 = vmatprep.subr.bf16.mxu0 0
      %546 = vmatpush2.bf16.msra.mxu0 0
      %547 = vmatprep.subr.bf16.mxu0 0
      %548 = vmatpush2.bf16.msra.mxu0 0
      %549 = vmatprep.mubr.bf16.mxu0 0
      %550 = vmatmul.mubr.bf16.gmra.mxu0 %v512
      %v551 = vpop.f32.mrf.mxu0
      %v552 = vadd.f32 0.0, %v551
      %v553 = vpop.f32.mrf.mxu0
      %v554 = vpop.f32.mrf.mxu0
      %v555 = vpop.f32.mrf.mxu0
      %556 = vdwg.mxu0
      %v558 = vsel %vm224, %v462, 0
      %v561 = vsel %vm467, %v222, 0
      %563 = vmatprep.subr.bf16.mxu0 0
      %564 = vmatpush1.bf16.msra.mxu0 0
      %565 = vmatprep.subr.bf16.mxu0 0
      %566 = vmatpush1.bf16.msra.mxu0 0
      %567 = vmatprep.subr.bf16.mxu0 0
      %568 = vmatpush1.bf16.msra.mxu0 0
      %569 = vmatprep.subr.bf16.mxu0 0
      %570 = vmatpush1.bf16.msra.mxu0 0
      %571 = vmatprep.subr.bf16.mxu0 0
      %572 = vmatpush1.bf16.msra.mxu0 0
      %573 = vmatprep.subr.bf16.mxu0 0
      %574 = vmatpush1.bf16.msra.mxu0 0
      %575 = vmatprep.subr.bf16.mxu0 0
      %576 = vmatpush1.bf16.msra.mxu0 0
      %577 = vmatprep.subr.bf16.mxu0 0
      %578 = vmatpush1.bf16.msra.mxu0 %v561
      %579 = vmatprep.subr.bf16.mxu0 0
      %580 = vmatpush2.bf16.msra.mxu0 0
      %581 = vmatprep.subr.bf16.mxu0 0
      %582 = vmatpush2.bf16.msra.mxu0 0
      %583 = vmatprep.subr.bf16.mxu0 0
      %584 = vmatpush2.bf16.msra.mxu0 0
      %585 = vmatprep.subr.bf16.mxu0 0
      %586 = vmatpush2.bf16.msra.mxu0 0
      %587 = vmatprep.subr.bf16.mxu0 0
      %588 = vmatpush2.bf16.msra.mxu0 0
      %589 = vmatprep.subr.bf16.mxu0 0
      %590 = vmatpush2.bf16.msra.mxu0 0
      %591 = vmatprep.subr.bf16.mxu0 0
      %592 = vmatpush2.bf16.msra.mxu0 0
      %593 = vmatprep.subr.bf16.mxu0 0
      %594 = vmatpush2.bf16.msra.mxu0 0
      %595 = vmatprep.mubr.bf16.mxu0 0
      %596 = vmatmul.mubr.bf16.gmra.mxu0 %v558
      %v597 = vpop.f32.mrf.mxu0
      %v598 = vadd.f32 0.0, %v597
      %v599 = vpop.f32.mrf.mxu0
      %v600 = vpop.f32.mrf.mxu0
      %v601 = vpop.f32.mrf.mxu0
      %602 = vdwg.mxu0
      %v604 = vsel %vm224, %v463, 0
      %v607 = vsel %vm467, %v223, 0
      %609 = vmatprep.subr.bf16.mxu0 0
      %610 = vmatpush1.bf16.msra.mxu0 0
      %611 = vmatprep.subr.bf16.mxu0 0
      %612 = vmatpush1.bf16.msra.mxu0 0
      %613 = vmatprep.subr.bf16.mxu0 0
      %614 = vmatpush1.bf16.msra.mxu0 0
      %615 = vmatprep.subr.bf16.mxu0 0
      %616 = vmatpush1.bf16.msra.mxu0 0
      %617 = vmatprep.subr.bf16.mxu0 0
      %618 = vmatpush1.bf16.msra.mxu0 0
      %619 = vmatprep.subr.bf16.mxu0 0
      %620 = vmatpush1.bf16.msra.mxu0 0
      %621 = vmatprep.subr.bf16.mxu0 0
      %622 = vmatpush1.bf16.msra.mxu0 0
      %623 = vmatprep.subr.bf16.mxu0 0
      %624 = vmatpush1.bf16.msra.mxu0 %v607
      %625 = vmatprep.subr.bf16.mxu0 0
      %626 = vmatpush2.bf16.msra.mxu0 0
      %627 = vmatprep.subr.bf16.mxu0 0
      %628 = vmatpush2.bf16.msra.mxu0 0
      %629 = vmatprep.subr.bf16.mxu0 0
      %630 = vmatpush2.bf16.msra.mxu0 0
      %631 = vmatprep.subr.bf16.mxu0 0
      %632 = vmatpush2.bf16.msra.mxu0 0
      %633 = vmatprep.subr.bf16.mxu0 0
      %634 = vmatpush2.bf16.msra.mxu0 0
      %635 = vmatprep.subr.bf16.mxu0 0
      %636 = vmatpush2.bf16.msra.mxu0 0
      %637 = vmatprep.subr.bf16.mxu0 0
      %638 = vmatpush2.bf16.msra.mxu0 0
      %639 = vmatprep.subr.bf16.mxu0 0
      %640 = vmatpush2.bf16.msra.mxu0 0
      %641 = vmatprep.mubr.bf16.mxu0 0
      %642 = vmatmul.mubr.bf16.gmra.mxu0 %v604
      %v643 = vpop.f32.mrf.mxu0
      %v644 = vadd.f32 0.0, %v643
      %v645 = vpop.f32.mrf.mxu0
      %v646 = vpop.f32.mrf.mxu0
      %v647 = vpop.f32.mrf.mxu0
      %648 = vdwg.mxu0
      %v649 = vrcp.pop %v450
      %v650 = vrcp.pop %v453
      %v651 = vrcp.pop %v456
      %v652 = vrcp.pop %v459
      %v653 = vmul.f32 %v506, %v649
      %v654 = vmul.f32 %v552, %v650
      %v655 = vmul.f32 %v598, %v651
      %v656 = vmul.f32 %v644, %v652
      %v657 = vpack.c.bf16 %v653, %v653
      %v658 = vpack.c.bf16 %v654, %v654
      %v659 = vpack.c.bf16 %v655, %v655
      %v660 = vpack.c.bf16 %v656, %v656
      %vm661 = vcmask 60416
      %662 = vst.msk [vmem:[%s210] sm:$0xf] %vm661, %v657
      %663 = vst.msk [vmem:[%s210 + $0x4] sm:$0xf] %vm661, %v658
      %664 = vst.msk [vmem:[%s210 + $0x8] sm:$0xf] %vm661, %v659
      %665 = vst.msk [vmem:[%s210 + $0xc] sm:$0xf] %vm661, %v660
      %p666 = scmp.lt.s32.totalorder %s14, 1
      %s667 = scalar_select %p666, %s14, 1
      %s668 = smul.addr %s667, 4
      %s669 = smul.addr %s668, 4
      %s670 = scalar_lea.vmem %s3, %s669
      // Predicated region
      $region33: #{captioner_forward.42} parent=31 // pred_check
        %p671 = pneg %p110
      $region34: #{captioner_forward.42} parent=31 // pred_check_branch
        %673 = sbr.rel (%p671) target = $region36
      $region35: #{captioner_forward.42} parent=31 // pred_region
        _
      $region36: #{captioner_forward.42} parent=31 // pred_fallthru
        _
    $region32: #{captioner_forward.42} parent=5 // pred_fallthru
      _
    %p674 = scmp.le.s32.totalorder 2, %s9
    // Predicated region
    $region37: #{captioner_forward.42} parent=5 // pred_check
      %p675 = pneg %p674
    $region38: #{captioner_forward.42} parent=5 // pred_check_branch
      %677 = sbr.rel (%p675) target = $region40
    $region39: #{captioner_forward.42} parent=5 // pred_region
      %s678 = ssub.s32 %s9, 2
      // Predicated region
      $region41: #{captioner_forward.42} parent=39 // pred_check
        %p679 = pneg %p116
      $region42: #{captioner_forward.42} parent=39 // pred_check_branch
        %681 = sbr.rel (%p679) target = $region44
      $region43: #{captioner_forward.42} parent=39 // pred_region
        %p682 = scmp.lt.s32.totalorder %s15, 1
        %s683 = scalar_select %p682, %s15, 1
        %s684 = smul.addr %s683, 4
        %s685 = smul.addr %s684, 4
        %s686 = scalar_lea.vmem %s3, %s685
      $region44: #{captioner_forward.42} parent=39 // pred_fallthru
        _
    $region40: #{captioner_forward.42} parent=5 // pred_fallthru
      _
  $region6: #{captioner_forward.42} parent=0 // loop_footer
    %s13 = sadd.s32 1, %s9
  $region7: #{captioner_forward.42} parent=0 // loop_footer_branch
    %8 = sbr.rel target = $region3
  $region8: #{captioner_forward.42} parent=0 // loop_exit
    _

// kernel: captioner_forward.43
$region0: #{captioner_forward.43}
  #allocation0 [shape = 'u32[]', space=smem, size = 0x4, offset = 0x4, fixed_abs, tag = 'smem constant byte address 0x4 - core index']
  #allocation1 [shape = 'u32[144,128]{1,0:T(1,128)}', space=vmem, size = 0x12000, scoped, tag = 'internal scratch']
  #allocation2 [shape = 'f32[16,32]{1,0:T(8,128)}', space=vmem, size = 0x2000, scoped, tag = 'scratch operand']
  %s0 = inlined_call_operand.vmem [shape: bf16[16,32], index: 0, kind: input, shape index: {}]
  %s1 = inlined_call_operand.vmem [shape: bf16[32,32], index: 1, kind: input, shape index: {}]
  %s2 = inlined_call_operand.vmem [shape: f32[1,32], index: 2, kind: input, shape index: {}]
  %s3 = inlined_call_operand.vmem [shape: bf16[16,32], index: 3, kind: input, shape index: {}]
  %s4 = inlined_call_operand.vmem [shape: f32[1,32], index: 4, kind: input, shape index: {}]
  %s5 = inlined_call_operand.vmem [shape: f32[1,32], index: 5, kind: input, shape index: {}]
  %s6 = inlined_call_operand.vmem [shape: bf16[16,32], index: 6, kind: output, shape index: {}]
  %s7 = sld [smem:[#allocation0]]
  $region42: #{captioner_forward.43} parent=0
    _
  %s9 = ssub.s32 1, %s7
  %s10 = scalar_select 0, %s9, %s7
  // Predicated region
  $region2: #{captioner_forward.43} parent=0 // pred_check
    _
  $region3: #{captioner_forward.43} parent=0 // pred_check_branch
    %12 = sbr.rel (0) target = $region5
  $region4: #{captioner_forward.43} parent=0 // pred_region
    _
  $region5: #{captioner_forward.43} parent=0 // pred_fallthru
    _
  // Predicated region
  $region6: #{captioner_forward.43} parent=0 // pred_check
    _
  $region7: #{captioner_forward.43} parent=0 // pred_check_branch
    %14 = sbr.rel (0) target = $region9
  $region8: #{captioner_forward.43} parent=0 // pred_region
    _
  $region9: #{captioner_forward.43} parent=0 // pred_fallthru
    _
  // Predicated region
  $region10: #{captioner_forward.43} parent=0 // pred_check
    _
  $region11: #{captioner_forward.43} parent=0 // pred_check_branch
    %16 = sbr.rel (0) target = $region13
  $region12: #{captioner_forward.43} parent=0 // pred_region
    _
  $region13: #{captioner_forward.43} parent=0 // pred_fallthru
    _
  // Predicated region
  $region14: #{captioner_forward.43} parent=0 // pred_check
    _
  $region15: #{captioner_forward.43} parent=0 // pred_check_branch
    %18 = sbr.rel (0) target = $region17
  $region16: #{captioner_forward.43} parent=0 // pred_region
    _
  $region17: #{captioner_forward.43} parent=0 // pred_fallthru
    _
  // Predicated region
  $region18: #{captioner_forward.43} parent=0 // pred_check
    _
  $region19: #{captioner_forward.43} parent=0 // pred_check_branch
    %20 = sbr.rel (0) target = $region21
  $region20: #{captioner_forward.43} parent=0 // pred_region
    _
  $region21: #{captioner_forward.43} parent=0 // pred_fallthru
    _
  // Predicated region
  $region22: #{captioner_forward.43} parent=0 // pred_check
    _
  $region23: #{captioner_forward.43} parent=0 // pred_check_branch
    %22 = sbr.rel (0) target = $region25
  $region24: #{captioner_forward.43} parent=0 // pred_region
    _
  $region25: #{captioner_forward.43} parent=0 // pred_fallthru
    _
  %p24 = scmp.eq.s32.totalorder 0, 0
  // Predicated region
  $region26: #{captioner_forward.43} parent=0 // pred_check
    %p25 = pneg %p24
  $region27: #{captioner_forward.43} parent=0 // pred_check_branch
    %27 = sbr.rel (%p25) target = $region29
  $region28: #{captioner_forward.43} parent=0 // pred_region
    %vm28 = vcmask 261120
    %29 = vst.msk [vmem:[#allocation2] sm:$0xff] %vm28, 0.0
    %30 = vst.msk [vmem:[#allocation2 + $0x8] sm:$0xff] %vm28, 0.0
  $region29: #{captioner_forward.43} parent=0 // pred_fallthru
    _
  %v31 = vld [vmem:[#allocation2] sm:$0xff]
  %v32 = vld [vmem:[#allocation2 + $0x8] sm:$0xff]
  %v33 = vld [vmem:[%s0] sm:$0xf]
  %v34 = vld [vmem:[%s0 + $0x4] sm:$0xf]
  %v35 = vld [vmem:[%s1] sm:$0xf]
  %v36 = vld [vmem:[%s1 + $0x4] sm:$0xf]
  %v37 = vld [vmem:[%s1 + $0x8] sm:$0xf]
  %v38 = vld [vmem:[%s1 + $0xc] sm:$0xf]
  %v41 = vunpack.c.l.b16 %v33
  %v42 = vunpack.c.l.b16 %v34
  %v43 = vpack.c.b16 %v42, %v41
  %v48 = vunpack.c.l.b16 %v35
  %v49 = vunpack.c.l.b16 %v36
  %v50 = vunpack.c.l.b16 %v37
  %v51 = vunpack.c.l.b16 %v38
  %v52 = vpack.c.b16 %v49, %v48
  %v53 = vpack.c.b16 %v51, %v50
  %vm56 = vcmask 261120
  %v58 = vsel %vm56, %v43, 0
  %60 = vmatprep.subr.bf16.mxu0 0
  %61 = vmatpush1.bf16.msra.mxu0 0
  %62 = vmatprep.subr.bf16.mxu0 0
  %63 = vmatpush1.bf16.msra.mxu0 0
  %64 = vmatprep.subr.bf16.mxu0 0
  %65 = vmatpush1.bf16.msra.mxu0 0
  %66 = vmatprep.subr.bf16.mxu0 0
  %67 = vmatpush1.bf16.msra.mxu0 0
  %68 = vmatprep.subr.bf16.mxu0 0
  %69 = vmatpush1.bf16.msra.mxu0 0
  %70 = vmatprep.subr.bf16.mxu0 0
  %71 = vmatpush1.bf16.msra.mxu0 0
  %72 = vmatprep.subr.bf16.mxu0 0
  %73 = vmatpush1.bf16.msra.mxu0 %v53
  %74 = vmatprep.subr.bf16.mxu0 0
  %75 = vmatpush1.bf16.msra.mxu0 %v52
  %76 = vmatprep.subr.bf16.mxu0 0
  %77 = vmatpush2.bf16.msra.mxu0 0
  %78 = vmatprep.subr.bf16.mxu0 0
  %79 = vmatpush2.bf16.msra.mxu0 0
  %80 = vmatprep.subr.bf16.mxu0 0
  %81 = vmatpush2.bf16.msra.mxu0 0
  %82 = vmatprep.subr.bf16.mxu0 0
  %83 = vmatpush2.bf16.msra.mxu0 0
  %84 = vmatprep.subr.bf16.mxu0 0
  %85 = vmatpush2.bf16.msra.mxu0 0
  %86 = vmatprep.subr.bf16.mxu0 0
  %87 = vmatpush2.bf16.msra.mxu0 0
  %88 = vmatprep.subr.bf16.mxu0 0
  %89 = vmatpush2.bf16.msra.mxu0 0
  %90 = vmatprep.subr.bf16.mxu0 0
  %91 = vmatpush2.bf16.msra.mxu0 0
  %92 = vmatprep.mubr.bf16.mxu0 0
  %93 = vmatmul.mubr.bf16.gmra.mxu0 %v58
  %v94 = vpop.f32.mrf.mxu0
  %v95 = vadd.f32 0.0, %v94
  %v96 = vpop.f32.mrf.mxu0
  %v97 = vpop.f32.mrf.mxu0
  %v98 = vadd.f32 0.0, %v97
  %v99 = vpop.f32.mrf.mxu0
  %100 = vdwg.mxu0
  %v101 = vadd.f32 %v31, %v95
  %v102 = vadd.f32 %v32, %v98
  %103 = vst.msk [vmem:[#allocation2] sm:$0xff] %vm56, %v101
  %104 = vst.msk [vmem:[#allocation2 + $0x8] sm:$0xff] %vm56, %v102
  // Predicated region
  $region30: #{captioner_forward.43} parent=0 // pred_check
    %p105 = pneg %p24
  $region31: #{captioner_forward.43} parent=0 // pred_check_branch
    %107 = sbr.rel (%p105) target = $region33
  $region32: #{captioner_forward.43} parent=0 // pred_region
    %v108 = vld [vmem:[#allocation2] sm:$0xff]
    %v109 = vld [vmem:[#allocation2 + $0x8] sm:$0xff]
    %v110 = vld [vmem:[%s2] sm:$0x1]
    %v112 = vlaneseq
    %v113 = vshrl.u32 %v112, 7
    %v114 = vsub.s32 0, %v113
    %v115 = vrot.slane %v110, %v114
    %v117 = vadd.f32 %v108, %v115
    %v118 = vadd.f32 %v109, %v115
    %v119 = vld [vmem:[%s3] sm:$0xf]
    %v120 = vld [vmem:[%s3 + $0x4] sm:$0xf]
    %v121 = vunpack.c.l.bf16 %v119
    %v122 = vunpack.c.l.bf16 %v120
    %v123 = vadd.f32 %v117, %v121
    %v124 = vadd.f32 %v118, %v122
    %v125 = vsel %vm56, %v123, 0.0
    %126 = vadd.xlane.f32.xlu0 %v125
    %v127 = vpop.xlane.xlu0 %126
    %v128 = vsel %vm56, %v124, 0.0
    %129 = vadd.xlane.f32.xlu0 %v128
    %v130 = vpop.xlane.xlu0 %129
    %v131 = vrcp.pop 32.0
    %v132 = vmul.f32 %v127, %v131
    %v133 = vmul.f32 %v130, %v131
    %v134 = vsub.f32 %v123, %v132
    %v135 = vsub.f32 %v124, %v133
    %v136 = vmul.f32 %v134, %v134
    %v137 = vmul.f32 %v135, %v135
    %v138 = vsel %vm56, %v136, 0.0
    %139 = vadd.xlane.f32.xlu0 %v138
    %v140 = vpop.xlane.xlu0 %139
    %v141 = vsel %vm56, %v137, 0.0
    %142 = vadd.xlane.f32.xlu0 %v141
    %v143 = vpop.xlane.xlu0 %142
    %v144 = vmul.f32 %v140, %v131
    %v145 = vmul.f32 %v143, %v131
    %v146 = vadd.f32 %v144, 1e-05
    %v147 = vadd.f32 %v145, 1e-05
    %v148 = vrsqrt.pop %v146
    %v149 = vrsqrt.pop %v147
    %v150 = vmul.f32 %v134, %v148
    %v151 = vmul.f32 %v135, %v149
    %v152 = vld [vmem:[%s4] sm:$0x1]
    %v154 = vlaneseq
    %v155 = vshrl.u32 %v154, 7
    %v156 = vsub.s32 0, %v155
    %v157 = vrot.slane %v152, %v156
    %v159 = vmul.f32 %v150, %v157
    %v160 = vmul.f32 %v151, %v157
    %v161 = vld [vmem:[%s5] sm:$0x1]
    %v163 = vlaneseq
    %v164 = vshrl.u32 %v163, 7
    %v165 = vsub.s32 0, %v164
    %v166 = vrot.slane %v161, %v165
    %v168 = vadd.f32 %v159, %v166
    %v169 = vadd.f32 %v160, %v166
    %v170 = vpack.c.bf16 %v169, %v168
    %v172 = vunpack.c.l.b16 %v170
    %v173 = vunpack.c.h.b16 %v170
    %v174 = vpack.c.b16 %v172, %v172
    %v175 = vpack.c.b16 %v173, %v173
    %vm178 = vcmask 257024
    %179 = vst.msk [vmem:[%s6] sm:$0xf] %vm178, %v174
    %180 = vst.msk [vmem:[%s6 + $0x4] sm:$0xf] %vm178, %v175
  $region33: #{captioner_forward.43} parent=0 // pred_fallthru
    _
  // Predicated region
  $region34: #{captioner_forward.43} parent=0 // pred_check
    _
  $region35: #{captioner_forward.43} parent=0 // pred_check_branch
    %182 = sbr.rel (0) target = $region37
  $region36: #{captioner_forward.43} parent=0 // pred_region
    _
  $region37: #{captioner_forward.43} parent=0 // pred_fallthru
    _
  // Predicated region
  $region38: #{captioner_forward.43} parent=0 // pred_check
    _
  $region39: #{captioner_forward.43} parent=0 // pred_check_branch
    %184 = sbr.rel (0) target = $region41
  $region40: #{captioner_forward.43} parent=0 // pred_region
    _
  $region41: #{captioner_forward.43} parent=0 // pred_fallthru
    _

// kernel: captioner_forward.44
$region0: #{captioner_forward.44}
  #allocation0 [shape = 'u32[]', space=smem, size = 0x4, offset = 0x4, fixed_abs, tag = 'smem constant byte address 0x4 - core index']
  #allocation1 [shape = 'u32[144,128]{1,0:T(1,128)}', space=vmem, size = 0x12000, scoped, tag = 'internal scratch']
  #allocation2 [shape = 'f32[16,32]{1,0:T(8,128)}', space=vmem, size = 0x2000, scoped, tag = 'scratch operand']
  %s0 = inlined_call_operand.vmem [shape: bf16[16,32], index: 0, kind: input, shape index: {}]
  %s1 = inlined_call_operand.vmem [shape: bf16[32,32], index: 1, kind: input, shape index: {}]
  %s2 = inlined_call_operand.vmem [shape: f32[1,32], index: 2, kind: input, shape index: {}]
  %s3 = inlined_call_operand.vmem [shape: bf16[16,32], index: 3, kind: output, shape index: {}]
  %s4 = sld [smem:[#allocation0]]
  $region30: #{captioner_forward.44} parent=0
    _
  %s6 = ssub.s32 1, %s4
  %s7 = scalar_select 0, %s6, %s4
  // Predicated region
  $region2: #{captioner_forward.44} parent=0 // pred_check
    _
  $region3: #{captioner_forward.44} parent=0 // pred_check_branch
    %9 = sbr.rel (0) target = $region5
  $region4: #{captioner_forward.44} parent=0 // pred_region
    _
  $region5: #{captioner_forward.44} parent=0 // pred_fallthru
    _
  // Predicated region
  $region6: #{captioner_forward.44} parent=0 // pred_check
    _
  $region7: #{captioner_forward.44} parent=0 // pred_check_branch
    %11 = sbr.rel (0) target = $region9
  $region8: #{captioner_forward.44} parent=0 // pred_region
    _
  $region9: #{captioner_forward.44} parent=0 // pred_fallthru
    _
  // Predicated region
  $region10: #{captioner_forward.44} parent=0 // pred_check
    _
  $region11: #{captioner_forward.44} parent=0 // pred_check_branch
    %13 = sbr.rel (0) target = $region13
  $region12: #{captioner_forward.44} parent=0 // pred_region
    _
  $region13: #{captioner_forward.44} parent=0 // pred_fallthru
    _
  %p15 = scmp.eq.s32.totalorder 0, 0
  // Predicated region
  $region14: #{captioner_forward.44} parent=0 // pred_check
    %p16 = pneg %p15
  $region15: #{captioner_forward.44} parent=0 // pred_check_branch
    %18 = sbr.rel (%p16) target = $region17
  $region16: #{captioner_forward.44} parent=0 // pred_region
    %vm19 = vcmask 261120
    %20 = vst.msk [vmem:[#allocation2] sm:$0xff] %vm19, 0.0
    %21 = vst.msk [vmem:[#allocation2 + $0x8] sm:$0xff] %vm19, 0.0
  $region17: #{captioner_forward.44} parent=0 // pred_fallthru
    _
  %v22 = vld [vmem:[#allocation2] sm:$0xff]
  %v23 = vld [vmem:[#allocation2 + $0x8] sm:$0xff]
  %v24 = vld [vmem:[%s0] sm:$0xf]
  %v25 = vld [vmem:[%s0 + $0x4] sm:$0xf]
  %v26 = vld [vmem:[%s1] sm:$0xf]
  %v27 = vld [vmem:[%s1 + $0x4] sm:$0xf]
  %v28 = vld [vmem:[%s1 + $0x8] sm:$0xf]
  %v29 = vld [vmem:[%s1 + $0xc] sm:$0xf]
  %v32 = vunpack.c.l.b16 %v24
  %v33 = vunpack.c.l.b16 %v25
  %v34 = vpack.c.b16 %v33, %v32
  %v39 = vunpack.c.l.b16 %v26
  %v40 = vunpack.c.l.b16 %v27
  %v41 = vunpack.c.l.b16 %v28
  %v42 = vunpack.c.l.b16 %v29
  %v43 = vpack.c.b16 %v40, %v39
  %v44 = vpack.c.b16 %v42, %v41
  %vm47 = vcmask 261120
  %v49 = vsel %vm47, %v34, 0
  %51 = vmatprep.subr.bf16.mxu0 0
  %52 = vmatpush1.bf16.msra.mxu0 0
  %53 = vmatprep.subr.bf16.mxu0 0
  %54 = vmatpush1.bf16.msra.mxu0 0
  %55 = vmatprep.subr.bf16.mxu0 0
  %56 = vmatpush1.bf16.msra.mxu0 0
  %57 = vmatprep.subr.bf16.mxu0 0
  %58 = vmatpush1.bf16.msra.mxu0 0
  %59 = vmatprep.subr.bf16.mxu0 0
  %60 = vmatpush1.bf16.msra.mxu0 0
  %61 = vmatprep.subr.bf16.mxu0 0
  %62 = vmatpush1.bf16.msra.mxu0 0
  %63 = vmatprep.subr.bf16.mxu0 0
  %64 = vmatpush1.bf16.msra.mxu0 %v44
  %65 = vmatprep.subr.bf16.mxu0 0
  %66 = vmatpush1.bf16.msra.mxu0 %v43
  %67 = vmatprep.subr.bf16.mxu0 0
  %68 = vmatpush2.bf16.msra.mxu0 0
  %69 = vmatprep.subr.bf16.mxu0 0
  %70 = vmatpush2.bf16.msra.mxu0 0
  %71 = vmatprep.subr.bf16.mxu0 0
  %72 = vmatpush2.bf16.msra.mxu0 0
  %73 = vmatprep.subr.bf16.mxu0 0
  %74 = vmatpush2.bf16.msra.mxu0 0
  %75 = vmatprep.subr.bf16.mxu0 0
  %76 = vmatpush2.bf16.msra.mxu0 0
  %77 = vmatprep.subr.bf16.mxu0 0
  %78 = vmatpush2.bf16.msra.mxu0 0
  %79 = vmatprep.subr.bf16.mxu0 0
  %80 = vmatpush2.bf16.msra.mxu0 0
  %81 = vmatprep.subr.bf16.mxu0 0
  %82 = vmatpush2.bf16.msra.mxu0 0
  %83 = vmatprep.mubr.bf16.mxu0 0
  %84 = vmatmul.mubr.bf16.gmra.mxu0 %v49
  %v85 = vpop.f32.mrf.mxu0
  %v86 = vadd.f32 0.0, %v85
  %v87 = vpop.f32.mrf.mxu0
  %v88 = vpop.f32.mrf.mxu0
  %v89 = vadd.f32 0.0, %v88
  %v90 = vpop.f32.mrf.mxu0
  %91 = vdwg.mxu0
  %v92 = vadd.f32 %v22, %v86
  %v93 = vadd.f32 %v23, %v89
  %94 = vst.msk [vmem:[#allocation2] sm:$0xff] %vm47, %v92
  %95 = vst.msk [vmem:[#allocation2 + $0x8] sm:$0xff] %vm47, %v93
  // Predicated region
  $region18: #{captioner_forward.44} parent=0 // pred_check
    %p96 = pneg %p15
  $region19: #{captioner_forward.44} parent=0 // pred_check_branch
    %98 = sbr.rel (%p96) target = $region21
  $region20: #{captioner_forward.44} parent=0 // pred_region
    %v99 = vld [vmem:[#allocation2] sm:$0xff]
    %v100 = vld [vmem:[#allocation2 + $0x8] sm:$0xff]
    %v101 = vld [vmem:[%s2] sm:$0x1]
    %v103 = vlaneseq
    %v104 = vshrl.u32 %v103, 7
    %v105 = vsub.s32 0, %v104
    %v106 = vrot.slane %v101, %v105
    %v108 = vadd.f32 %v99, %v106
    %v109 = vadd.f32 %v100, %v106
    %v110 = vpack.c.bf16 %v109, %v108
    %v112 = vunpack.c.l.b16 %v110
    %v113 = vunpack.c.h.b16 %v110
    %v114 = vpack.c.b16 %v112, %v112
    %v115 = vpack.c.b16 %v113, %v113
    %vm118 = vcmask 257024
    %119 = vst.msk [vmem:[%s3] sm:$0xf] %vm118, %v114
    %120 = vst.msk [vmem:[%s3 + $0x4] sm:$0xf] %vm118, %v115
  $region21: #{captioner_forward.44} parent=0 // pred_fallthru
    _
  // Predicated region
  $region22: #{captioner_forward.44} parent=0 // pred_check
    _
  $region23: #{captioner_forward.44} parent=0 // pred_check_branch
    %122 = sbr.rel (0) target = $region25
  $region24: #{captioner_forward.44} parent=0 // pred_region
    _
  $region25: #{captioner_forward.44} parent=0 // pred_fallthru
    _
  // Predicated region
  $region26: #{captioner_forward.44} parent=0 // pred_check
    _
  $region27: #{captioner_forward.44} parent=0 // pred_check_branch
    %124 = sbr.rel (0) target = $region29
  $region28: #{captioner_forward.44} parent=0 // pred_region
    _
  $region29: #{captioner_forward.44} parent=0 // pred_fallthru
    _

// kernel: captioner_forward.31
$region0: #{captioner_forward.31}
  #allocation0 [shape = 'u32[]', space=smem, size = 0x4, offset = 0x4, fixed_abs, tag = 'smem constant byte address 0x4 - core index']
  #allocation1 [shape = 'u32[144,128]{1,0:T(1,128)}', space=vmem, size = 0x12000, scoped, tag = 'internal scratch']
  #allocation2 [shape = 'f32[10,96]{1,0:T(8,128)}', space=vmem, size = 0x2000, scoped, tag = 'scratch operand']
  %s0 = inlined_call_operand.vmem [shape: bf16[10,32], index: 0, kind: input, shape index: {}]
  %s1 = inlined_call_operand.vmem [shape: bf16[32,96], index: 1, kind: input, shape index: {}]
  %s2 = inlined_call_operand.vmem [shape: f32[1,96], index: 2, kind: input, shape index: {}]
  %s3 = inlined_call_operand.vmem [shape: bf16[10,96], index: 3, kind: output, shape index: {}]
  %s4 = sld [smem:[#allocation0]]
  $region30: #{captioner_forward.31} parent=0
    _
  %s6 = ssub.s32 1, %s4
  %s7 = scalar_select 0, %s6, %s4
  // Predicated region
  $region2: #{captioner_forward.31} parent=0 // pred_check
    _
  $region3: #{captioner_forward.31} parent=0 // pred_check_branch
    %9 = sbr.rel (0) target = $region5
  $region4: #{captioner_forward.31} parent=0 // pred_region
    _
  $region5: #{captioner_forward.31} parent=0 // pred_fallthru
    _
  // Predicated region
  $region6: #{captioner_forward.31} parent=0 // pred_check
    _
  $region7: #{captioner_forward.31} parent=0 // pred_check_branch
    %11 = sbr.rel (0) target = $region9
  $region8: #{captioner_forward.31} parent=0 // pred_region
    _
  $region9: #{captioner_forward.31} parent=0 // pred_fallthru
    _
  // Predicated region
  $region10: #{captioner_forward.31} parent=0 // pred_check
    _
  $region11: #{captioner_forward.31} parent=0 // pred_check_branch
    %13 = sbr.rel (0) target = $region13
  $region12: #{captioner_forward.31} parent=0 // pred_region
    _
  $region13: #{captioner_forward.31} parent=0 // pred_fallthru
    _
  %p15 = scmp.eq.s32.totalorder 0, 0
  // Predicated region
  $region14: #{captioner_forward.31} parent=0 // pred_check
    %p16 = pneg %p15
  $region15: #{captioner_forward.31} parent=0 // pred_check_branch
    %18 = sbr.rel (%p16) target = $region17
  $region16: #{captioner_forward.31} parent=0 // pred_region
    %vm19 = vcmask 785408
    %20 = vst.msk [vmem:[#allocation2] sm:$0xff] %vm19, 0.0
    %vm21 = vcmask 779264
    %22 = vst.msk [vmem:[#allocation2 + $0x8] sm:$0x3] %vm21, 0.0
  $region17: #{captioner_forward.31} parent=0 // pred_fallthru
    _
  %v23 = vld [vmem:[#allocation2] sm:$0xff]
  %v24 = vld [vmem:[#allocation2 + $0x8] sm:$0x3]
  %v25 = vld [vmem:[%s0] sm:$0xf]
  %v26 = vld [vmem:[%s0 + $0x4] sm:$0x1]
  %v27 = vld [vmem:[%s1] sm:$0xf]
  %v28 = vld [vmem:[%s1 + $0x4] sm:$0xf]
  %v29 = vld [vmem:[%s1 + $0x8] sm:$0xf]
  %v30 = vld [vmem:[%s1 + $0xc] sm:$0xf]
  %v33 = vunpack.c.l.b16 %v25
  %v34 = vunpack.c.l.b16 %v26
  %v35 = vpack.c.b16 %v34, %v33
  %v40 = vunpack.c.l.b16 %v27
  %v41 = vunpack.c.l.b16 %v28
  %v42 = vunpack.c.l.b16 %v29
  %v43 = vunpack.c.l.b16 %v30
  %v44 = vpack.c.b16 %v41, %v40
  %v45 = vpack.c.b16 %v43, %v42
  %vm48 = vcmask 261120
  %v50 = vsel %vm48, %v35, 0
  %52 = vmatprep.subr.bf16.mxu0 0
  %53 = vmatpush1.bf16.msra.mxu0 0
  %54 = vmatprep.subr.bf16.mxu0 0
  %55 = vmatpush1.bf16.msra.mxu0 0
  %56 = vmatprep.subr.bf16.mxu0 0
  %57 = vmatpush1.bf16.msra.mxu0 0
  %58 = vmatprep.subr.bf16.mxu0 0
  %59 = vmatpush1.bf16.msra.mxu0 0
  %60 = vmatprep.subr.bf16.mxu0 0
  %61 = vmatpush1.bf16.msra.mxu0 0
  %62 = vmatprep.subr.bf16.mxu0 0
  %63 = vmatpush1.bf16.msra.mxu0 0
  %64 = vmatprep.subr.bf16.mxu0 0
  %65 = vmatpush1.bf16.msra.mxu0 %v45
  %66 = vmatprep.subr.bf16.mxu0 0
  %67 = vmatpush1.bf16.msra.mxu0 %v44
  %68 = vmatprep.subr.bf16.mxu0 0
  %69 = vmatpush2.bf16.msra.mxu0 0
  %70 = vmatprep.subr.bf16.mxu0 0
  %71 = vmatpush2.bf16.msra.mxu0 0
  %72 = vmatprep.subr.bf16.mxu0 0
  %73 = vmatpush2.bf16.msra.mxu0 0
  %74 = vmatprep.subr.bf16.mxu0 0
  %75 = vmatpush2.bf16.msra.mxu0 0
  %76 = vmatprep.subr.bf16.mxu0 0
  %77 = vmatpush2.bf16.msra.mxu0 0
  %78 = vmatprep.subr.bf16.mxu0 0
  %79 = vmatpush2.bf16.msra.mxu0 0
  %80 = vmatprep.subr.bf16.mxu0 0
  %81 = vmatpush2.bf16.msra.mxu0 0
  %82 = vmatprep.subr.bf16.mxu0 0
  %83 = vmatpush2.bf16.msra.mxu0 0
  %84 = vmatprep.mubr.bf16.mxu0 0
  %85 = vmatmul.mubr.bf16.gmra.mxu0 %v50
  %v86 = vpop.f32.mrf.mxu0
  %v87 = vadd.f32 0.0, %v86
  %v88 = vpop.f32.mrf.mxu0
  %v89 = vpop.f32.mrf.mxu0
  %v90 = vadd.f32 0.0, %v89
  %v91 = vpop.f32.mrf.mxu0
  %92 = vdwg.mxu0
  %v93 = vadd.f32 %v23, %v87
  %v94 = vadd.f32 %v24, %v90
  %vm95 = vcmask 785408
  %96 = vst.msk [vmem:[#allocation2] sm:$0xff] %vm95, %v93
  %vm97 = vcmask 779264
  %98 = vst.msk [vmem:[#allocation2 + $0x8] sm:$0x3] %vm97, %v94
  // Predicated region
  $region18: #{captioner_forward.31} parent=0 // pred_check
    %p99 = pneg %p15
  $region19: #{captioner_forward.31} parent=0 // pred_check_branch
    %101 = sbr.rel (%p99) target = $region21
  $region20: #{captioner_forward.31} parent=0 // pred_region
    %v102 = vld [vmem:[#allocation2] sm:$0xff]
    %v103 = vld [vmem:[#allocation2 + $0x8] sm:$0x3]
    %v104 = vld [vmem:[%s2] sm:$0x1]
    %v106 = vlaneseq
    %v107 = vshrl.u32 %v106, 7
    %v108 = vsub.s32 0, %v107
    %v109 = vrot.slane %v104, %v108
    %v111 = vadd.f32 %v102, %v109
    %v112 = vadd.f32 %v103, %v109
    %v113 = vpack.c.bf16 %v112, %v111
    %v115 = vunpack.c.l.b16 %v113
    %v116 = vunpack.c.h.b16 %v113
    %v117 = vpack.c.b16 %v115, %v115
    %v118 = vpack.c.b16 %v116, %v116
    %vm121 = vcmask 781312
    %122 = vst.msk [vmem:[%s3] sm:$0xf] %vm121, %v117
    %vm123 = vcmask 778240
    %124 = vst.msk [vmem:[%s3 + $0x4] sm:$0x1] %vm123, %v118
  $region21: #{captioner_forward.31} parent=0 // pred_fallthru
    _
  // Predicated region
  $region22: #{captioner_forward.31} parent=0 // pred_check
    _
  $region23: #{captioner_forward.31} parent=0 // pred_check_branch
    %126 = sbr.rel (0) target = $region25
  $region24: #{captioner_forward.31} parent=0 // pred_region
    _
  $region25: #{captioner_forward.31} parent=0 // pred_fallthru
    _
  // Predicated region
  $region26: #{captioner_forward.31} parent=0 // pred_check
    _
  $region27: #{captioner_forward.31} parent=0 // pred_check_branch
    %128 = sbr.rel (0) target = $region29
  $region28: #{captioner_forward.31} parent=0 // pred_region
    _
  $region29: #{captioner_forward.31} parent=0 // pred_fallthru
    _

// kernel: captioner_forward.30
$region0: #{captioner_forward.30}
  #allocation0 [shape = 'u32[]', space=smem, size = 0x4, offset = 0x4, fixed_abs, tag = 'smem constant byte address 0x4 - core index']
  #allocation1 [shape = 'u32[144,128]{1,0:T(1,128)}', space=vmem, size = 0x12000, scoped, tag = 'internal scratch']
  #allocation2 [shape = 'f32[8,32]{1,0:T(8,128)}', space=vmem, size = 0x1000, scoped, tag = 'scratch operand']
  %s0 = inlined_call_operand.vmem [shape: bf16[8,192], index: 0, kind: input, shape index: {}]
  %s1 = inlined_call_operand.vmem [shape: bf16[192,32], index: 1, kind: input, shape index: {}]
  %s2 = inlined_call_operand.vmem [shape: f32[1,32], index: 2, kind: input, shape index: {}]
  %s3 = inlined_call_operand.vmem [shape: f32[8,32], index: 3, kind: output, shape index: {}]
  %s4 = sld [smem:[#allocation0]]
  $region30: #{captioner_forward.30} parent=0
    _
  %s6 = ssub.s32 1, %s4
  %s7 = scalar_select 0, %s6, %s4
  // Predicated region
  $region2: #{captioner_forward.30} parent=0 // pred_check
    _
  $region3: #{captioner_forward.30} parent=0 // pred_check_branch
    %9 = sbr.rel (0) target = $region5
  $region4: #{captioner_forward.30} parent=0 // pred_region
    _
  $region5: #{captioner_forward.30} parent=0 // pred_fallthru
    _
  // Predicated region
  $region6: #{captioner_forward.30} parent=0 // pred_check
    _
  $region7: #{captioner_forward.30} parent=0 // pred_check_branch
    %11 = sbr.rel (0) target = $region9
  $region8: #{captioner_forward.30} parent=0 // pred_region
    _
  $region9: #{captioner_forward.30} parent=0 // pred_fallthru
    _
  // Predicated region
  $region10: #{captioner_forward.30} parent=0 // pred_check
    _
  $region11: #{captioner_forward.30} parent=0 // pred_check_branch
    %13 = sbr.rel (0) target = $region13
  $region12: #{captioner_forward.30} parent=0 // pred_region
    _
  $region13: #{captioner_forward.30} parent=0 // pred_fallthru
    _
  %p15 = scmp.eq.s32.totalorder 0, 0
  // Predicated region
  $region14: #{captioner_forward.30} parent=0 // pred_check
    %p16 = pneg %p15
  $region15: #{captioner_forward.30} parent=0 // pred_check_branch
    %18 = sbr.rel (%p16) target = $region17
  $region16: #{captioner_forward.30} parent=0 // pred_region
    %vm19 = vcmask 261120
    %20 = vst.msk [vmem:[#allocation2] sm:$0xff] %vm19, 0.0
  $region17: #{captioner_forward.30} parent=0 // pred_fallthru
    _
  %v21 = vld [vmem:[#allocation2] sm:$0xff]
  %v22 = vld [vmem:[%s0] sm:$0xff]
  %v23 = vld [vmem:[%s1] sm:$0xf]
  %v24 = vld [vmem:[%s1 + $0x4] sm:$0xf]
  %v25 = vld [vmem:[%s1 + $0x8] sm:$0xf]
  %v26 = vld [vmem:[%s1 + $0xc] sm:$0xf]
  %v27 = vld [vmem:[%s1 + $0x10] sm:$0xf]
  %v28 = vld [vmem:[%s1 + $0x14] sm:$0xf]
  %v29 = vld [vmem:[%s1 + $0x18] sm:$0xf]
  %v30 = vld [vmem:[%s1 + $0x1c] sm:$0xf]
  %v31 = vld [vmem:[%s1 + $0x20] sm:$0xf]
  %v32 = vld [vmem:[%s1 + $0x24] sm:$0xf]
  %v33 = vld [vmem:[%s1 + $0x28] sm:$0xf]
  %v34 = vld [vmem:[%s1 + $0x2c] sm:$0xf]
  %v35 = vld [vmem:[%s1 + $0x30] sm:$0xf]
  %v36 = vld [vmem:[%s1 + $0x34] sm:$0xf]
  %v37 = vld [vmem:[%s1 + $0x38] sm:$0xf]
  %v38 = vld [vmem:[%s1 + $0x3c] sm:$0xf]
  %v39 = vld [vmem:[%s1 + $0x40] sm:$0xf]
  %v40 = vld [vmem:[%s1 + $0x44] sm:$0xf]
  %v41 = vld [vmem:[%s1 + $0x48] sm:$0xf]
  %v42 = vld [vmem:[%s1 + $0x4c] sm:$0xf]
  %v43 = vld [vmem:[%s1 + $0x50] sm:$0xf]
  %v44 = vld [vmem:[%s1 + $0x54] sm:$0xf]
  %v45 = vld [vmem:[%s1 + $0x58] sm:$0xf]
  %v46 = vld [vmem:[%s1 + $0x5c] sm:$0xf]
  %v48 = vunpack.c.l.b16 %v22
  %v49 = vunpack.c.h.b16 %v22
  %v50 = vpack.c.b16 %v48, %v48
  %v51 = vpack.c.b16 %v49, %v49
  %v77 = vunpack.c.l.b16 %v23
  %v78 = vunpack.c.l.b16 %v24
  %v79 = vunpack.c.l.b16 %v25
  %v80 = vunpack.c.l.b16 %v26
  %v81 = vunpack.c.l.b16 %v27
  %v82 = vunpack.c.l.b16 %v28
  %v83 = vunpack.c.l.b16 %v29
  %v84 = vunpack.c.l.b16 %v30
  %v85 = vunpack.c.l.b16 %v31
  %v86 = vunpack.c.l.b16 %v32
  %v87 = vunpack.c.l.b16 %v33
  %v88 = vunpack.c.l.b16 %v34
  %v89 = vunpack.c.l.b16 %v35
  %v90 = vunpack.c.l.b16 %v36
  %v91 = vunpack.c.l.b16 %v37
  %v92 = vunpack.c.l.b16 %v38
  %v93 = vunpack.c.l.b16 %v39
  %v94 = vunpack.c.l.b16 %v40
  %v95 = vunpack.c.l.b16 %v41
  %v96 = vunpack.c.l.b16 %v42
  %v97 = vunpack.c.l.b16 %v43
  %v98 = vunpack.c.l.b16 %v44
  %v99 = vunpack.c.l.b16 %v45
  %v100 = vunpack.c.l.b16 %v46
  %v101 = vpack.c.b16 %v78, %v77
  %v102 = vpack.c.b16 %v80, %v79
  %v103 = vpack.c.b16 %v82, %v81
  %v104 = vpack.c.b16 %v84, %v83
  %v105 = vpack.c.b16 %v86, %v85
  %v106 = vpack.c.b16 %v88, %v87
  %v107 = vpack.c.b16 %v90, %v89
  %v108 = vpack.c.b16 %v92, %v91
  %v109 = vpack.c.b16 %v94, %v93
  %v110 = vpack.c.b16 %v96, %v95
  %v111 = vpack.c.b16 %v98, %v97
  %v112 = vpack.c.b16 %v100, %v99
  %vm125 = vcmask 523264
  %v127 = vsel %vm125, %v51, 0
  %129 = vmatprep.subr.bf16.mxu0 0
  %130 = vmatpush1.bf16.msra.mxu0 %v108
  %131 = vmatprep.subr.bf16.mxu0 0
  %132 = vmatpush1.bf16.msra.mxu0 %v107
  %133 = vmatprep.subr.bf16.mxu0 0
  %134 = vmatpush1.bf16.msra.mxu0 %v106
  %135 = vmatprep.subr.bf16.mxu0 0
  %136 = vmatpush1.bf16.msra.mxu0 %v105
  %137 = vmatprep.subr.bf16.mxu0 0
  %138 = vmatpush1.bf16.msra.mxu0 %v104
  %139 = vmatprep.subr.bf16.mxu0 0
  %140 = vmatpush1.bf16.msra.mxu0 %v103
  %141 = vmatprep.subr.bf16.mxu0 0
  %142 = vmatpush1.bf16.msra.mxu0 %v102
  %143 = vmatprep.subr.bf16.mxu0 0
  %144 = vmatpush1.bf16.msra.mxu0 %v101
  %145 = vmatprep.subr.bf16.mxu0 0
  %146 = vmatpush2.bf16.msra.mxu0 0
  %147 = vmatprep.subr.bf16.mxu0 0
  %148 = vmatpush2.bf16.msra.mxu0 0
  %149 = vmatprep.subr.bf16.mxu0 0
  %150 = vmatpush2.bf16.msra.mxu0 0
  %151 = vmatprep.subr.bf16.mxu0 0
  %152 = vmatpush2.bf16.msra.mxu0 0
  %153 = vmatprep.subr.bf16.mxu0 0
  %154 = vmatpush2.bf16.msra.mxu0 %v112
  %155 = vmatprep.subr.bf16.mxu0 0
  %156 = vmatpush2.bf16.msra.mxu0 %v111
  %157 = vmatprep.subr.bf16.mxu0 0
  %158 = vmatpush2.bf16.msra.mxu0 %v110
  %159 = vmatprep.subr.bf16.mxu0 0
  %160 = vmatpush2.bf16.msra.mxu0 %v109
  %161 = vmatprep.mubr.bf16.mxu0 %v127
  %162 = vmatmul.mubr.bf16.gmra.mxu0 %v50
  %v163 = vpop.f32.mrf.mxu0
  %v164 = vadd.f32 0.0, %v163
  %v165 = vpop.f32.mrf.mxu0
  %v166 = vpop.f32.mrf.mxu0
  %v167 = vpop.f32.mrf.mxu0
  %168 = vdwg.mxu0
  %v169 = vadd.f32 %v21, %v164
  %vm170 = vcmask 261120
  %171 = vst.msk [vmem:[#allocation2] sm:$0xff] %vm170, %v169
  // Predicated region
  $region18: #{captioner_forward.30} parent=0 // pred_check
    %p172 = pneg %p15
  $region19: #{captioner_forward.30} parent=0 // pred_check_branch
    %174 = sbr.rel (%p172) target = $region21
  $region20: #{captioner_forward.30} parent=0 // pred_region
    %v175 = vld [vmem:[#allocation2] sm:$0xff]
    %v176 = vld [vmem:[%s2] sm:$0x1]
    %v178 = vlaneseq
    %v179 = vshrl.u32 %v178, 7
    %v180 = vsub.s32 0, %v179
    %v181 = vrot.slane %v176, %v180
    %v183 = vadd.f32 %v175, %v181
    %184 = vst.msk [vmem:[%s3] sm:$0xff] %vm170, %v183
  $region21: #{captioner_forward.30} parent=0 // pred_fallthru
    _
  // Predicated region
  $region22: #{captioner_forward.30} parent=0 // pred_check
    _
  $region23: #{captioner_forward.30} parent=0 // pred_check_branch
    %186 = sbr.rel (0) target = $region25
  $region24: #{captioner_forward.30} parent=0 // pred_region
    _
  $region25: #{captioner_forward.30} parent=0 // pred_fallthru
    _
  // Predicated region
  $region26: #{captioner_forward.30} parent=0 // pred_check
    _
  $region27: #{captioner_forward.30} parent=0 // pred_check_branch
    %188 = sbr.rel (0) target = $region29
  $region28: #{captioner_forward.30} parent=0 // pred_region
    _
  $region29: #{captioner_forward.30} parent=0 // pred_fallthru
    _

// kernel: captioner_forward.32
$region0: #{captioner_forward.32}
  #allocation0 [shape = 'u32[]', space=smem, size = 0x4, offset = 0x4, fixed_abs, tag = 'smem constant byte address 0x4 - core index']
  #allocation1 [shape = 'u32[144,128]{1,0:T(1,128)}', space=vmem, size = 0x12000, scoped, tag = 'internal scratch']
  %s0 = inlined_call_operand.vmem [shape: bf16[2,4,5,8], index: 0, kind: input, shape index: {}]
  %s1 = inlined_call_operand.vmem [shape: bf16[2,4,5,8], index: 1, kind: input, shape index: {}]
  %s2 = inlined_call_operand.vmem [shape: bf16[2,4,5,8], index: 2, kind: input, shape index: {}]
  %s3 = inlined_call_operand.vmem [shape: bf16[2,4,5,8], index: 3, kind: output, shape index: {}]
  %s4 = sld [smem:[#allocation0]]
  $region45: #{captioner_forward.32} parent=0
    _
  %s6 = ssub.s32 1, %s4
  %s7 = scalar_select 0, %s6, %s4
  loop: start=0, step=1, limit=4
  $region2: #{captioner_forward.32} parent=0 // loop_pre_header
    _
  $region3: #{captioner_forward.32} parent=0 // loop_header
    %s9 = sphi 0, %s13
    %p10 = scmp.ge.s32.totalorder %s9, 4
    %s19 = sphi 0, %s21
    %s22 = sphi 0, %s19
    %s23 = sphi 0, %s22
    %s39 = sphi 0, %s23
    %s45 = sphi 0, %s47
    %s48 = sphi 0, %s45
    %s49 = sphi 0, %s48
    %s65 = sphi 0, %s49
    %s71 = sphi 0, %s73
    %s74 = sphi 0, %s71
    %s75 = sphi 0, %s74
    %s91 = sphi 0, %s75
    %s97 = sphi 0, %s99
    %s100 = sphi 0, %s97
    %s101 = sphi 0, %s100
    %s117 = sphi 0, %s101
  $region4: #{captioner_forward.32} parent=0 // loop_header_branch
    %12 = sbr.rel (%p10) target = $region8
  $region5: #{captioner_forward.32} parent=0 // loop_body
    %s14 = ssub.s32 %s9, 1
    %s15 = ssub.s32 %s9, 2
    %s16 = sadd.s32 %s9, 1
    %s17 = ssub.s32 %s9, %s16
    %p18 = scmp.eq.s32.totalorder %s17, 0
    %s20 = sadd.s32 %s19, 1
    %s21 = scalar_select %p18, %s19, %s20
    %p24 = pneg %p18
    %p25 = scmp.eq.s32.totalorder %s9, 1
    %p26 = por %p24, %p25
    %p27 = scmp.ne.s32.totalorder %s19, %s22
    %p28 = scmp.eq.s32.totalorder %s9, 0
    %p29 = por %p27, %p28
    %p30 = scmp.ne.s32.totalorder %s19, %s22
    %p31 = scmp.eq.s32.totalorder %s14, 1
    %p32 = por %p30, %p31
    %p33 = scmp.ne.s32.totalorder %s22, %s23
    %p34 = scmp.eq.s32.totalorder %s14, 0
    %p35 = por %p33, %p34
    %p36 = scmp.ne.s32.totalorder %s22, %s23
    %p37 = scmp.eq.s32.totalorder %s15, 1
    %p38 = por %p36, %p37
    %p40 = scmp.ne.s32.totalorder %s23, %s39
    %p41 = scmp.eq.s32.totalorder %s15, 0
    %p42 = por %p40, %p41
    %s43 = ssub.s32 %s9, %s16
    %p44 = scmp.eq.s32.totalorder %s43, 0
    %s46 = sadd.s32 %s45, 1
    %s47 = scalar_select %p44, %s45, %s46
    %p50 = pneg %p44
    %p51 = scmp.eq.s32.totalorder %s9, 1
    %p52 = por %p50, %p51
    %p53 = scmp.ne.s32.totalorder %s45, %s48
    %p54 = scmp.eq.s32.totalorder %s9, 0
    %p55 = por %p53, %p54
    %p56 = scmp.ne.s32.totalorder %s45, %s48
    %p57 = scmp.eq.s32.totalorder %s14, 1
    %p58 = por %p56, %p57
    %p59 = scmp.ne.s32.totalorder %s48, %s49
    %p60 = scmp.eq.s32.totalorder %s14, 0
    %p61 = por %p59, %p60
    %p62 = scmp.ne.s32.totalorder %s48, %s49
    %p63 = scmp.eq.s32.totalorder %s15, 1
    %p64 = por %p62, %p63
    %p66 = scmp.ne.s32.totalorder %s49, %s65
    %p67 = scmp.eq.s32.totalorder %s15, 0
    %p68 = por %p66, %p67
    %s69 = ssub.s32 %s9, %s16
    %p70 = scmp.eq.s32.totalorder %s69, 0
    %s72 = sadd.s32 %s71, 1
    %s73 = scalar_select %p70, %s71, %s72
    %p76 = pneg %p70
    %p77 = scmp.eq.s32.totalorder %s9, 1
    %p78 = por %p76, %p77
    %p79 = scmp.ne.s32.totalorder %s71, %s74
    %p80 = scmp.eq.s32.totalorder %s9, 0
    %p81 = por %p79, %p80
    %p82 = scmp.ne.s32.totalorder %s71, %s74
    %p83 = scmp.eq.s32.totalorder %s14, 1
    %p84 = por %p82, %p83
    %p85 = scmp.ne.s32.totalorder %s74, %s75
    %p86 = scmp.eq.s32.totalorder %s14, 0
    %p87 = por %p85, %p86
    %p88 = scmp.ne.s32.totalorder %s74, %s75
    %p89 = scmp.eq.s32.totalorder %s15, 1
    %p90 = por %p88, %p89
    %p92 = scmp.ne.s32.totalorder %s75, %s91
    %p93 = scmp.eq.s32.totalorder %s15, 0
    %p94 = por %p92, %p93
    %s95 = ssub.s32 %s9, %s16
    %p96 = scmp.eq.s32.totalorder %s95, 0
    %s98 = sadd.s32 %s97, 1
    %s99 = scalar_select %p96, %s97, %s98
    %p102 = pneg %p96
    %p103 = scmp.eq.s32.totalorder %s9, 1
    %p104 = por %p102, %p103
    %p105 = scmp.ne.s32.totalorder %s97, %s100
    %p106 = scmp.eq.s32.totalorder %s9, 0
    %p107 = por %p105, %p106
    %p108 = scmp.ne.s32.totalorder %s97, %s100
    %p109 = scmp.eq.s32.totalorder %s14, 1
    %p110 = por %p108, %p109
    %p111 = scmp.ne.s32.totalorder %s100, %s101
    %p112 = scmp.eq.s32.totalorder %s14, 0
    %p113 = por %p111, %p112
    %p114 = scmp.ne.s32.totalorder %s100, %s101
    %p115 = scmp.eq.s32.totalorder %s15, 1
    %p116 = por %p114, %p115
    %p118 = scmp.ne.s32.totalorder %s101, %s117
    %p119 = scmp.eq.s32.totalorder %s15, 0
    %p120 = por %p118, %p119
    %p121 = scmp.le.s32.totalorder 1, %s9
    %p122 = scmp.lt.s32.totalorder %s9, 3
    %p123 = pnand %p121, %p122
    %p124 = pneg %p123
    // Predicated region
    $region9: #{captioner_forward.32} parent=5 // pred_check
      _
    $region10: #{captioner_forward.32} parent=5 // pred_check_branch
      %126 = sbr.rel (%p123) target = $region12
    $region11: #{captioner_forward.32} parent=5 // pred_region
      %s127 = ssub.s32 %s9, 1
    $region12: #{captioner_forward.32} parent=5 // pred_fallthru
      _
    %p128 = scmp.lt.s32.totalorder %s9, 2
    // Predicated region
    $region13: #{captioner_forward.32} parent=5 // pred_check
      %p129 = pneg %p128
    $region14: #{captioner_forward.32} parent=5 // pred_check_branch
      %131 = sbr.rel (%p129) target = $region16
    $region15: #{captioner_forward.32} parent=5 // pred_region
      // Predicated region
      $region17: #{captioner_forward.32} parent=15 // pred_check
        %p132 = pneg %p29
      $region18: #{captioner_forward.32} parent=15 // pred_check_branch
        %134 = sbr.rel (%p132) target = $region20
      $region19: #{captioner_forward.32} parent=15 // pred_region
        %p135 = scmp.lt.s32.totalorder %s9, 1
        %s136 = scalar_select %p135, %s9, 1
        %s137 = smul.addr %s136, 4
        %s138 = smul.addr %s137, 4
        %s139 = scalar_lea.vmem %s0, %s138
      $region20: #{captioner_forward.32} parent=15 // pred_fallthru
        _
      // Predicated region
      $region21: #{captioner_forward.32} parent=15 // pred_check
        %p140 = pneg %p55
      $region22: #{captioner_forward.32} parent=15 // pred_check_branch
        %142 = sbr.rel (%p140) target = $region24
      $region23: #{captioner_forward.32} parent=15 // pred_region
        %p143 = scmp.lt.s32.totalorder %s9, 1
        %s144 = scalar_select %p143, %s9, 1
        %s145 = smul.addr %s144, 4
        %s146 = smul.addr %s145, 4
        %s147 = scalar_lea.vmem %s1, %s146
      $region24: #{captioner_forward.32} parent=15 // pred_fallthru
        _
      // Predicated region
      $region25: #{captioner_forward.32} parent=15 // pred_check
        %p148 = pneg %p81
      $region26: #{captioner_forward.32} parent=15 // pred_check_branch
        %150 = sbr.rel (%p148) target = $region28
      $region27: #{captioner_forward.32} parent=15 // pred_region
        %p151 = scmp.lt.s32.totalorder %s9, 1
        %s152 = scalar_select %p151, %s9, 1
        %s153 = smul.addr %s152, 4
        %s154 = smul.addr %s153, 4
        %s155 = scalar_lea.vmem %s2, %s154
      $region28: #{captioner_forward.32} parent=15 // pred_fallthru
        _
    $region16: #{captioner_forward.32} parent=5 // pred_fallthru
      _
    %p156 = scmp.le.s32.totalorder 1, %s9
    %p157 = scmp.lt.s32.totalorder %s9, 3
    %p158 = pnand %p156, %p157
    %p159 = pneg %p158
    // Predicated region
    $region29: #{captioner_forward.32} parent=5 // pred_check
      _
    $region30: #{captioner_forward.32} parent=5 // pred_check_branch
      %161 = sbr.rel (%p158) target = $region32
    $region31: #{captioner_forward.32} parent=5 // pred_region
      %s162 = ssub.s32 %s9, 1
      %p163 = scmp.lt.s32.totalorder %s14, 1
      %s164 = scalar_select %p163, %s14, 1
      %s165 = smul.addr %s164, 4
      %s166 = smul.addr %s165, 4
      %s167 = scalar_lea.vmem %s0, %s166
      %p168 = pneg %p35
      %p169 = pneg %p32
      %p170 = scmp.lt.s32.totalorder %s14, 1
      %s171 = scalar_select %p170, %s14, 1
      %s172 = smul.addr %s171, 4
      %s173 = smul.addr %s172, 4
      %s174 = scalar_lea.vmem %s1, %s173
      %p175 = pneg %p61
      %p176 = pneg %p58
      %p177 = scmp.lt.s32.totalorder %s14, 1
      %s178 = scalar_select %p177, %s14, 1
      %s179 = smul.addr %s178, 4
      %s180 = smul.addr %s179, 4
      %s181 = scalar_lea.vmem %s2, %s180
      %p182 = pneg %p87
      %p183 = pneg %p84
      %p184 = pneg %p113
      %p185 = pneg %p110
      %p186 = scmp.lt.s32.totalorder %s14, 1
      %s187 = scalar_select %p186, %s14, 1
      %s188 = smul.addr %s187, 4
      %s189 = smul.addr %s188, 4
      %s190 = scalar_lea.vmem %s3, %s189
      %p191 = scmp.lt.s32.totalorder %s14, 1
      %s192 = scalar_select %p191, %s14, 1
      %s193 = smul.addr %s192, 4
      %s194 = smul.addr %s193, 4
      %s195 = scalar_lea.vmem %s0, %s194
      %p196 = scmp.lt.s32.totalorder %s14, 1
      %s197 = scalar_select %p196, %s14, 1
      %s198 = smul.addr %s197, 4
      %s199 = smul.addr %s198, 4
      %s200 = scalar_lea.vmem %s1, %s199
      %p201 = scmp.lt.s32.totalorder %s14, 1
      %s202 = scalar_select %p201, %s14, 1
      %s203 = smul.addr %s202, 4
      %s204 = smul.addr %s203, 4
      %s205 = scalar_lea.vmem %s2, %s204
      %p206 = scmp.lt.s32.totalorder %s14, 1
      %s207 = scalar_select %p206, %s14, 1
      %s208 = smul.addr %s207, 4
      %s209 = smul.addr %s208, 4
      %s210 = scalar_lea.vmem %s3, %s209
      %v212 = vld [vmem:[%s195] sm:$0x7]
      %v213 = vld [vmem:[%s195 + $0x4] sm:$0x7]
      %v214 = vld [vmem:[%s195 + $0x8] sm:$0x7]
      %v215 = vld [vmem:[%s195 + $0xc] sm:$0x7]
      %v216 = vld [vmem:[%s200] sm:$0x7]
      %v217 = vld [vmem:[%s200 + $0x4] sm:$0x7]
      %v218 = vld [vmem:[%s200 + $0x8] sm:$0x7]
      %v219 = vld [vmem:[%s200 + $0xc] sm:$0x7]
      %v220 = vld [vmem:[%s205] sm:$0x7]
      %v221 = vld [vmem:[%s205 + $0x4] sm:$0x7]
      %v222 = vld [vmem:[%s205 + $0x8] sm:$0x7]
      %v223 = vld [vmem:[%s205 + $0xc] sm:$0x7]
      %vm224 = vcmask 64512
      %v226 = vsel %vm224, %v212, 0
      %v229 = vsel %vm224, %v216, 0
      %231 = vmatprep.subr.bf16.mxu0 0
      %232 = vmatpush1.bf16.xpose.msra.mxu0 0
      %233 = vmatprep.subr.bf16.mxu0 0
      %234 = vmatpush1.bf16.xpose.msra.mxu0 0
      %235 = vmatprep.subr.bf16.mxu0 0
      %236 = vmatpush1.bf16.xpose.msra.mxu0 0
      %237 = vmatprep.subr.bf16.mxu0 0
      %238 = vmatpush1.bf16.xpose.msra.mxu0 0
      %239 = vmatprep.subr.bf16.mxu0 0
      %240 = vmatpush1.bf16.xpose.msra.mxu0 0
      %241 = vmatprep.subr.bf16.mxu0 0
      %242 = vmatpush1.bf16.xpose.msra.mxu0 0
      %243 = vmatprep.subr.bf16.mxu0 0
      %244 = vmatpush1.bf16.xpose.msra.mxu0 0
      %245 = vmatprep.subr.bf16.mxu0 0
      %246 = vmatpush1.bf16.xpose.msra.mxu0 %v229
      %247 = vmatprep.subr.bf16.mxu0 0
      %248 = vmatpush2.bf16.xpose.msra.mxu0 0
      %249 = vmatprep.subr.bf16.mxu0 0
      %250 = vmatpush2.bf16.xpose.msra.mxu0 0
      %251 = vmatprep.subr.bf16.mxu0 0
      %252 = vmatpush2.bf16.xpose.msra.mxu0 0
      %253 = vmatprep.subr.bf16.mxu0 0
      %254 = vmatpush2.bf16.xpose.msra.mxu0 0
      %255 = vmatprep.subr.bf16.mxu0 0
      %256 = vmatpush2.bf16.xpose.msra.mxu0 0
      %257 = vmatprep.subr.bf16.mxu0 0
      %258 = vmatpush2.bf16.xpose.msra.mxu0 0
      %259 = vmatprep.subr.bf16.mxu0 0
      %260 = vmatpush2.bf16.xpose.msra.mxu0 0
      %261 = vmatprep.subr.bf16.mxu0 0
      %262 = vmatpush2.bf16.xpose.msra.mxu0 0
      %263 = vmatprep.mubr.bf16.mxu0 0
      %264 = vmatmul.mubr.bf16.gmra.mxu0 %v226
      %v265 = vpop.f32.mrf.mxu0
      %v266 = vadd.f32 0.0, %v265
      %v267 = vpop.f32.mrf.mxu0
      %v268 = vpop.f32.mrf.mxu0
      %v269 = vpop.f32.mrf.mxu0
      %270 = vdwg.mxu0
      %v272 = vsel %vm224, %v213, 0
      %v275 = vsel %vm224, %v217, 0
      %277 = vmatprep.subr.bf16.mxu0 0
      %278 = vmatpush1.bf16.xpose.msra.mxu0 0
      %279 = vmatprep.subr.bf16.mxu0 0
      %280 = vmatpush1.bf16.xpose.msra.mxu0 0
      %281 = vmatprep.subr.bf16.mxu0 0
      %282 = vmatpush1.bf16.xpose.msra.mxu0 0
      %283 = vmatprep.subr.bf16.mxu0 0
      %284 = vmatpush1.bf16.xpose.msra.mxu0 0
      %285 = vmatprep.subr.bf16.mxu0 0
      %286 = vmatpush1.bf16.xpose.msra.mxu0 0
      %287 = vmatprep.subr.bf16.mxu0 0
      %288 = vmatpush1.bf16.xpose.msra.mxu0 0
      %289 = vmatprep.subr.bf16.mxu0 0
      %290 = vmatpush1.bf16.xpose.msra.mxu0 0
      %291 = vmatprep.subr.bf16.mxu0 0
      %292 = vmatpush1.bf16.xpose.msra.mxu0 %v275
      %293 = vmatprep.subr.bf16.mxu0 0
      %294 = vmatpush2.bf16.xpose.msra.mxu0 0
      %295 = vmatprep.subr.bf16.mxu0 0
      %296 = vmatpush2.bf16.xpose.msra.mxu0 0
      %297 = vmatprep.subr.bf16.mxu0 0
      %298 = vmatpush2.bf16.xpose.msra.mxu0 0
      %299 = vmatprep.subr.bf16.mxu0 0
      %300 = vmatpush2.bf16.xpose.msra.mxu0 0
      %301 = vmatprep.subr.bf16.mxu0 0
      %302 = vmatpush2.bf16.xpose.msra.mxu0 0
      %303 = vmatprep.subr.bf16.mxu0 0
      %304 = vmatpush2.bf16.xpose.msra.mxu0 0
      %305 = vmatprep.subr.bf16.mxu0 0
      %306 = vmatpush2.bf16.xpose.msra.mxu0 0
      %307 = vmatprep.subr.bf16.mxu0 0
      %308 = vmatpush2.bf16.xpose.msra.mxu0 0
      %309 = vmatprep.mubr.bf16.mxu0 0
      %310 = vmatmul.mubr.bf16.gmra.mxu0 %v272
      %v311 = vpop.f32.mrf.mxu0
      %v312 = vadd.f32 0.0, %v311
      %v313 = vpop.f32.mrf.mxu0
      %v314 = vpop.f32.mrf.mxu0
      %v315 = vpop.f32.mrf.mxu0
      %316 = vdwg.mxu0
      %v318 = vsel %vm224, %v214, 0
      %v321 = vsel %vm224, %v218, 0
      %323 = vmatprep.subr.bf16.mxu0 0
      %324 = vmatpush1.bf16.xpose.msra.mxu0 0
      %325 = vmatprep.subr.bf16.mxu0 0
      %326 = vmatpush1.bf16.xpose.msra.mxu0 0
      %327 = vmatprep.subr.bf16.mxu0 0
      %328 = vmatpush1.bf16.xpose.msra.mxu0 0
      %329 = vmatprep.subr.bf16.mxu0 0
      %330 = vmatpush1.bf16.xpose.msra.mxu0 0
      %331 = vmatprep.subr.bf16.mxu0 0
      %332 = vmatpush1.bf16.xpose.msra.mxu0 0
      %333 = vmatprep.subr.bf16.mxu0 0
      %334 = vmatpush1.bf16.xpose.msra.mxu0 0
      %335 = vmatprep.subr.bf16.mxu0 0
      %336 = vmatpush1.bf16.xpose.msra.mxu0 0
      %337 = vmatprep.subr.bf16.mxu0 0
      %338 = vmatpush1.bf16.xpose.msra.mxu0 %v321
      %339 = vmatprep.subr.bf16.mxu0 0
      %340 = vmatpush2.bf16.xpose.msra.mxu0 0
      %341 = vmatprep.subr.bf16.mxu0 0
      %342 = vmatpush2.bf16.xpose.msra.mxu0 0
      %343 = vmatprep.subr.bf16.mxu0 0
      %344 = vmatpush2.bf16.xpose.msra.mxu0 0
      %345 = vmatprep.subr.bf16.mxu0 0
      %346 = vmatpush2.bf16.xpose.msra.mxu0 0
      %347 = vmatprep.subr.bf16.mxu0 0
      %348 = vmatpush2.bf16.xpose.msra.mxu0 0
      %349 = vmatprep.subr.bf16.mxu0 0
      %350 = vmatpush2.bf16.xpose.msra.mxu0 0
      %351 = vmatprep.subr.bf16.mxu0 0
      %352 = vmatpush2.bf16.xpose.msra.mxu0 0
      %353 = vmatprep.subr.bf16.mxu0 0
      %354 = vmatpush2.bf16.xpose.msra.mxu0 0
      %355 = vmatprep.mubr.bf16.mxu0 0
      %356 = vmatmul.mubr.bf16.gmra.mxu0 %v318
      %v357 = vpop.f32.mrf.mxu0
      %v358 = vadd.f32 0.0, %v357
      %v359 = vpop.f32.mrf.mxu0
      %v360 = vpop.f32.mrf.mxu0
      %v361 = vpop.f32.mrf.mxu0
      %362 = vdwg.mxu0
      %v364 = vsel %vm224, %v215, 0
      %v367 = vsel %vm224, %v219, 0
      %369 = vmatprep.subr.bf16.mxu0 0
      %370 = vmatpush1.bf16.xpose.msra.mxu0 0
      %371 = vmatprep.subr.bf16.mxu0 0
      %372 = vmatpush1.bf16.xpose.msra.mxu0 0
      %373 = vmatprep.subr.bf16.mxu0 0
      %374 = vmatpush1.bf16.xpose.msra.mxu0 0
      %375 = vmatprep.subr.bf16.mxu0 0
      %376 = vmatpush1.bf16.xpose.msra.mxu0 0
      %377 = vmatprep.subr.bf16.mxu0 0
      %378 = vmatpush1.bf16.xpose.msra.mxu0 0
      %379 = vmatprep.subr.bf16.mxu0 0
      %380 = vmatpush1.bf16.xpose.msra.mxu0 0
      %381 = vmatprep.subr.bf16.mxu0 0
      %382 = vmatpush1.bf16.xpose.msra.mxu0 0
      %383 = vmatprep.subr.bf16.mxu0 0
      %384 = vmatpush1.bf16.xpose.msra.mxu0 %v367
      %385 = vmatprep.subr.bf16.mxu0 0
      %386 = vmatpush2.bf16.xpose.msra.mxu0 0
      %387 = vmatprep.subr.bf16.mxu0 0
      %388 = vmatpush2.bf16.xpose.msra.mxu0 0
      %389 = vmatprep.subr.bf16.mxu0 0
      %390 = vmatpush2.bf16.xpose.msra.mxu0 0
      %391 = vmatprep.subr.bf16.mxu0 0
      %392 = vmatpush2.bf16.xpose.msra.mxu0 0
      %393 = vmatprep.subr.bf16.mxu0 0
      %394 = vmatpush2.bf16.xpose.msra.mxu0 0
      %395 = vmatprep.subr.bf16.mxu0 0
      %396 = vmatpush2.bf16.xpose.msra.mxu0 0
      %397 = vmatprep.subr.bf16.mxu0 0
      %398 = vmatpush2.bf16.xpose.msra.mxu0 0
      %399 = vmatprep.subr.bf16.mxu0 0
      %400 = vmatpush2.bf16.xpose.msra.mxu0 0
      %401 = vmatprep.mubr.bf16.mxu0 0
      %402 = vmatmul.mubr.bf16.gmra.mxu0 %v364
      %v403 = vpop.f32.mrf.mxu0
      %v404 = vadd.f32 0.0, %v403
      %v405 = vpop.f32.mrf.mxu0
      %v406 = vpop.f32.mrf.mxu0
      %v407 = vpop.f32.mrf.mxu0
      %408 = vdwg.mxu0
      %v409 = vmul.f32 %v266, 0.35355338
      %v410 = vmul.f32 %v312, 0.35355338
      %v411 = vmul.f32 %v358, 0.35355338
      %v412 = vmul.f32 %v404, 0.35355338
      %vm413 = vcmask 36864
      %v414 = vsel %vm413, %v409, -inf
      %415 = vmax.xlane.f32.xlu0 %v414
      %v416 = vpop.xlane.xlu0 %415
      %v417 = vsel %vm413, %v410, -inf
      %418 = vmax.xlane.f32.xlu0 %v417
      %v419 = vpop.xlane.xlu0 %418
      %v420 = vsel %vm413, %v411, -inf
      %421 = vmax.xlane.f32.xlu0 %v420
      %v422 = vpop.xlane.xlu0 %421
      %v423 = vsel %vm413, %v412, -inf
      %424 = vmax.xlane.f32.xlu0 %v423
      %v425 = vpop.xlane.xlu0 %424
      %v426 = vsub.f32 %v409, %v416
      %v427 = vsub.f32 %v410, %v419
      %v428 = vsub.f32 %v411, %v422
      %v429 = vsub.f32 %v412, %v425
      %v430 = vmul.f32 %v426, 1.442695
      %v431 = vpow.pop %v430
      %v432 = vmul.f32 %v427, 1.442695
      %v433 = vpow.pop %v432
      %v434 = vmul.f32 %v428, 1.442695
      %v435 = vpow.pop %v434
      %v436 = vmul.f32 %v429, 1.442695
      %v437 = vpow.pop %v436
      %v438 = vsel %vm413, %v431, 0.0
      %439 = vadd.xlane.f32.xlu0 %v438
      %v440 = vpop.xlane.xlu0 %439
      %v441 = vsel %vm413, %v433, 0.0
      %442 = vadd.xlane.f32.xlu0 %v441
      %v443 = vpop.xlane.xlu0 %442
      %v444 = vsel %vm413, %v435, 0.0
      %445 = vadd.xlane.f32.xlu0 %v444
      %v446 = vpop.xlane.xlu0 %445
      %v447 = vsel %vm413, %v437, 0.0
      %448 = vadd.xlane.f32.xlu0 %v447
      %v449 = vpop.xlane.xlu0 %448
      %v450 = vpack.c.bf16 %v431, %v431
      %v451 = vpack.c.bf16 %v433, %v433
      %v452 = vpack.c.bf16 %v435, %v435
      %v453 = vpack.c.bf16 %v437, %v437
      %vm454 = vcmask 39936
      %v456 = vsel %vm454, %v450, 0
      %vm458 = vcmask 1041408
      %vm459 = vcmask 1042432
      %v460 = vsel %vm458, 4294967295, 65535
      %v461 = vsel %vm459, %v460, 0
      %v463 = vand.u32 %v220, %v461
      %465 = vmatprep.subr.bf16.mxu0 0
      %466 = vmatpush1.bf16.msra.mxu0 0
      %467 = vmatprep.subr.bf16.mxu0 0
      %468 = vmatpush1.bf16.msra.mxu0 0
      %469 = vmatprep.subr.bf16.mxu0 0
      %470 = vmatpush1.bf16.msra.mxu0 0
      %471 = vmatprep.subr.bf16.mxu0 0
      %472 = vmatpush1.bf16.msra.mxu0 0
      %473 = vmatprep.subr.bf16.mxu0 0
      %474 = vmatpush1.bf16.msra.mxu0 0
      %475 = vmatprep.subr.bf16.mxu0 0
      %476 = vmatpush1.bf16.msra.mxu0 0
      %477 = vmatprep.subr.bf16.mxu0 0
      %478 = vmatpush1.bf16.msra.mxu0 0
      %479 = vmatprep.subr.bf16.mxu0 0
      %480 = vmatpush1.bf16.msra.mxu0 %v463
      %481 = vmatprep.subr.bf16.mxu0 0
      %482 = vmatpush2.bf16.msra.mxu0 0
      %483 = vmatprep.subr.bf16.mxu0 0
      %484 = vmatpush2.bf16.msra.mxu0 0
      %485 = vmatprep.subr.bf16.mxu0 0
      %486 = vmatpush2.bf16.msra.mxu0 0
      %487 = vmatprep.subr.bf16.mxu0 0
      %488 = vmatpush2.bf16.msra.mxu0 0
      %489 = vmatprep.subr.bf16.mxu0 0
      %490 = vmatpush2.bf16.msra.mxu0 0
      %491 = vmatprep.subr.bf16.mxu0 0
      %492 = vmatpush2.bf16.msra.mxu0 0
      %493 = vmatprep.subr.bf16.mxu0 0
      %494 = vmatpush2.bf16.msra.mxu0 0
      %495 = vmatprep.subr.bf16.mxu0 0
      %496 = vmatpush2.bf16.msra.mxu0 0
      %497 = vmatprep.mubr.bf16.mxu0 0
      %498 = vmatmul.mubr.bf16.gmra.mxu0 %v456
      %v499 = vpop.f32.mrf.mxu0
      %v500 = vadd.f32 0.0, %v499
      %v501 = vpop.f32.mrf.mxu0
      %v502 = vpop.f32.mrf.mxu0
      %v503 = vpop.f32.mrf.mxu0
      %504 = vdwg.mxu0
      %v506 = vsel %vm454, %v451, 0
      %v509 = vand.u32 %v221, %v461
      %511 = vmatprep.subr.bf16.mxu0 0
      %512 = vmatpush1.bf16.msra.mxu0 0
      %513 = vmatprep.subr.bf16.mxu0 0
      %514 = vmatpush1.bf16.msra.mxu0 0
      %515 = vmatprep.subr.bf16.mxu0 0
      %516 = vmatpush1.bf16.msra.mxu0 0
      %517 = vmatprep.subr.bf16.mxu0 0
      %518 = vmatpush1.bf16.msra.mxu0 0
      %519 = vmatprep.subr.bf16.mxu0 0
      %520 = vmatpush1.bf16.msra.mxu0 0
      %521 = vmatprep.subr.bf16.mxu0 0
      %522 = vmatpush1.bf16.msra.mxu0 0
      %523 = vmatprep.subr.bf16.mxu0 0
      %524 = vmatpush1.bf16.msra.mxu0 0
      %525 = vmatprep.subr.bf16.mxu0 0
      %526 = vmatpush1.bf16.msra.mxu0 %v509
      %527 = vmatprep.subr.bf16.mxu0 0
      %528 = vmatpush2.bf16.msra.mxu0 0
      %529 = vmatprep.subr.bf16.mxu0 0
      %530 = vmatpush2.bf16.msra.mxu0 0
      %531 = vmatprep.subr.bf16.mxu0 0
      %532 = vmatpush2.bf16.msra.mxu0 0
      %533 = vmatprep.subr.bf16.mxu0 0
      %534 = vmatpush2.bf16.msra.mxu0 0
      %535 = vmatprep.subr.bf16.mxu0 0
      %536 = vmatpush2.bf16.msra.mxu0 0
      %537 = vmatprep.subr.bf16.mxu0 0
      %538 = vmatpush2.bf16.msra.mxu0 0
      %539 = vmatprep.subr.bf16.mxu0 0
      %540 = vmatpush2.bf16.msra.mxu0 0
      %541 = vmatprep.subr.bf16.mxu0 0
      %542 = vmatpush2.bf16.msra.mxu0 0
      %543 = vmatprep.mubr.bf16.mxu0 0
      %544 = vmatmul.mubr.bf16.gmra.mxu0 %v506
      %v545 = vpop.f32.mrf.mxu0
      %v546 = vadd.f32 0.0, %v545
      %v547 = vpop.f32.mrf.mxu0
      %v548 = vpop.f32.mrf.mxu0
      %v549 = vpop.f32.mrf.mxu0
      %550 = vdwg.mxu0
      %v552 = vsel %vm454, %v452, 0
      %v555 = vand.u32 %v222, %v461
      %557 = vmatprep.subr.bf16.mxu0 0
      %558 = vmatpush1.bf16.msra.mxu0 0
      %559 = vmatprep.subr.bf16.mxu0 0
      %560 = vmatpush1.bf16.msra.mxu0 0
      %561 = vmatprep.subr.bf16.mxu0 0
      %562 = vmatpush1.bf16.msra.mxu0 0
      %563 = vmatprep.subr.bf16.mxu0 0
      %564 = vmatpush1.bf16.msra.mxu0 0
      %565 = vmatprep.subr.bf16.mxu0 0
      %566 = vmatpush1.bf16.msra.mxu0 0
      %567 = vmatprep.subr.bf16.mxu0 0
      %568 = vmatpush1.bf16.msra.mxu0 0
      %569 = vmatprep.subr.bf16.mxu0 0
      %570 = vmatpush1.bf16.msra.mxu0 0
      %571 = vmatprep.subr.bf16.mxu0 0
      %572 = vmatpush1.bf16.msra.mxu0 %v555
      %573 = vmatprep.subr.bf16.mxu0 0
      %574 = vmatpush2.bf16.msra.mxu0 0
      %575 = vmatprep.subr.bf16.mxu0 0
      %576 = vmatpush2.bf16.msra.mxu0 0
      %577 = vmatprep.subr.bf16.mxu0 0
      %578 = vmatpush2.bf16.msra.mxu0 0
      %579 = vmatprep.subr.bf16.mxu0 0
      %580 = vmatpush2.bf16.msra.mxu0 0
      %581 = vmatprep.subr.bf16.mxu0 0
      %582 = vmatpush2.bf16.msra.mxu0 0
      %583 = vmatprep.subr.bf16.mxu0 0
      %584 = vmatpush2.bf16.msra.mxu0 0
      %585 = vmatprep.subr.bf16.mxu0 0
      %586 = vmatpush2.bf16.msra.mxu0 0
      %587 = vmatprep.subr.bf16.mxu0 0
      %588 = vmatpush2.bf16.msra.mxu0 0
      %589 = vmatprep.mubr.bf16.mxu0 0
      %590 = vmatmul.mubr.bf16.gmra.mxu0 %v552
      %v591 = vpop.f32.mrf.mxu0
      %v592 = vadd.f32 0.0, %v591
      %v593 = vpop.f32.mrf.mxu0
      %v594 = vpop.f32.mrf.mxu0
      %v595 = vpop.f32.mrf.mxu0
      %596 = vdwg.mxu0
      %v598 = vsel %vm454, %v453, 0
      %v601 = vand.u32 %v223, %v461
      %603 = vmatprep.subr.bf16.mxu0 0
      %604 = vmatpush1.bf16.msra.mxu0 0
      %605 = vmatprep.subr.bf16.mxu0 0
      %606 = vmatpush1.bf16.msra.mxu0 0
      %607 = vmatprep.subr.bf16.mxu0 0
      %608 = vmatpush1.bf16.msra.mxu0 0
      %609 = vmatprep.subr.bf16.mxu0 0
      %610 = vmatpush1.bf16.msra.mxu0 0
      %611 = vmatprep.subr.bf16.mxu0 0
      %612 = vmatpush1.bf16.msra.mxu0 0
      %613 = vmatprep.subr.bf16.mxu0 0
      %614 = vmatpush1.bf16.msra.mxu0 0
      %615 = vmatprep.subr.bf16.mxu0 0
      %616 = vmatpush1.bf16.msra.mxu0 0
      %617 = vmatprep.subr.bf16.mxu0 0
      %618 = vmatpush1.bf16.msra.mxu0 %v601
      %619 = vmatprep.subr.bf16.mxu0 0
      %620 = vmatpush2.bf16.msra.mxu0 0
      %621 = vmatprep.subr.bf16.mxu0 0
      %622 = vmatpush2.bf16.msra.mxu0 0
      %623 = vmatprep.subr.bf16.mxu0 0
      %624 = vmatpush2.bf16.msra.mxu0 0
      %625 = vmatprep.subr.bf16.mxu0 0
      %626 = vmatpush2.bf16.msra.mxu0 0
      %627 = vmatprep.subr.bf16.mxu0 0
      %628 = vmatpush2.bf16.msra.mxu0 0
      %629 = vmatprep.subr.bf16.mxu0 0
      %630 = vmatpush2.bf16.msra.mxu0 0
      %631 = vmatprep.subr.bf16.mxu0 0
      %632 = vmatpush2.bf16.msra.mxu0 0
      %633 = vmatprep.subr.bf16.mxu0 0
      %634 = vmatpush2.bf16.msra.mxu0 0
      %635 = vmatprep.mubr.bf16.mxu0 0
      %636 = vmatmul.mubr.bf16.gmra.mxu0 %v598
      %v637 = vpop.f32.mrf.mxu0
      %v638 = vadd.f32 0.0, %v637
      %v639 = vpop.f32.mrf.mxu0
      %v640 = vpop.f32.mrf.mxu0
      %v641 = vpop.f32.mrf.mxu0
      %642 = vdwg.mxu0
      %v643 = vrcp.pop %v440
      %v644 = vrcp.pop %v443
      %v645 = vrcp.pop %v446
      %v646 = vrcp.pop %v449
      %v647 = vmul.f32 %v500, %v643
      %v648 = vmul.f32 %v546, %v644
      %v649 = vmul.f32 %v592, %v645
      %v650 = vmul.f32 %v638, %v646
      %v651 = vpack.c.bf16 %v647, %v647
      %v652 = vpack.c.bf16 %v648, %v648
      %v653 = vpack.c.bf16 %v649, %v649
      %v654 = vpack.c.bf16 %v650, %v650
      %vm655 = vcmask 59392
      %vm656 = vsmask.f32 2304
      %vm657 = vmand %vm655, %vm656
      %v658 = vld [vmem:[%s210] sm:$0x7]
      %v659 = vsel %vm657, %v651, %v658
      %660 = vst [vmem:[%s210] sm:$0x7] %v659
      %v661 = vld [vmem:[%s210 + $0x4] sm:$0x7]
      %v662 = vsel %vm657, %v652, %v661
      %663 = vst [vmem:[%s210 + $0x4] sm:$0x7] %v662
      %v664 = vld [vmem:[%s210 + $0x8] sm:$0x7]
      %v665 = vsel %vm657, %v653, %v664
      %666 = vst [vmem:[%s210 + $0x8] sm:$0x7] %v665
      %v667 = vld [vmem:[%s210 + $0xc] sm:$0x7]
      %v668 = vsel %vm657, %v654, %v667
      %669 = vst [vmem:[%s210 + $0xc] sm:$0x7] %v668
      %p670 = scmp.lt.s32.totalorder %s14, 1
      %s671 = scalar_select %p670, %s14, 1
      %s672 = smul.addr %s671, 4
      %s673 = smul.addr %s672, 4
      %s674 = scalar_lea.vmem %s3, %s673
      // Predicated region
      $region33: #{captioner_forward.32} parent=31 // pred_check
        %p675 = pneg %p110
      $region34: #{captioner_forward.32} parent=31 // pred_check_branch
        %677 = sbr.rel (%p675) target = $region36
      $region35: #{captioner_forward.32} parent=31 // pred_region
        _
      $region36: #{captioner_forward.32} parent=31 // pred_fallthru
        _
    $region32: #{captioner_forward.32} parent=5 // pred_fallthru
      _
    %p678 = scmp.le.s32.totalorder 2, %s9
    // Predicated region
    $region37: #{captioner_forward.32} parent=5 // pred_check
      %p679 = pneg %p678
    $region38: #{captioner_forward.32} parent=5 // pred_check_branch
      %681 = sbr.rel (%p679) target = $region40
    $region39: #{captioner_forward.32} parent=5 // pred_region
      %s682 = ssub.s32 %s9, 2
      // Predicated region
      $region41: #{captioner_forward.32} parent=39 // pred_check
        %p683 = pneg %p116
      $region42: #{captioner_forward.32} parent=39 // pred_check_branch
        %685 = sbr.rel (%p683) target = $region44
      $region43: #{captioner_forward.32} parent=39 // pred_region
        %p686 = scmp.lt.s32.totalorder %s15, 1
        %s687 = scalar_select %p686, %s15, 1
        %s688 = smul.addr %s687, 4
        %s689 = smul.addr %s688, 4
        %s690 = scalar_lea.vmem %s3, %s689
      $region44: #{captioner_forward.32} parent=39 // pred_fallthru
        _
    $region40: #{captioner_forward.32} parent=5 // pred_fallthru
      _
  $region6: #{captioner_forward.32} parent=0 // loop_footer
    %s13 = sadd.s32 1, %s9
  $region7: #{captioner_forward.32} parent=0 // loop_footer_branch
    %8 = sbr.rel target = $region3
  $region8: #{captioner_forward.32} parent=0 // loop_exit
    _

// kernel: captioner_forward.33
$region0: #{captioner_forward.33}
  #allocation0 [shape = 'u32[]', space=smem, size = 0x4, offset = 0x4, fixed_abs, tag = 'smem constant byte address 0x4 - core index']
  #allocation1 [shape = 'u32[144,128]{1,0:T(1,128)}', space=vmem, size = 0x12000, scoped, tag = 'internal scratch']
  #allocation2 [shape = 'f32[10,32]{1,0:T(8,128)}', space=vmem, size = 0x2000, scoped, tag = 'scratch operand']
  %s0 = inlined_call_operand.vmem [shape: bf16[10,32], index: 0, kind: input, shape index: {}]
  %s1 = inlined_call_operand.vmem [shape: bf16[32,32], index: 1, kind: input, shape index: {}]
  %s2 = inlined_call_operand.vmem [shape: f32[1,32], index: 2, kind: input, shape index: {}]
  %s3 = inlined_call_operand.vmem [shape: bf16[10,32], index: 3, kind: input, shape index: {}]
  %s4 = inlined_call_operand.vmem [shape: f32[1,32], index: 4, kind: input, shape index: {}]
  %s5 = inlined_call_operand.vmem [shape: f32[1,32], index: 5, kind: input, shape index: {}]
  %s6 = inlined_call_operand.vmem [shape: bf16[10,32], index: 6, kind: output, shape index: {}]
  %s7 = sld [smem:[#allocation0]]
  $region42: #{captioner_forward.33} parent=0
    _
  %s9 = ssub.s32 1, %s7
  %s10 = scalar_select 0, %s9, %s7
  // Predicated region
  $region2: #{captioner_forward.33} parent=0 // pred_check
    _
  $region3: #{captioner_forward.33} parent=0 // pred_check_branch
    %12 = sbr.rel (0) target = $region5
  $region4: #{captioner_forward.33} parent=0 // pred_region
    _
  $region5: #{captioner_forward.33} parent=0 // pred_fallthru
    _
  // Predicated region
  $region6: #{captioner_forward.33} parent=0 // pred_check
    _
  $region7: #{captioner_forward.33} parent=0 // pred_check_branch
    %14 = sbr.rel (0) target = $region9
  $region8: #{captioner_forward.33} parent=0 // pred_region
    _
  $region9: #{captioner_forward.33} parent=0 // pred_fallthru
    _
  // Predicated region
  $region10: #{captioner_forward.33} parent=0 // pred_check
    _
  $region11: #{captioner_forward.33} parent=0 // pred_check_branch
    %16 = sbr.rel (0) target = $region13
  $region12: #{captioner_forward.33} parent=0 // pred_region
    _
  $region13: #{captioner_forward.33} parent=0 // pred_fallthru
    _
  // Predicated region
  $region14: #{captioner_forward.33} parent=0 // pred_check
    _
  $region15: #{captioner_forward.33} parent=0 // pred_check_branch
    %18 = sbr.rel (0) target = $region17
  $region16: #{captioner_forward.33} parent=0 // pred_region
    _
  $region17: #{captioner_forward.33} parent=0 // pred_fallthru
    _
  // Predicated region
  $region18: #{captioner_forward.33} parent=0 // pred_check
    _
  $region19: #{captioner_forward.33} parent=0 // pred_check_branch
    %20 = sbr.rel (0) target = $region21
  $region20: #{captioner_forward.33} parent=0 // pred_region
    _
  $region21: #{captioner_forward.33} parent=0 // pred_fallthru
    _
  // Predicated region
  $region22: #{captioner_forward.33} parent=0 // pred_check
    _
  $region23: #{captioner_forward.33} parent=0 // pred_check_branch
    %22 = sbr.rel (0) target = $region25
  $region24: #{captioner_forward.33} parent=0 // pred_region
    _
  $region25: #{captioner_forward.33} parent=0 // pred_fallthru
    _
  %p24 = scmp.eq.s32.totalorder 0, 0
  // Predicated region
  $region26: #{captioner_forward.33} parent=0 // pred_check
    %p25 = pneg %p24
  $region27: #{captioner_forward.33} parent=0 // pred_check_branch
    %27 = sbr.rel (%p25) target = $region29
  $region28: #{captioner_forward.33} parent=0 // pred_region
    %vm28 = vcmask 261120
    %29 = vst.msk [vmem:[#allocation2] sm:$0xff] %vm28, 0.0
    %vm30 = vcmask 254976
    %31 = vst.msk [vmem:[#allocation2 + $0x8] sm:$0x3] %vm30, 0.0
  $region29: #{captioner_forward.33} parent=0 // pred_fallthru
    _
  %v32 = vld [vmem:[#allocation2] sm:$0xff]
  %v33 = vld [vmem:[#allocation2 + $0x8] sm:$0x3]
  %v34 = vld [vmem:[%s0] sm:$0xf]
  %v35 = vld [vmem:[%s0 + $0x4] sm:$0x1]
  %v36 = vld [vmem:[%s1] sm:$0xf]
  %v37 = vld [vmem:[%s1 + $0x4] sm:$0xf]
  %v38 = vld [vmem:[%s1 + $0x8] sm:$0xf]
  %v39 = vld [vmem:[%s1 + $0xc] sm:$0xf]
  %v42 = vunpack.c.l.b16 %v34
  %v43 = vunpack.c.l.b16 %v35
  %v44 = vpack.c.b16 %v43, %v42
  %v49 = vunpack.c.l.b16 %v36
  %v50 = vunpack.c.l.b16 %v37
  %v51 = vunpack.c.l.b16 %v38
  %v52 = vunpack.c.l.b16 %v39
  %v53 = vpack.c.b16 %v50, %v49
  %v54 = vpack.c.b16 %v52, %v51
  %vm57 = vcmask 261120
  %v59 = vsel %vm57, %v44, 0
  %61 = vmatprep.subr.bf16.mxu0 0
  %62 = vmatpush1.bf16.msra.mxu0 0
  %63 = vmatprep.subr.bf16.mxu0 0
  %64 = vmatpush1.bf16.msra.mxu0 0
  %65 = vmatprep.subr.bf16.mxu0 0
  %66 = vmatpush1.bf16.msra.mxu0 0
  %67 = vmatprep.subr.bf16.mxu0 0
  %68 = vmatpush1.bf16.msra.mxu0 0
  %69 = vmatprep.subr.bf16.mxu0 0
  %70 = vmatpush1.bf16.msra.mxu0 0
  %71 = vmatprep.subr.bf16.mxu0 0
  %72 = vmatpush1.bf16.msra.mxu0 0
  %73 = vmatprep.subr.bf16.mxu0 0
  %74 = vmatpush1.bf16.msra.mxu0 %v54
  %75 = vmatprep.subr.bf16.mxu0 0
  %76 = vmatpush1.bf16.msra.mxu0 %v53
  %77 = vmatprep.subr.bf16.mxu0 0
  %78 = vmatpush2.bf16.msra.mxu0 0
  %79 = vmatprep.subr.bf16.mxu0 0
  %80 = vmatpush2.bf16.msra.mxu0 0
  %81 = vmatprep.subr.bf16.mxu0 0
  %82 = vmatpush2.bf16.msra.mxu0 0
  %83 = vmatprep.subr.bf16.mxu0 0
  %84 = vmatpush2.bf16.msra.mxu0 0
  %85 = vmatprep.subr.bf16.mxu0 0
  %86 = vmatpush2.bf16.msra.mxu0 0
  %87 = vmatprep.subr.bf16.mxu0 0
  %88 = vmatpush2.bf16.msra.mxu0 0
  %89 = vmatprep.subr.bf16.mxu0 0
  %90 = vmatpush2.bf16.msra.mxu0 0
  %91 = vmatprep.subr.bf16.mxu0 0
  %92 = vmatpush2.bf16.msra.mxu0 0
  %93 = vmatprep.mubr.bf16.mxu0 0
  %94 = vmatmul.mubr.bf16.gmra.mxu0 %v59
  %v95 = vpop.f32.mrf.mxu0
  %v96 = vadd.f32 0.0, %v95
  %v97 = vpop.f32.mrf.mxu0
  %v98 = vpop.f32.mrf.mxu0
  %v99 = vadd.f32 0.0, %v98
  %v100 = vpop.f32.mrf.mxu0
  %101 = vdwg.mxu0
  %v102 = vadd.f32 %v32, %v96
  %v103 = vadd.f32 %v33, %v99
  %104 = vst.msk [vmem:[#allocation2] sm:$0xff] %vm57, %v102
  %vm105 = vcmask 254976
  %106 = vst.msk [vmem:[#allocation2 + $0x8] sm:$0x3] %vm105, %v103
  // Predicated region
  $region30: #{captioner_forward.33} parent=0 // pred_check
    %p107 = pneg %p24
  $region31: #{captioner_forward.33} parent=0 // pred_check_branch
    %109 = sbr.rel (%p107) target = $region33
  $region32: #{captioner_forward.33} parent=0 // pred_region
    %v110 = vld [vmem:[#allocation2] sm:$0xff]
    %v111 = vld [vmem:[#allocation2 + $0x8] sm:$0x3]
    %v112 = vld [vmem:[%s2] sm:$0x1]
    %v114 = vlaneseq
    %v115 = vshrl.u32 %v114, 7
    %v116 = vsub.s32 0, %v115
    %v117 = vrot.slane %v112, %v116
    %v119 = vadd.f32 %v110, %v117
    %v120 = vadd.f32 %v111, %v117
    %v121 = vld [vmem:[%s3] sm:$0xf]
    %v122 = vld [vmem:[%s3 + $0x4] sm:$0x1]
    %v123 = vunpack.c.l.bf16 %v121
    %v124 = vunpack.c.l.bf16 %v122
    %v125 = vadd.f32 %v119, %v123
    %v126 = vadd.f32 %v120, %v124
    %v127 = vsel %vm57, %v125, 0.0
    %128 = vadd.xlane.f32.xlu0 %v127
    %v129 = vpop.xlane.xlu0 %128
    %v130 = vsel %vm105, %v126, 0.0
    %131 = vadd.xlane.f32.xlu0 %v130
    %v132 = vpop.xlane.xlu0 %131
    %v133 = vrcp.pop 32.0
    %v134 = vmul.f32 %v129, %v133
    %v135 = vmul.f32 %v132, %v133
    %v136 = vsub.f32 %v125, %v134
    %v137 = vsub.f32 %v126, %v135
    %v138 = vmul.f32 %v136, %v136
    %v139 = vmul.f32 %v137, %v137
    %v140 = vsel %vm57, %v138, 0.0
    %141 = vadd.xlane.f32.xlu0 %v140
    %v142 = vpop.xlane.xlu0 %141
    %v143 = vsel %vm105, %v139, 0.0
    %144 = vadd.xlane.f32.xlu0 %v143
    %v145 = vpop.xlane.xlu0 %144
    %v146 = vmul.f32 %v142, %v133
    %v147 = vmul.f32 %v145, %v133
    %v148 = vadd.f32 %v146, 1e-05
    %v149 = vadd.f32 %v147, 1e-05
    %v150 = vrsqrt.pop %v148
    %v151 = vrsqrt.pop %v149
    %v152 = vmul.f32 %v136, %v150
    %v153 = vmul.f32 %v137, %v151
    %v154 = vld [vmem:[%s4] sm:$0x1]
    %v156 = vlaneseq
    %v157 = vshrl.u32 %v156, 7
    %v158 = vsub.s32 0, %v157
    %v159 = vrot.slane %v154, %v158
    %v161 = vmul.f32 %v152, %v159
    %v162 = vmul.f32 %v153, %v159
    %v163 = vld [vmem:[%s5] sm:$0x1]
    %v165 = vlaneseq
    %v166 = vshrl.u32 %v165, 7
    %v167 = vsub.s32 0, %v166
    %v168 = vrot.slane %v163, %v167
    %v170 = vadd.f32 %v161, %v168
    %v171 = vadd.f32 %v162, %v168
    %v172 = vpack.c.bf16 %v171, %v170
    %v174 = vunpack.c.l.b16 %v172
    %v175 = vunpack.c.h.b16 %v172
    %v176 = vpack.c.b16 %v174, %v174
    %v177 = vpack.c.b16 %v175, %v175
    %vm180 = vcmask 257024
    %181 = vst.msk [vmem:[%s6] sm:$0xf] %vm180, %v176
    %vm182 = vcmask 253952
    %183 = vst.msk [vmem:[%s6 + $0x4] sm:$0x1] %vm182, %v177
  $region33: #{captioner_forward.33} parent=0 // pred_fallthru
    _
  // Predicated region
  $region34: #{captioner_forward.33} parent=0 // pred_check
    _
  $region35: #{captioner_forward.33} parent=0 // pred_check_branch
    %185 = sbr.rel (0) target = $region37
  $region36: #{captioner_forward.33} parent=0 // pred_region
    _
  $region37: #{captioner_forward.33} parent=0 // pred_fallthru
    _
  // Predicated region
  $region38: #{captioner_forward.33} parent=0 // pred_check
    _
  $region39: #{captioner_forward.33} parent=0 // pred_check_branch
    %187 = sbr.rel (0) target = $region41
  $region40: #{captioner_forward.33} parent=0 // pred_region
    _
  $region41: #{captioner_forward.33} parent=0 // pred_fallthru
    _

// kernel: captioner_forward.34
$region0: #{captioner_forward.34}
  #allocation0 [shape = 'u32[]', space=smem, size = 0x4, offset = 0x4, fixed_abs, tag = 'smem constant byte address 0x4 - core index']
  #allocation1 [shape = 'u32[144,128]{1,0:T(1,128)}', space=vmem, size = 0x12000, scoped, tag = 'internal scratch']
  #allocation2 [shape = 'f32[10,128]{1,0:T(8,128)}', space=vmem, size = 0x2000, scoped, tag = 'scratch operand']
  %s0 = inlined_call_operand.vmem [shape: bf16[10,32], index: 0, kind: input, shape index: {}]
  %s1 = inlined_call_operand.vmem [shape: bf16[32,128], index: 1, kind: input, shape index: {}]
  %s2 = inlined_call_operand.vmem [shape: f32[1,128], index: 2, kind: input, shape index: {}]
  %s3 = inlined_call_operand.vmem [shape: bf16[10,128], index: 3, kind: output, shape index: {}]
  %s4 = sld [smem:[#allocation0]]
  $region30: #{captioner_forward.34} parent=0
    _
  %s6 = ssub.s32 1, %s4
  %s7 = scalar_select 0, %s6, %s4
  // Predicated region
  $region2: #{captioner_forward.34} parent=0 // pred_check
    _
  $region3: #{captioner_forward.34} parent=0 // pred_check_branch
    %9 = sbr.rel (0) target = $region5
  $region4: #{captioner_forward.34} parent=0 // pred_region
    _
  $region5: #{captioner_forward.34} parent=0 // pred_fallthru
    _
  // Predicated region
  $region6: #{captioner_forward.34} parent=0 // pred_check
    _
  $region7: #{captioner_forward.34} parent=0 // pred_check_branch
    %11 = sbr.rel (0) target = $region9
  $region8: #{captioner_forward.34} parent=0 // pred_region
    _
  $region9: #{captioner_forward.34} parent=0 // pred_fallthru
    _
  // Predicated region
  $region10: #{captioner_forward.34} parent=0 // pred_check
    _
  $region11: #{captioner_forward.34} parent=0 // pred_check_branch
    %13 = sbr.rel (0) target = $region13
  $region12: #{captioner_forward.34} parent=0 // pred_region
    _
  $region13: #{captioner_forward.34} parent=0 // pred_fallthru
    _
  %p15 = scmp.eq.s32.totalorder 0, 0
  // Predicated region
  $region14: #{captioner_forward.34} parent=0 // pred_check
    %p16 = pneg %p15
  $region15: #{captioner_forward.34} parent=0 // pred_check_branch
    %18 = sbr.rel (%p16) target = $region17
  $region16: #{captioner_forward.34} parent=0 // pred_region
    %19 = vst [vmem:[#allocation2] sm:$0xff] 0.0
    %20 = vst [vmem:[#allocation2 + $0x8] sm:$0x3] 0.0
  $region17: #{captioner_forward.34} parent=0 // pred_fallthru
    _
  %v21 = vld [vmem:[#allocation2] sm:$0xff]
  %v22 = vld [vmem:[#allocation2 + $0x8] sm:$0x3]
  %v23 = vld [vmem:[%s0] sm:$0xf]
  %v24 = vld [vmem:[%s0 + $0x4] sm:$0x1]
  %v25 = vld [vmem:[%s1] sm:$0xf]
  %v26 = vld [vmem:[%s1 + $0x4] sm:$0xf]
  %v27 = vld [vmem:[%s1 + $0x8] sm:$0xf]
  %v28 = vld [vmem:[%s1 + $0xc] sm:$0xf]
  %v31 = vunpack.c.l.b16 %v23
  %v32 = vunpack.c.l.b16 %v24
  %v33 = vpack.c.b16 %v32, %v31
  %v38 = vunpack.c.l.b16 %v25
  %v39 = vunpack.c.l.b16 %v26
  %v40 = vunpack.c.l.b16 %v27
  %v41 = vunpack.c.l.b16 %v28
  %v42 = vpack.c.b16 %v39, %v38
  %v43 = vpack.c.b16 %v41, %v40
  %vm46 = vcmask 261120
  %v48 = vsel %vm46, %v33, 0
  %50 = vmatprep.subr.bf16.mxu0 0
  %51 = vmatpush1.bf16.msra.mxu0 0
  %52 = vmatprep.subr.bf16.mxu0 0
  %53 = vmatpush1.bf16.msra.mxu0 0
  %54 = vmatprep.subr.bf16.mxu0 0
  %55 = vmatpush1.bf16.msra.mxu0 0
  %56 = vmatprep.subr.bf16.mxu0 0
  %57 = vmatpush1.bf16.msra.mxu0 0
  %58 = vmatprep.subr.bf16.mxu0 0
  %59 = vmatpush1.bf16.msra.mxu0 0
  %60 = vmatprep.subr.bf16.mxu0 0
  %61 = vmatpush1.bf16.msra.mxu0 0
  %62 = vmatprep.subr.bf16.mxu0 0
  %63 = vmatpush1.bf16.msra.mxu0 %v43
  %64 = vmatprep.subr.bf16.mxu0 0
  %65 = vmatpush1.bf16.msra.mxu0 %v42
  %66 = vmatprep.subr.bf16.mxu0 0
  %67 = vmatpush2.bf16.msra.mxu0 0
  %68 = vmatprep.subr.bf16.mxu0 0
  %69 = vmatpush2.bf16.msra.mxu0 0
  %70 = vmatprep.subr.bf16.mxu0 0
  %71 = vmatpush2.bf16.msra.mxu0 0
  %72 = vmatprep.subr.bf16.mxu0 0
  %73 = vmatpush2.bf16.msra.mxu0 0
  %74 = vmatprep.subr.bf16.mxu0 0
  %75 = vmatpush2.bf16.msra.mxu0 0
  %76 = vmatprep.subr.bf16.mxu0 0
  %77 = vmatpush2.bf16.msra.mxu0 0
  %78 = vmatprep.subr.bf16.mxu0 0
  %79 = vmatpush2.bf16.msra.mxu0 0
  %80 = vmatprep.subr.bf16.mxu0 0
  %81 = vmatpush2.bf16.msra.mxu0 0
  %82 = vmatprep.mubr.bf16.mxu0 0
  %83 = vmatmul.mubr.bf16.gmra.mxu0 %v48
  %v84 = vpop.f32.mrf.mxu0
  %v85 = vadd.f32 0.0, %v84
  %v86 = vpop.f32.mrf.mxu0
  %v87 = vpop.f32.mrf.mxu0
  %v88 = vadd.f32 0.0, %v87
  %v89 = vpop.f32.mrf.mxu0
  %90 = vdwg.mxu0
  %v91 = vadd.f32 %v21, %v85
  %v92 = vadd.f32 %v22, %v88
  %93 = vst [vmem:[#allocation2] sm:$0xff] %v91
  %94 = vst [vmem:[#allocation2 + $0x8] sm:$0x3] %v92
  // Predicated region
  $region18: #{captioner_forward.34} parent=0 // pred_check
    %p95 = pneg %p15
  $region19: #{captioner_forward.34} parent=0 // pred_check_branch
    %97 = sbr.rel (%p95) target = $region21
  $region20: #{captioner_forward.34} parent=0 // pred_region
    %v98 = vld [vmem:[#allocation2] sm:$0xff]
    %v99 = vld [vmem:[#allocation2 + $0x8] sm:$0x3]
    %v100 = vld [vmem:[%s2] sm:$0x1]
    %v102 = vlaneseq
    %v103 = vshrl.u32 %v102, 7
    %v104 = vsub.s32 0, %v103
    %v105 = vrot.slane %v100, %v104
    %v107 = vadd.f32 %v98, %v105
    %v108 = vadd.f32 %v99, %v105
    %v109 = vmax.f32 %v107, 0.0
    %v110 = vmax.f32 %v108, 0.0
    %v111 = vpack.c.bf16 %v110, %v109
    %v113 = vunpack.c.l.b16 %v111
    %v114 = vunpack.c.h.b16 %v111
    %v115 = vpack.c.b16 %v113, %v113
    %v116 = vpack.c.b16 %v114, %v114
    %119 = vst [vmem:[%s3] sm:$0xf] %v115
    %120 = vst [vmem:[%s3 + $0x4] sm:$0x1] %v116
  $region21: #{captioner_forward.34} parent=0 // pred_fallthru
    _
  // Predicated region
  $region22: #{captioner_forward.34} parent=0 // pred_check
    _
  $region23: #{captioner_forward.34} parent=0 // pred_check_branch
    %122 = sbr.rel (0) target = $region25
  $region24: #{captioner_forward.34} parent=0 // pred_region
    _
  $region25: #{captioner_forward.34} parent=0 // pred_fallthru
    _
  // Predicated region
  $region26: #{captioner_forward.34} parent=0 // pred_check
    _
  $region27: #{captioner_forward.34} parent=0 // pred_check_branch
    %124 = sbr.rel (0) target = $region29
  $region28: #{captioner_forward.34} parent=0 // pred_region
    _
  $region29: #{captioner_forward.34} parent=0 // pred_fallthru
    _

// kernel: captioner_forward.45
$region0: #{captioner_forward.45}
  #allocation0 [shape = 'u32[]', space=smem, size = 0x4, offset = 0x4, fixed_abs, tag = 'smem constant byte address 0x4 - core index']
  #allocation1 [shape = 'u32[144,128]{1,0:T(1,128)}', space=vmem, size = 0x12000, scoped, tag = 'internal scratch']
  #allocation2 [shape = 'f32[10,64]{1,0:T(8,128)}', space=vmem, size = 0x2000, scoped, tag = 'scratch operand']
  %s0 = inlined_call_operand.vmem [shape: bf16[10,32], index: 0, kind: input, shape index: {}]
  %s1 = inlined_call_operand.vmem [shape: bf16[32,64], index: 1, kind: input, shape index: {}]
  %s2 = inlined_call_operand.vmem [shape: f32[1,64], index: 2, kind: input, shape index: {}]
  %s3 = inlined_call_operand.vmem [shape: bf16[10,64], index: 3, kind: output, shape index: {}]
  %s4 = sld [smem:[#allocation0]]
  $region30: #{captioner_forward.45} parent=0
    _
  %s6 = ssub.s32 1, %s4
  %s7 = scalar_select 0, %s6, %s4
  // Predicated region
  $region2: #{captioner_forward.45} parent=0 // pred_check
    _
  $region3: #{captioner_forward.45} parent=0 // pred_check_branch
    %9 = sbr.rel (0) target = $region5
  $region4: #{captioner_forward.45} parent=0 // pred_region
    _
  $region5: #{captioner_forward.45} parent=0 // pred_fallthru
    _
  // Predicated region
  $region6: #{captioner_forward.45} parent=0 // pred_check
    _
  $region7: #{captioner_forward.45} parent=0 // pred_check_branch
    %11 = sbr.rel (0) target = $region9
  $region8: #{captioner_forward.45} parent=0 // pred_region
    _
  $region9: #{captioner_forward.45} parent=0 // pred_fallthru
    _
  // Predicated region
  $region10: #{captioner_forward.45} parent=0 // pred_check
    _
  $region11: #{captioner_forward.45} parent=0 // pred_check_branch
    %13 = sbr.rel (0) target = $region13
  $region12: #{captioner_forward.45} parent=0 // pred_region
    _
  $region13: #{captioner_forward.45} parent=0 // pred_fallthru
    _
  %p15 = scmp.eq.s32.totalorder 0, 0
  // Predicated region
  $region14: #{captioner_forward.45} parent=0 // pred_check
    %p16 = pneg %p15
  $region15: #{captioner_forward.45} parent=0 // pred_check_branch
    %18 = sbr.rel (%p16) target = $region17
  $region16: #{captioner_forward.45} parent=0 // pred_region
    %vm19 = vcmask 523264
    %20 = vst.msk [vmem:[#allocation2] sm:$0xff] %vm19, 0.0
    %vm21 = vcmask 517120
    %22 = vst.msk [vmem:[#allocation2 + $0x8] sm:$0x3] %vm21, 0.0
  $region17: #{captioner_forward.45} parent=0 // pred_fallthru
    _
  %v23 = vld [vmem:[#allocation2] sm:$0xff]
  %v24 = vld [vmem:[#allocation2 + $0x8] sm:$0x3]
  %v25 = vld [vmem:[%s0] sm:$0xf]
  %v26 = vld [vmem:[%s0 + $0x4] sm:$0x1]
  %v27 = vld [vmem:[%s1] sm:$0xf]
  %v28 = vld [vmem:[%s1 + $0x4] sm:$0xf]
  %v29 = vld [vmem:[%s1 + $0x8] sm:$0xf]
  %v30 = vld [vmem:[%s1 + $0xc] sm:$0xf]
  %v33 = vunpack.c.l.b16 %v25
  %v34 = vunpack.c.l.b16 %v26
  %v35 = vpack.c.b16 %v34, %v33
  %v40 = vunpack.c.l.b16 %v27
  %v41 = vunpack.c.l.b16 %v28
  %v42 = vunpack.c.l.b16 %v29
  %v43 = vunpack.c.l.b16 %v30
  %v44 = vpack.c.b16 %v41, %v40
  %v45 = vpack.c.b16 %v43, %v42
  %vm48 = vcmask 261120
  %v50 = vsel %vm48, %v35, 0
  %52 = vmatprep.subr.bf16.mxu0 0
  %53 = vmatpush1.bf16.msra.mxu0 0
  %54 = vmatprep.subr.bf16.mxu0 0
  %55 = vmatpush1.bf16.msra.mxu0 0
  %56 = vmatprep.subr.bf16.mxu0 0
  %57 = vmatpush1.bf16.msra.mxu0 0
  %58 = vmatprep.subr.bf16.mxu0 0
  %59 = vmatpush1.bf16.msra.mxu0 0
  %60 = vmatprep.subr.bf16.mxu0 0
  %61 = vmatpush1.bf16.msra.mxu0 0
  %62 = vmatprep.subr.bf16.mxu0 0
  %63 = vmatpush1.bf16.msra.mxu0 0
  %64 = vmatprep.subr.bf16.mxu0 0
  %65 = vmatpush1.bf16.msra.mxu0 %v45
  %66 = vmatprep.subr.bf16.mxu0 0
  %67 = vmatpush1.bf16.msra.mxu0 %v44
  %68 = vmatprep.subr.bf16.mxu0 0
  %69 = vmatpush2.bf16.msra.mxu0 0
  %70 = vmatprep.subr.bf16.mxu0 0
  %71 = vmatpush2.bf16.msra.mxu0 0
  %72 = vmatprep.subr.bf16.mxu0 0
  %73 = vmatpush2.bf16.msra.mxu0 0
  %74 = vmatprep.subr.bf16.mxu0 0
  %75 = vmatpush2.bf16.msra.mxu0 0
  %76 = vmatprep.subr.bf16.mxu0 0
  %77 = vmatpush2.bf16.msra.mxu0 0
  %78 = vmatprep.subr.bf16.mxu0 0
  %79 = vmatpush2.bf16.msra.mxu0 0
  %80 = vmatprep.subr.bf16.mxu0 0
  %81 = vmatpush2.bf16.msra.mxu0 0
  %82 = vmatprep.subr.bf16.mxu0 0
  %83 = vmatpush2.bf16.msra.mxu0 0
  %84 = vmatprep.mubr.bf16.mxu0 0
  %85 = vmatmul.mubr.bf16.gmra.mxu0 %v50
  %v86 = vpop.f32.mrf.mxu0
  %v87 = vadd.f32 0.0, %v86
  %v88 = vpop.f32.mrf.mxu0
  %v89 = vpop.f32.mrf.mxu0
  %v90 = vadd.f32 0.0, %v89
  %v91 = vpop.f32.mrf.mxu0
  %92 = vdwg.mxu0
  %v93 = vadd.f32 %v23, %v87
  %v94 = vadd.f32 %v24, %v90
  %vm95 = vcmask 523264
  %96 = vst.msk [vmem:[#allocation2] sm:$0xff] %vm95, %v93
  %vm97 = vcmask 517120
  %98 = vst.msk [vmem:[#allocation2 + $0x8] sm:$0x3] %vm97, %v94
  // Predicated region
  $region18: #{captioner_forward.45} parent=0 // pred_check
    %p99 = pneg %p15
  $region19: #{captioner_forward.45} parent=0 // pred_check_branch
    %101 = sbr.rel (%p99) target = $region21
  $region20: #{captioner_forward.45} parent=0 // pred_region
    %v102 = vld [vmem:[#allocation2] sm:$0xff]
    %v103 = vld [vmem:[#allocation2 + $0x8] sm:$0x3]
    %v104 = vld [vmem:[%s2] sm:$0x1]
    %v106 = vlaneseq
    %v107 = vshrl.u32 %v106, 7
    %v108 = vsub.s32 0, %v107
    %v109 = vrot.slane %v104, %v108
    %v111 = vadd.f32 %v102, %v109
    %v112 = vadd.f32 %v103, %v109
    %v113 = vpack.c.bf16 %v112, %v111
    %v115 = vunpack.c.l.b16 %v113
    %v116 = vunpack.c.h.b16 %v113
    %v117 = vpack.c.b16 %v115, %v115
    %v118 = vpack.c.b16 %v116, %v116
    %vm121 = vcmask 519168
    %122 = vst.msk [vmem:[%s3] sm:$0xf] %vm121, %v117
    %vm123 = vcmask 516096
    %124 = vst.msk [vmem:[%s3 + $0x4] sm:$0x1] %vm123, %v118
  $region21: #{captioner_forward.45} parent=0 // pred_fallthru
    _
  // Predicated region
  $region22: #{captioner_forward.45} parent=0 // pred_check
    _
  $region23: #{captioner_forward.45} parent=0 // pred_check_branch
    %126 = sbr.rel (0) target = $region25
  $region24: #{captioner_forward.45} parent=0 // pred_region
    _
  $region25: #{captioner_forward.45} parent=0 // pred_fallthru
    _
  // Predicated region
  $region26: #{captioner_forward.45} parent=0 // pred_check
    _
  $region27: #{captioner_forward.45} parent=0 // pred_check_branch
    %128 = sbr.rel (0) target = $region29
  $region28: #{captioner_forward.45} parent=0 // pred_region
    _
  $region29: #{captioner_forward.45} parent=0 // pred_fallthru
    _

// kernel: captioner_forward.35
$region0: #{captioner_forward.35}
  #allocation0 [shape = 'u32[]', space=smem, size = 0x4, offset = 0x4, fixed_abs, tag = 'smem constant byte address 0x4 - core index']
  #allocation1 [shape = 'u32[144,128]{1,0:T(1,128)}', space=vmem, size = 0x12000, scoped, tag = 'internal scratch']
  #allocation2 [shape = 'f32[10,32]{1,0:T(8,128)}', space=vmem, size = 0x2000, scoped, tag = 'scratch operand']
  %s0 = inlined_call_operand.vmem [shape: bf16[10,128], index: 0, kind: input, shape index: {}]
  %s1 = inlined_call_operand.vmem [shape: bf16[128,32], index: 1, kind: input, shape index: {}]
  %s2 = inlined_call_operand.vmem [shape: f32[1,32], index: 2, kind: input, shape index: {}]
  %s3 = inlined_call_operand.vmem [shape: bf16[10,32], index: 3, kind: input, shape index: {}]
  %s4 = inlined_call_operand.vmem [shape: f32[1,32], index: 4, kind: input, shape index: {}]
  %s5 = inlined_call_operand.vmem [shape: f32[1,32], index: 5, kind: input, shape index: {}]
  %s6 = inlined_call_operand.vmem [shape: bf16[10,32], index: 6, kind: output, shape index: {}]
  %s7 = sld [smem:[#allocation0]]
  $region42: #{captioner_forward.35} parent=0
    _
  %s9 = ssub.s32 1, %s7
  %s10 = scalar_select 0, %s9, %s7
  // Predicated region
  $region2: #{captioner_forward.35} parent=0 // pred_check
    _
  $region3: #{captioner_forward.35} parent=0 // pred_check_branch
    %12 = sbr.rel (0) target = $region5
  $region4: #{captioner_forward.35} parent=0 // pred_region
    _
  $region5: #{captioner_forward.35} parent=0 // pred_fallthru
    _
  // Predicated region
  $region6: #{captioner_forward.35} parent=0 // pred_check
    _
  $region7: #{captioner_forward.35} parent=0 // pred_check_branch
    %14 = sbr.rel (0) target = $region9
  $region8: #{captioner_forward.35} parent=0 // pred_region
    _
  $region9: #{captioner_forward.35} parent=0 // pred_fallthru
    _
  // Predicated region
  $region10: #{captioner_forward.35} parent=0 // pred_check
    _
  $region11: #{captioner_forward.35} parent=0 // pred_check_branch
    %16 = sbr.rel (0) target = $region13
  $region12: #{captioner_forward.35} parent=0 // pred_region
    _
  $region13: #{captioner_forward.35} parent=0 // pred_fallthru
    _
  // Predicated region
  $region14: #{captioner_forward.35} parent=0 // pred_check
    _
  $region15: #{captioner_forward.35} parent=0 // pred_check_branch
    %18 = sbr.rel (0) target = $region17
  $region16: #{captioner_forward.35} parent=0 // pred_region
    _
  $region17: #{captioner_forward.35} parent=0 // pred_fallthru
    _
  // Predicated region
  $region18: #{captioner_forward.35} parent=0 // pred_check
    _
  $region19: #{captioner_forward.35} parent=0 // pred_check_branch
    %20 = sbr.rel (0) target = $region21
  $region20: #{captioner_forward.35} parent=0 // pred_region
    _
  $region21: #{captioner_forward.35} parent=0 // pred_fallthru
    _
  // Predicated region
  $region22: #{captioner_forward.35} parent=0 // pred_check
    _
  $region23: #{captioner_forward.35} parent=0 // pred_check_branch
    %22 = sbr.rel (0) target = $region25
  $region24: #{captioner_forward.35} parent=0 // pred_region
    _
  $region25: #{captioner_forward.35} parent=0 // pred_fallthru
    _
  %p24 = scmp.eq.s32.totalorder 0, 0
  // Predicated region
  $region26: #{captioner_forward.35} parent=0 // pred_check
    %p25 = pneg %p24
  $region27: #{captioner_forward.35} parent=0 // pred_check_branch
    %27 = sbr.rel (%p25) target = $region29
  $region28: #{captioner_forward.35} parent=0 // pred_region
    %vm28 = vcmask 261120
    %29 = vst.msk [vmem:[#allocation2] sm:$0xff] %vm28, 0.0
    %vm30 = vcmask 254976
    %31 = vst.msk [vmem:[#allocation2 + $0x8] sm:$0x3] %vm30, 0.0
  $region29: #{captioner_forward.35} parent=0 // pred_fallthru
    _
  %v32 = vld [vmem:[#allocation2] sm:$0xff]
  %v33 = vld [vmem:[#allocation2 + $0x8] sm:$0x3]
  %v34 = vld [vmem:[%s0] sm:$0xf]
  %v35 = vld [vmem:[%s0 + $0x4] sm:$0x1]
  %v36 = vld [vmem:[%s1] sm:$0xf]
  %v37 = vld [vmem:[%s1 + $0x4] sm:$0xf]
  %v38 = vld [vmem:[%s1 + $0x8] sm:$0xf]
  %v39 = vld [vmem:[%s1 + $0xc] sm:$0xf]
  %v40 = vld [vmem:[%s1 + $0x10] sm:$0xf]
  %v41 = vld [vmem:[%s1 + $0x14] sm:$0xf]
  %v42 = vld [vmem:[%s1 + $0x18] sm:$0xf]
  %v43 = vld [vmem:[%s1 + $0x1c] sm:$0xf]
  %v44 = vld [vmem:[%s1 + $0x20] sm:$0xf]
  %v45 = vld [vmem:[%s1 + $0x24] sm:$0xf]
  %v46 = vld [vmem:[%s1 + $0x28] sm:$0xf]
  %v47 = vld [vmem:[%s1 + $0x2c] sm:$0xf]
  %v48 = vld [vmem:[%s1 + $0x30] sm:$0xf]
  %v49 = vld [vmem:[%s1 + $0x34] sm:$0xf]
  %v50 = vld [vmem:[%s1 + $0x38] sm:$0xf]
  %v51 = vld [vmem:[%s1 + $0x3c] sm:$0xf]
  %v54 = vunpack.c.l.b16 %v34
  %v55 = vunpack.c.l.b16 %v35
  %v56 = vpack.c.b16 %v55, %v54
  %v74 = vunpack.c.l.b16 %v36
  %v75 = vunpack.c.l.b16 %v37
  %v76 = vunpack.c.l.b16 %v38
  %v77 = vunpack.c.l.b16 %v39
  %v78 = vunpack.c.l.b16 %v40
  %v79 = vunpack.c.l.b16 %v41
  %v80 = vunpack.c.l.b16 %v42
  %v81 = vunpack.c.l.b16 %v43
  %v82 = vunpack.c.l.b16 %v44
  %v83 = vunpack.c.l.b16 %v45
  %v84 = vunpack.c.l.b16 %v46
  %v85 = vunpack.c.l.b16 %v47
  %v86 = vunpack.c.l.b16 %v48
  %v87 = vunpack.c.l.b16 %v49
  %v88 = vunpack.c.l.b16 %v50
  %v89 = vunpack.c.l.b16 %v51
  %v90 = vpack.c.b16 %v75, %v74
  %v91 = vpack.c.b16 %v77, %v76
  %v92 = vpack.c.b16 %v79, %v78
  %v93 = vpack.c.b16 %v81, %v80
  %v94 = vpack.c.b16 %v83, %v82
  %v95 = vpack.c.b16 %v85, %v84
  %v96 = vpack.c.b16 %v87, %v86
  %v97 = vpack.c.b16 %v89, %v88
  %106 = vmatprep.subr.bf16.mxu0 0
  %107 = vmatpush1.bf16.msra.mxu0 %v97
  %108 = vmatprep.subr.bf16.mxu0 0
  %109 = vmatpush1.bf16.msra.mxu0 %v96
  %110 = vmatprep.subr.bf16.mxu0 0
  %111 = vmatpush1.bf16.msra.mxu0 %v95
  %112 = vmatprep.subr.bf16.mxu0 0
  %113 = vmatpush1.bf16.msra.mxu0 %v94
  %114 = vmatprep.subr.bf16.mxu0 0
  %115 = vmatpush1.bf16.msra.mxu0 %v93
  %116 = vmatprep.subr.bf16.mxu0 0
  %117 = vmatpush1.bf16.msra.mxu0 %v92
  %118 = vmatprep.subr.bf16.mxu0 0
  %119 = vmatpush1.bf16.msra.mxu0 %v91
  %120 = vmatprep.subr.bf16.mxu0 0
  %121 = vmatpush1.bf16.msra.mxu0 %v90
  %122 = vmatprep.subr.bf16.mxu0 0
  %123 = vmatpush2.bf16.msra.mxu0 0
  %124 = vmatprep.subr.bf16.mxu0 0
  %125 = vmatpush2.bf16.msra.mxu0 0
  %126 = vmatprep.subr.bf16.mxu0 0
  %127 = vmatpush2.bf16.msra.mxu0 0
  %128 = vmatprep.subr.bf16.mxu0 0
  %129 = vmatpush2.bf16.msra.mxu0 0
  %130 = vmatprep.subr.bf16.mxu0 0
  %131 = vmatpush2.bf16.msra.mxu0 0
  %132 = vmatprep.subr.bf16.mxu0 0
  %133 = vmatpush2.bf16.msra.mxu0 0
  %134 = vmatprep.subr.bf16.mxu0 0
  %135 = vmatpush2.bf16.msra.mxu0 0
  %136 = vmatprep.subr.bf16.mxu0 0
  %137 = vmatpush2.bf16.msra.mxu0 0
  %138 = vmatprep.mubr.bf16.mxu0 0
  %139 = vmatmul.mubr.bf16.gmra.mxu0 %v56
  %v140 = vpop.f32.mrf.mxu0
  %v141 = vadd.f32 0.0, %v140
  %v142 = vpop.f32.mrf.mxu0
  %v143 = vpop.f32.mrf.mxu0
  %v144 = vadd.f32 0.0, %v143
  %v145 = vpop.f32.mrf.mxu0
  %146 = vdwg.mxu0
  %v147 = vadd.f32 %v32, %v141
  %v148 = vadd.f32 %v33, %v144
  %vm149 = vcmask 261120
  %150 = vst.msk [vmem:[#allocation2] sm:$0xff] %vm149, %v147
  %vm151 = vcmask 254976
  %152 = vst.msk [vmem:[#allocation2 + $0x8] sm:$0x3] %vm151, %v148
  // Predicated region
  $region30: #{captioner_forward.35} parent=0 // pred_check
    %p153 = pneg %p24
  $region31: #{captioner_forward.35} parent=0 // pred_check_branch
    %155 = sbr.rel (%p153) target = $region33
  $region32: #{captioner_forward.35} parent=0 // pred_region
    %v156 = vld [vmem:[#allocation2] sm:$0xff]
    %v157 = vld [vmem:[#allocation2 + $0x8] sm:$0x3]
    %v158 = vld [vmem:[%s2] sm:$0x1]
    %v160 = vlaneseq
    %v161 = vshrl.u32 %v160, 7
    %v162 = vsub.s32 0, %v161
    %v163 = vrot.slane %v158, %v162
    %v165 = vadd.f32 %v156, %v163
    %v166 = vadd.f32 %v157, %v163
    %v167 = vld [vmem:[%s3] sm:$0xf]
    %v168 = vld [vmem:[%s3 + $0x4] sm:$0x1]
    %v169 = vunpack.c.l.bf16 %v167
    %v170 = vunpack.c.l.bf16 %v168
    %v171 = vadd.f32 %v165, %v169
    %v172 = vadd.f32 %v166, %v170
    %v173 = vsel %vm149, %v171, 0.0
    %174 = vadd.xlane.f32.xlu0 %v173
    %v175 = vpop.xlane.xlu0 %174
    %v176 = vsel %vm151, %v172, 0.0
    %177 = vadd.xlane.f32.xlu0 %v176
    %v178 = vpop.xlane.xlu0 %177
    %v179 = vrcp.pop 32.0
    %v180 = vmul.f32 %v175, %v179
    %v181 = vmul.f32 %v178, %v179
    %v182 = vsub.f32 %v171, %v180
    %v183 = vsub.f32 %v172, %v181
    %v184 = vmul.f32 %v182, %v182
    %v185 = vmul.f32 %v183, %v183
    %v186 = vsel %vm149, %v184, 0.0
    %187 = vadd.xlane.f32.xlu0 %v186
    %v188 = vpop.xlane.xlu0 %187
    %v189 = vsel %vm151, %v185, 0.0
    %190 = vadd.xlane.f32.xlu0 %v189
    %v191 = vpop.xlane.xlu0 %190
    %v192 = vmul.f32 %v188, %v179
    %v193 = vmul.f32 %v191, %v179
    %v194 = vadd.f32 %v192, 1e-05
    %v195 = vadd.f32 %v193, 1e-05
    %v196 = vrsqrt.pop %v194
    %v197 = vrsqrt.pop %v195
    %v198 = vmul.f32 %v182, %v196
    %v199 = vmul.f32 %v183, %v197
    %v200 = vld [vmem:[%s4] sm:$0x1]
    %v202 = vlaneseq
    %v203 = vshrl.u32 %v202, 7
    %v204 = vsub.s32 0, %v203
    %v205 = vrot.slane %v200, %v204
    %v207 = vmul.f32 %v198, %v205
    %v208 = vmul.f32 %v199, %v205
    %v209 = vld [vmem:[%s5] sm:$0x1]
    %v211 = vlaneseq
    %v212 = vshrl.u32 %v211, 7
    %v213 = vsub.s32 0, %v212
    %v214 = vrot.slane %v209, %v213
    %v216 = vadd.f32 %v207, %v214
    %v217 = vadd.f32 %v208, %v214
    %v218 = vpack.c.bf16 %v217, %v216
    %v220 = vunpack.c.l.b16 %v218
    %v221 = vunpack.c.h.b16 %v218
    %v222 = vpack.c.b16 %v220, %v220
    %v223 = vpack.c.b16 %v221, %v221
    %vm226 = vcmask 257024
    %227 = vst.msk [vmem:[%s6] sm:$0xf] %vm226, %v222
    %vm228 = vcmask 253952
    %229 = vst.msk [vmem:[%s6 + $0x4] sm:$0x1] %vm228, %v223
  $region33: #{captioner_forward.35} parent=0 // pred_fallthru
    _
  // Predicated region
  $region34: #{captioner_forward.35} parent=0 // pred_check
    _
  $region35: #{captioner_forward.35} parent=0 // pred_check_branch
    %231 = sbr.rel (0) target = $region37
  $region36: #{captioner_forward.35} parent=0 // pred_region
    _
  $region37: #{captioner_forward.35} parent=0 // pred_fallthru
    _
  // Predicated region
  $region38: #{captioner_forward.35} parent=0 // pred_check
    _
  $region39: #{captioner_forward.35} parent=0 // pred_check_branch
    %233 = sbr.rel (0) target = $region41
  $region40: #{captioner_forward.35} parent=0 // pred_region
    _
  $region41: #{captioner_forward.35} parent=0 // pred_fallthru
    _

// kernel: captioner_forward.48
$region0: #{captioner_forward.48}
  #allocation0 [shape = 'u32[]', space=smem, size = 0x4, offset = 0x4, fixed_abs, tag = 'smem constant byte address 0x4 - core index']
  #allocation1 [shape = 'u32[144,128]{1,0:T(1,128)}', space=vmem, size = 0x12000, scoped, tag = 'internal scratch']
  #allocation2 [shape = 'f32[16,128]{1,0:T(8,128)}', space=vmem, size = 0x2000, scoped, tag = 'scratch operand']
  %s0 = inlined_call_operand.vmem [shape: bf16[16,32], index: 0, kind: input, shape index: {}]
  %s1 = inlined_call_operand.vmem [shape: bf16[32,128], index: 1, kind: input, shape index: {}]
  %s2 = inlined_call_operand.vmem [shape: f32[1,128], index: 2, kind: input, shape index: {}]
  %s3 = inlined_call_operand.vmem [shape: bf16[16,128], index: 3, kind: output, shape index: {}]
  %s4 = sld [smem:[#allocation0]]
  $region30: #{captioner_forward.48} parent=0
    _
  %s6 = ssub.s32 1, %s4
  %s7 = scalar_select 0, %s6, %s4
  // Predicated region
  $region2: #{captioner_forward.48} parent=0 // pred_check
    _
  $region3: #{captioner_forward.48} parent=0 // pred_check_branch
    %9 = sbr.rel (0) target = $region5
  $region4: #{captioner_forward.48} parent=0 // pred_region
    _
  $region5: #{captioner_forward.48} parent=0 // pred_fallthru
    _
  // Predicated region
  $region6: #{captioner_forward.48} parent=0 // pred_check
    _
  $region7: #{captioner_forward.48} parent=0 // pred_check_branch
    %11 = sbr.rel (0) target = $region9
  $region8: #{captioner_forward.48} parent=0 // pred_region
    _
  $region9: #{captioner_forward.48} parent=0 // pred_fallthru
    _
  // Predicated region
  $region10: #{captioner_forward.48} parent=0 // pred_check
    _
  $region11: #{captioner_forward.48} parent=0 // pred_check_branch
    %13 = sbr.rel (0) target = $region13
  $region12: #{captioner_forward.48} parent=0 // pred_region
    _
  $region13: #{captioner_forward.48} parent=0 // pred_fallthru
    _
  %p15 = scmp.eq.s32.totalorder 0, 0
  // Predicated region
  $region14: #{captioner_forward.48} parent=0 // pred_check
    %p16 = pneg %p15
  $region15: #{captioner_forward.48} parent=0 // pred_check_branch
    %18 = sbr.rel (%p16) target = $region17
  $region16: #{captioner_forward.48} parent=0 // pred_region
    %19 = vst [vmem:[#allocation2] sm:$0xff] 0.0
    %20 = vst [vmem:[#allocation2 + $0x8] sm:$0xff] 0.0
  $region17: #{captioner_forward.48} parent=0 // pred_fallthru
    _
  %v21 = vld [vmem:[#allocation2] sm:$0xff]
  %v22 = vld [vmem:[#allocation2 + $0x8] sm:$0xff]
  %v23 = vld [vmem:[%s0] sm:$0xf]
  %v24 = vld [vmem:[%s0 + $0x4] sm:$0xf]
  %v25 = vld [vmem:[%s1] sm:$0xf]
  %v26 = vld [vmem:[%s1 + $0x4] sm:$0xf]
  %v27 = vld [vmem:[%s1 + $0x8] sm:$0xf]
  %v28 = vld [vmem:[%s1 + $0xc] sm:$0xf]
  %v31 = vunpack.c.l.b16 %v23
  %v32 = vunpack.c.l.b16 %v24
  %v33 = vpack.c.b16 %v32, %v31
  %v38 = vunpack.c.l.b16 %v25
  %v39 = vunpack.c.l.b16 %v26
  %v40 = vunpack.c.l.b16 %v27
  %v41 = vunpack.c.l.b16 %v28
  %v42 = vpack.c.b16 %v39, %v38
  %v43 = vpack.c.b16 %v41, %v40
  %vm46 = vcmask 261120
  %v48 = vsel %vm46, %v33, 0
  %50 = vmatprep.subr.bf16.mxu0 0
  %51 = vmatpush1.bf16.msra.mxu0 0
  %52 = vmatprep.subr.bf16.mxu0 0
  %53 = vmatpush1.bf16.msra.mxu0 0
  %54 = vmatprep.subr.bf16.mxu0 0
  %55 = vmatpush1.bf16.msra.mxu0 0
  %56 = vmatprep.subr.bf16.mxu0 0
  %57 = vmatpush1.bf16.msra.mxu0 0
  %58 = vmatprep.subr.bf16.mxu0 0
  %59 = vmatpush1.bf16.msra.mxu0 0
  %60 = vmatprep.subr.bf16.mxu0 0
  %61 = vmatpush1.bf16.msra.mxu0 0
  %62 = vmatprep.subr.bf16.mxu0 0
  %63 = vmatpush1.bf16.msra.mxu0 %v43
  %64 = vmatprep.subr.bf16.mxu0 0
  %65 = vmatpush1.bf16.msra.mxu0 %v42
  %66 = vmatprep.subr.bf16.mxu0 0
  %67 = vmatpush2.bf16.msra.mxu0 0
  %68 = vmatprep.subr.bf16.mxu0 0
  %69 = vmatpush2.bf16.msra.mxu0 0
  %70 = vmatprep.subr.bf16.mxu0 0
  %71 = vmatpush2.bf16.msra.mxu0 0
  %72 = vmatprep.subr.bf16.mxu0 0
  %73 = vmatpush2.bf16.msra.mxu0 0
  %74 = vmatprep.subr.bf16.mxu0 0
  %75 = vmatpush2.bf16.msra.mxu0 0
  %76 = vmatprep.subr.bf16.mxu0 0
  %77 = vmatpush2.bf16.msra.mxu0 0
  %78 = vmatprep.subr.bf16.mxu0 0
  %79 = vmatpush2.bf16.msra.mxu0 0
  %80 = vmatprep.subr.bf16.mxu0 0
  %81 = vmatpush2.bf16.msra.mxu0 0
  %82 = vmatprep.mubr.bf16.mxu0 0
  %83 = vmatmul.mubr.bf16.gmra.mxu0 %v48
  %v84 = vpop.f32.mrf.mxu0
  %v85 = vadd.f32 0.0, %v84
  %v86 = vpop.f32.mrf.mxu0
  %v87 = vpop.f32.mrf.mxu0
  %v88 = vadd.f32 0.0, %v87
  %v89 = vpop.f32.mrf.mxu0
  %90 = vdwg.mxu0
  %v91 = vadd.f32 %v21, %v85
  %v92 = vadd.f32 %v22, %v88
  %93 = vst [vmem:[#allocation2] sm:$0xff] %v91
  %94 = vst [vmem:[#allocation2 + $0x8] sm:$0xff] %v92
  // Predicated region
  $region18: #{captioner_forward.48} parent=0 // pred_check
    %p95 = pneg %p15
  $region19: #{captioner_forward.48} parent=0 // pred_check_branch
    %97 = sbr.rel (%p95) target = $region21
  $region20: #{captioner_forward.48} parent=0 // pred_region
    %v98 = vld [vmem:[#allocation2] sm:$0xff]
    %v99 = vld [vmem:[#allocation2 + $0x8] sm:$0xff]
    %v100 = vld [vmem:[%s2] sm:$0x1]
    %v102 = vlaneseq
    %v103 = vshrl.u32 %v102, 7
    %v104 = vsub.s32 0, %v103
    %v105 = vrot.slane %v100, %v104
    %v107 = vadd.f32 %v98, %v105
    %v108 = vadd.f32 %v99, %v105
    %v109 = vmax.f32 %v107, 0.0
    %v110 = vmax.f32 %v108, 0.0
    %v111 = vpack.c.bf16 %v110, %v109
    %v113 = vunpack.c.l.b16 %v111
    %v114 = vunpack.c.h.b16 %v111
    %v115 = vpack.c.b16 %v113, %v113
    %v116 = vpack.c.b16 %v114, %v114
    %119 = vst [vmem:[%s3] sm:$0xf] %v115
    %120 = vst [vmem:[%s3 + $0x4] sm:$0xf] %v116
  $region21: #{captioner_forward.48} parent=0 // pred_fallthru
    _
  // Predicated region
  $region22: #{captioner_forward.48} parent=0 // pred_check
    _
  $region23: #{captioner_forward.48} parent=0 // pred_check_branch
    %122 = sbr.rel (0) target = $region25
  $region24: #{captioner_forward.48} parent=0 // pred_region
    _
  $region25: #{captioner_forward.48} parent=0 // pred_fallthru
    _
  // Predicated region
  $region26: #{captioner_forward.48} parent=0 // pred_check
    _
  $region27: #{captioner_forward.48} parent=0 // pred_check_branch
    %124 = sbr.rel (0) target = $region29
  $region28: #{captioner_forward.48} parent=0 // pred_region
    _
  $region29: #{captioner_forward.48} parent=0 // pred_fallthru
    _

// kernel: captioner_forward.46
$region0: #{captioner_forward.46}
  #allocation0 [shape = 'u32[]', space=smem, size = 0x4, offset = 0x4, fixed_abs, tag = 'smem constant byte address 0x4 - core index']
  #allocation1 [shape = 'u32[144,128]{1,0:T(1,128)}', space=vmem, size = 0x12000, scoped, tag = 'internal scratch']
  %s0 = inlined_call_operand.vmem [shape: bf16[2,4,8,8], index: 0, kind: input, shape index: {}]
  %s1 = inlined_call_operand.vmem [shape: bf16[2,4,5,8], index: 1, kind: input, shape index: {}]
  %s2 = inlined_call_operand.vmem [shape: bf16[2,4,5,8], index: 2, kind: input, shape index: {}]
  %s3 = inlined_call_operand.vmem [shape: bf16[2,4,8,8], index: 3, kind: output, shape index: {}]
  %s4 = sld [smem:[#allocation0]]
  $region45: #{captioner_forward.46} parent=0
    _
  %s6 = ssub.s32 1, %s4
  %s7 = scalar_select 0, %s6, %s4
  loop: start=0, step=1, limit=4
  $region2: #{captioner_forward.46} parent=0 // loop_pre_header
    _
  $region3: #{captioner_forward.46} parent=0 // loop_header
    %s9 = sphi 0, %s13
    %p10 = scmp.ge.s32.totalorder %s9, 4
    %s19 = sphi 0, %s21
    %s22 = sphi 0, %s19
    %s23 = sphi 0, %s22
    %s39 = sphi 0, %s23
    %s45 = sphi 0, %s47
    %s48 = sphi 0, %s45
    %s49 = sphi 0, %s48
    %s65 = sphi 0, %s49
    %s71 = sphi 0, %s73
    %s74 = sphi 0, %s71
    %s75 = sphi 0, %s74
    %s91 = sphi 0, %s75
    %s97 = sphi 0, %s99
    %s100 = sphi 0, %s97
    %s101 = sphi 0, %s100
    %s117 = sphi 0, %s101
  $region4: #{captioner_forward.46} parent=0 // loop_header_branch
    %12 = sbr.rel (%p10) target = $region8
  $region5: #{captioner_forward.46} parent=0 // loop_body
    %s14 = ssub.s32 %s9, 1
    %s15 = ssub.s32 %s9, 2
    %s16 = sadd.s32 %s9, 1
    %s17 = ssub.s32 %s9, %s16
    %p18 = scmp.eq.s32.totalorder %s17, 0
    %s20 = sadd.s32 %s19, 1
    %s21 = scalar_select %p18, %s19, %s20
    %p24 = pneg %p18
    %p25 = scmp.eq.s32.totalorder %s9, 1
    %p26 = por %p24, %p25
    %p27 = scmp.ne.s32.totalorder %s19, %s22
    %p28 = scmp.eq.s32.totalorder %s9, 0
    %p29 = por %p27, %p28
    %p30 = scmp.ne.s32.totalorder %s19, %s22
    %p31 = scmp.eq.s32.totalorder %s14, 1
    %p32 = por %p30, %p31
    %p33 = scmp.ne.s32.totalorder %s22, %s23
    %p34 = scmp.eq.s32.totalorder %s14, 0
    %p35 = por %p33, %p34
    %p36 = scmp.ne.s32.totalorder %s22, %s23
    %p37 = scmp.eq.s32.totalorder %s15, 1
    %p38 = por %p36, %p37
    %p40 = scmp.ne.s32.totalorder %s23, %s39
    %p41 = scmp.eq.s32.totalorder %s15, 0
    %p42 = por %p40, %p41
    %s43 = ssub.s32 %s9, %s16
    %p44 = scmp.eq.s32.totalorder %s43, 0
    %s46 = sadd.s32 %s45, 1
    %s47 = scalar_select %p44, %s45, %s46
    %p50 = pneg %p44
    %p51 = scmp.eq.s32.totalorder %s9, 1
    %p52 = por %p50, %p51
    %p53 = scmp.ne.s32.totalorder %s45, %s48
    %p54 = scmp.eq.s32.totalorder %s9, 0
    %p55 = por %p53, %p54
    %p56 = scmp.ne.s32.totalorder %s45, %s48
    %p57 = scmp.eq.s32.totalorder %s14, 1
    %p58 = por %p56, %p57
    %p59 = scmp.ne.s32.totalorder %s48, %s49
    %p60 = scmp.eq.s32.totalorder %s14, 0
    %p61 = por %p59, %p60
    %p62 = scmp.ne.s32.totalorder %s48, %s49
    %p63 = scmp.eq.s32.totalorder %s15, 1
    %p64 = por %p62, %p63
    %p66 = scmp.ne.s32.totalorder %s49, %s65
    %p67 = scmp.eq.s32.totalorder %s15, 0
    %p68 = por %p66, %p67
    %s69 = ssub.s32 %s9, %s16
    %p70 = scmp.eq.s32.totalorder %s69, 0
    %s72 = sadd.s32 %s71, 1
    %s73 = scalar_select %p70, %s71, %s72
    %p76 = pneg %p70
    %p77 = scmp.eq.s32.totalorder %s9, 1
    %p78 = por %p76, %p77
    %p79 = scmp.ne.s32.totalorder %s71, %s74
    %p80 = scmp.eq.s32.totalorder %s9, 0
    %p81 = por %p79, %p80
    %p82 = scmp.ne.s32.totalorder %s71, %s74
    %p83 = scmp.eq.s32.totalorder %s14, 1
    %p84 = por %p82, %p83
    %p85 = scmp.ne.s32.totalorder %s74, %s75
    %p86 = scmp.eq.s32.totalorder %s14, 0
    %p87 = por %p85, %p86
    %p88 = scmp.ne.s32.totalorder %s74, %s75
    %p89 = scmp.eq.s32.totalorder %s15, 1
    %p90 = por %p88, %p89
    %p92 = scmp.ne.s32.totalorder %s75, %s91
    %p93 = scmp.eq.s32.totalorder %s15, 0
    %p94 = por %p92, %p93
    %s95 = ssub.s32 %s9, %s16
    %p96 = scmp.eq.s32.totalorder %s95, 0
    %s98 = sadd.s32 %s97, 1
    %s99 = scalar_select %p96, %s97, %s98
    %p102 = pneg %p96
    %p103 = scmp.eq.s32.totalorder %s9, 1
    %p104 = por %p102, %p103
    %p105 = scmp.ne.s32.totalorder %s97, %s100
    %p106 = scmp.eq.s32.totalorder %s9, 0
    %p107 = por %p105, %p106
    %p108 = scmp.ne.s32.totalorder %s97, %s100
    %p109 = scmp.eq.s32.totalorder %s14, 1
    %p110 = por %p108, %p109
    %p111 = scmp.ne.s32.totalorder %s100, %s101
    %p112 = scmp.eq.s32.totalorder %s14, 0
    %p113 = por %p111, %p112
    %p114 = scmp.ne.s32.totalorder %s100, %s101
    %p115 = scmp.eq.s32.totalorder %s15, 1
    %p116 = por %p114, %p115
    %p118 = scmp.ne.s32.totalorder %s101, %s117
    %p119 = scmp.eq.s32.totalorder %s15, 0
    %p120 = por %p118, %p119
    %p121 = scmp.le.s32.totalorder 1, %s9
    %p122 = scmp.lt.s32.totalorder %s9, 3
    %p123 = pnand %p121, %p122
    %p124 = pneg %p123
    // Predicated region
    $region9: #{captioner_forward.46} parent=5 // pred_check
      _
    $region10: #{captioner_forward.46} parent=5 // pred_check_branch
      %126 = sbr.rel (%p123) target = $region12
    $region11: #{captioner_forward.46} parent=5 // pred_region
      %s127 = ssub.s32 %s9, 1
    $region12: #{captioner_forward.46} parent=5 // pred_fallthru
      _
    %p128 = scmp.lt.s32.totalorder %s9, 2
    // Predicated region
    $region13: #{captioner_forward.46} parent=5 // pred_check
      %p129 = pneg %p128
    $region14: #{captioner_forward.46} parent=5 // pred_check_branch
      %131 = sbr.rel (%p129) target = $region16
    $region15: #{captioner_forward.46} parent=5 // pred_region
      // Predicated region
      $region17: #{captioner_forward.46} parent=15 // pred_check
        %p132 = pneg %p29
      $region18: #{captioner_forward.46} parent=15 // pred_check_branch
        %134 = sbr.rel (%p132) target = $region20
      $region19: #{captioner_forward.46} parent=15 // pred_region
        %p135 = scmp.lt.s32.totalorder %s9, 1
        %s136 = scalar_select %p135, %s9, 1
        %s137 = smul.addr %s136, 4
        %s138 = smul.addr %s137, 4
        %s139 = scalar_lea.vmem %s0, %s138
      $region20: #{captioner_forward.46} parent=15 // pred_fallthru
        _
      // Predicated region
      $region21: #{captioner_forward.46} parent=15 // pred_check
        %p140 = pneg %p55
      $region22: #{captioner_forward.46} parent=15 // pred_check_branch
        %142 = sbr.rel (%p140) target = $region24
      $region23: #{captioner_forward.46} parent=15 // pred_region
        %p143 = scmp.lt.s32.totalorder %s9, 1
        %s144 = scalar_select %p143, %s9, 1
        %s145 = smul.addr %s144, 4
        %s146 = smul.addr %s145, 4
        %s147 = scalar_lea.vmem %s1, %s146
      $region24: #{captioner_forward.46} parent=15 // pred_fallthru
        _
      // Predicated region
      $region25: #{captioner_forward.46} parent=15 // pred_check
        %p148 = pneg %p81
      $region26: #{captioner_forward.46} parent=15 // pred_check_branch
        %150 = sbr.rel (%p148) target = $region28
      $region27: #{captioner_forward.46} parent=15 // pred_region
        %p151 = scmp.lt.s32.totalorder %s9, 1
        %s152 = scalar_select %p151, %s9, 1
        %s153 = smul.addr %s152, 4
        %s154 = smul.addr %s153, 4
        %s155 = scalar_lea.vmem %s2, %s154
      $region28: #{captioner_forward.46} parent=15 // pred_fallthru
        _
    $region16: #{captioner_forward.46} parent=5 // pred_fallthru
      _
    %p156 = scmp.le.s32.totalorder 1, %s9
    %p157 = scmp.lt.s32.totalorder %s9, 3
    %p158 = pnand %p156, %p157
    %p159 = pneg %p158
    // Predicated region
    $region29: #{captioner_forward.46} parent=5 // pred_check
      _
    $region30: #{captioner_forward.46} parent=5 // pred_check_branch
      %161 = sbr.rel (%p158) target = $region32
    $region31: #{captioner_forward.46} parent=5 // pred_region
      %s162 = ssub.s32 %s9, 1
      %p163 = scmp.lt.s32.totalorder %s14, 1
      %s164 = scalar_select %p163, %s14, 1
      %s165 = smul.addr %s164, 4
      %s166 = smul.addr %s165, 4
      %s167 = scalar_lea.vmem %s0, %s166
      %p168 = pneg %p35
      %p169 = pneg %p32
      %p170 = scmp.lt.s32.totalorder %s14, 1
      %s171 = scalar_select %p170, %s14, 1
      %s172 = smul.addr %s171, 4
      %s173 = smul.addr %s172, 4
      %s174 = scalar_lea.vmem %s1, %s173
      %p175 = pneg %p61
      %p176 = pneg %p58
      %p177 = scmp.lt.s32.totalorder %s14, 1
      %s178 = scalar_select %p177, %s14, 1
      %s179 = smul.addr %s178, 4
      %s180 = smul.addr %s179, 4
      %s181 = scalar_lea.vmem %s2, %s180
      %p182 = pneg %p87
      %p183 = pneg %p84
      %p184 = pneg %p113
      %p185 = pneg %p110
      %p186 = scmp.lt.s32.totalorder %s14, 1
      %s187 = scalar_select %p186, %s14, 1
      %s188 = smul.addr %s187, 4
      %s189 = smul.addr %s188, 4
      %s190 = scalar_lea.vmem %s3, %s189
      %p191 = scmp.lt.s32.totalorder %s14, 1
      %s192 = scalar_select %p191, %s14, 1
      %s193 = smul.addr %s192, 4
      %s194 = smul.addr %s193, 4
      %s195 = scalar_lea.vmem %s0, %s194
      %p196 = scmp.lt.s32.totalorder %s14, 1
      %s197 = scalar_select %p196, %s14, 1
      %s198 = smul.addr %s197, 4
      %s199 = smul.addr %s198, 4
      %s200 = scalar_lea.vmem %s1, %s199
      %p201 = scmp.lt.s32.totalorder %s14, 1
      %s202 = scalar_select %p201, %s14, 1
      %s203 = smul.addr %s202, 4
      %s204 = smul.addr %s203, 4
      %s205 = scalar_lea.vmem %s2, %s204
      %p206 = scmp.lt.s32.totalorder %s14, 1
      %s207 = scalar_select %p206, %s14, 1
      %s208 = smul.addr %s207, 4
      %s209 = smul.addr %s208, 4
      %s210 = scalar_lea.vmem %s3, %s209
      %v212 = vld [vmem:[%s195] sm:$0xf]
      %v213 = vld [vmem:[%s195 + $0x4] sm:$0xf]
      %v214 = vld [vmem:[%s195 + $0x8] sm:$0xf]
      %v215 = vld [vmem:[%s195 + $0xc] sm:$0xf]
      %v216 = vld [vmem:[%s200] sm:$0x7]
      %v217 = vld [vmem:[%s200 + $0x4] sm:$0x7]
      %v218 = vld [vmem:[%s200 + $0x8] sm:$0x7]
      %v219 = vld [vmem:[%s200 + $0xc] sm:$0x7]
      %v220 = vld [vmem:[%s205] sm:$0x7]
      %v221 = vld [vmem:[%s205 + $0x4] sm:$0x7]
      %v222 = vld [vmem:[%s205 + $0x8] sm:$0x7]
      %v223 = vld [vmem:[%s205 + $0xc] sm:$0x7]
      %vm224 = vcmask 64512
      %v226 = vsel %vm224, %v212, 0
      %v229 = vsel %vm224, %v216, 0
      %231 = vmatprep.subr.bf16.mxu0 0
      %232 = vmatpush1.bf16.xpose.msra.mxu0 0
      %233 = vmatprep.subr.bf16.mxu0 0
      %234 = vmatpush1.bf16.xpose.msra.mxu0 0
      %235 = vmatprep.subr.bf16.mxu0 0
      %236 = vmatpush1.bf16.xpose.msra.mxu0 0
      %237 = vmatprep.subr.bf16.mxu0 0
      %238 = vmatpush1.bf16.xpose.msra.mxu0 0
      %239 = vmatprep.subr.bf16.mxu0 0
      %240 = vmatpush1.bf16.xpose.msra.mxu0 0
      %241 = vmatprep.subr.bf16.mxu0 0
      %242 = vmatpush1.bf16.xpose.msra.mxu0 0
      %243 = vmatprep.subr.bf16.mxu0 0
      %244 = vmatpush1.bf16.xpose.msra.mxu0 0
      %245 = vmatprep.subr.bf16.mxu0 0
      %246 = vmatpush1.bf16.xpose.msra.mxu0 %v229
      %247 = vmatprep.subr.bf16.mxu0 0
      %248 = vmatpush2.bf16.xpose.msra.mxu0 0
      %249 = vmatprep.subr.bf16.mxu0 0
      %250 = vmatpush2.bf16.xpose.msra.mxu0 0
      %251 = vmatprep.subr.bf16.mxu0 0
      %252 = vmatpush2.bf16.xpose.msra.mxu0 0
      %253 = vmatprep.subr.bf16.mxu0 0
      %254 = vmatpush2.bf16.xpose.msra.mxu0 0
      %255 = vmatprep.subr.bf16.mxu0 0
      %256 = vmatpush2.bf16.xpose.msra.mxu0 0
      %257 = vmatprep.subr.bf16.mxu0 0
      %258 = vmatpush2.bf16.xpose.msra.mxu0 0
      %259 = vmatprep.subr.bf16.mxu0 0
      %260 = vmatpush2.bf16.xpose.msra.mxu0 0
      %261 = vmatprep.subr.bf16.mxu0 0
      %262 = vmatpush2.bf16.xpose.msra.mxu0 0
      %263 = vmatprep.mubr.bf16.mxu0 0
      %264 = vmatmul.mubr.bf16.gmra.mxu0 %v226
      %v265 = vpop.f32.mrf.mxu0
      %v266 = vadd.f32 0.0, %v265
      %v267 = vpop.f32.mrf.mxu0
      %v268 = vpop.f32.mrf.mxu0
      %v269 = vpop.f32.mrf.mxu0
      %270 = vdwg.mxu0
      %v272 = vsel %vm224, %v213, 0
      %v275 = vsel %vm224, %v217, 0
      %277 = vmatprep.subr.bf16.mxu0 0
      %278 = vmatpush1.bf16.xpose.msra.mxu0 0
      %279 = vmatprep.subr.bf16.mxu0 0
      %280 = vmatpush1.bf16.xpose.msra.mxu0 0
      %281 = vmatprep.subr.bf16.mxu0 0
      %282 = vmatpush1.bf16.xpose.msra.mxu0 0
      %283 = vmatprep.subr.bf16.mxu0 0
      %284 = vmatpush1.bf16.xpose.msra.mxu0 0
      %285 = vmatprep.subr.bf16.mxu0 0
      %286 = vmatpush1.bf16.xpose.msra.mxu0 0
      %287 = vmatprep.subr.bf16.mxu0 0
      %288 = vmatpush1.bf16.xpose.msra.mxu0 0
      %289 = vmatprep.subr.bf16.mxu0 0
      %290 = vmatpush1.bf16.xpose.msra.mxu0 0
      %291 = vmatprep.subr.bf16.mxu0 0
      %292 = vmatpush1.bf16.xpose.msra.mxu0 %v275
      %293 = vmatprep.subr.bf16.mxu0 0
      %294 = vmatpush2.bf16.xpose.msra.mxu0 0
      %295 = vmatprep.subr.bf16.mxu0 0
      %296 = vmatpush2.bf16.xpose.msra.mxu0 0
      %297 = vmatprep.subr.bf16.mxu0 0
      %298 = vmatpush2.bf16.xpose.msra.mxu0 0
      %299 = vmatprep.subr.bf16.mxu0 0
      %300 = vmatpush2.bf16.xpose.msra.mxu0 0
      %301 = vmatprep.subr.bf16.mxu0 0
      %302 = vmatpush2.bf16.xpose.msra.mxu0 0
      %303 = vmatprep.subr.bf16.mxu0 0
      %304 = vmatpush2.bf16.xpose.msra.mxu0 0
      %305 = vmatprep.subr.bf16.mxu0 0
      %306 = vmatpush2.bf16.xpose.msra.mxu0 0
      %307 = vmatprep.subr.bf16.mxu0 0
      %308 = vmatpush2.bf16.xpose.msra.mxu0 0
      %309 = vmatprep.mubr.bf16.mxu0 0
      %310 = vmatmul.mubr.bf16.gmra.mxu0 %v272
      %v311 = vpop.f32.mrf.mxu0
      %v312 = vadd.f32 0.0, %v311
      %v313 = vpop.f32.mrf.mxu0
      %v314 = vpop.f32.mrf.mxu0
      %v315 = vpop.f32.mrf.mxu0
      %316 = vdwg.mxu0
      %v318 = vsel %vm224, %v214, 0
      %v321 = vsel %vm224, %v218, 0
      %323 = vmatprep.subr.bf16.mxu0 0
      %324 = vmatpush1.bf16.xpose.msra.mxu0 0
      %325 = vmatprep.subr.bf16.mxu0 0
      %326 = vmatpush1.bf16.xpose.msra.mxu0 0
      %327 = vmatprep.subr.bf16.mxu0 0
      %328 = vmatpush1.bf16.xpose.msra.mxu0 0
      %329 = vmatprep.subr.bf16.mxu0 0
      %330 = vmatpush1.bf16.xpose.msra.mxu0 0
      %331 = vmatprep.subr.bf16.mxu0 0
      %332 = vmatpush1.bf16.xpose.msra.mxu0 0
      %333 = vmatprep.subr.bf16.mxu0 0
      %334 = vmatpush1.bf16.xpose.msra.mxu0 0
      %335 = vmatprep.subr.bf16.mxu0 0
      %336 = vmatpush1.bf16.xpose.msra.mxu0 0
      %337 = vmatprep.subr.bf16.mxu0 0
      %338 = vmatpush1.bf16.xpose.msra.mxu0 %v321
      %339 = vmatprep.subr.bf16.mxu0 0
      %340 = vmatpush2.bf16.xpose.msra.mxu0 0
      %341 = vmatprep.subr.bf16.mxu0 0
      %342 = vmatpush2.bf16.xpose.msra.mxu0 0
      %343 = vmatprep.subr.bf16.mxu0 0
      %344 = vmatpush2.bf16.xpose.msra.mxu0 0
      %345 = vmatprep.subr.bf16.mxu0 0
      %346 = vmatpush2.bf16.xpose.msra.mxu0 0
      %347 = vmatprep.subr.bf16.mxu0 0
      %348 = vmatpush2.bf16.xpose.msra.mxu0 0
      %349 = vmatprep.subr.bf16.mxu0 0
      %350 = vmatpush2.bf16.xpose.msra.mxu0 0
      %351 = vmatprep.subr.bf16.mxu0 0
      %352 = vmatpush2.bf16.xpose.msra.mxu0 0
      %353 = vmatprep.subr.bf16.mxu0 0
      %354 = vmatpush2.bf16.xpose.msra.mxu0 0
      %355 = vmatprep.mubr.bf16.mxu0 0
      %356 = vmatmul.mubr.bf16.gmra.mxu0 %v318
      %v357 = vpop.f32.mrf.mxu0
      %v358 = vadd.f32 0.0, %v357
      %v359 = vpop.f32.mrf.mxu0
      %v360 = vpop.f32.mrf.mxu0
      %v361 = vpop.f32.mrf.mxu0
      %362 = vdwg.mxu0
      %v364 = vsel %vm224, %v215, 0
      %v367 = vsel %vm224, %v219, 0
      %369 = vmatprep.subr.bf16.mxu0 0
      %370 = vmatpush1.bf16.xpose.msra.mxu0 0
      %371 = vmatprep.subr.bf16.mxu0 0
      %372 = vmatpush1.bf16.xpose.msra.mxu0 0
      %373 = vmatprep.subr.bf16.mxu0 0
      %374 = vmatpush1.bf16.xpose.msra.mxu0 0
      %375 = vmatprep.subr.bf16.mxu0 0
      %376 = vmatpush1.bf16.xpose.msra.mxu0 0
      %377 = vmatprep.subr.bf16.mxu0 0
      %378 = vmatpush1.bf16.xpose.msra.mxu0 0
      %379 = vmatprep.subr.bf16.mxu0 0
      %380 = vmatpush1.bf16.xpose.msra.mxu0 0
      %381 = vmatprep.subr.bf16.mxu0 0
      %382 = vmatpush1.bf16.xpose.msra.mxu0 0
      %383 = vmatprep.subr.bf16.mxu0 0
      %384 = vmatpush1.bf16.xpose.msra.mxu0 %v367
      %385 = vmatprep.subr.bf16.mxu0 0
      %386 = vmatpush2.bf16.xpose.msra.mxu0 0
      %387 = vmatprep.subr.bf16.mxu0 0
      %388 = vmatpush2.bf16.xpose.msra.mxu0 0
      %389 = vmatprep.subr.bf16.mxu0 0
      %390 = vmatpush2.bf16.xpose.msra.mxu0 0
      %391 = vmatprep.subr.bf16.mxu0 0
      %392 = vmatpush2.bf16.xpose.msra.mxu0 0
      %393 = vmatprep.subr.bf16.mxu0 0
      %394 = vmatpush2.bf16.xpose.msra.mxu0 0
      %395 = vmatprep.subr.bf16.mxu0 0
      %396 = vmatpush2.bf16.xpose.msra.mxu0 0
      %397 = vmatprep.subr.bf16.mxu0 0
      %398 = vmatpush2.bf16.xpose.msra.mxu0 0
      %399 = vmatprep.subr.bf16.mxu0 0
      %400 = vmatpush2.bf16.xpose.msra.mxu0 0
      %401 = vmatprep.mubr.bf16.mxu0 0
      %402 = vmatmul.mubr.bf16.gmra.mxu0 %v364
      %v403 = vpop.f32.mrf.mxu0
      %v404 = vadd.f32 0.0, %v403
      %v405 = vpop.f32.mrf.mxu0
      %v406 = vpop.f32.mrf.mxu0
      %v407 = vpop.f32.mrf.mxu0
      %408 = vdwg.mxu0
      %v409 = vmul.f32 %v266, 0.35355338
      %v410 = vmul.f32 %v312, 0.35355338
      %v411 = vmul.f32 %v358, 0.35355338
      %v412 = vmul.f32 %v404, 0.35355338
      %vm413 = vcmask 39936
      %v414 = vsel %vm413, %v409, -inf
      %415 = vmax.xlane.f32.xlu0 %v414
      %v416 = vpop.xlane.xlu0 %415
      %v417 = vsel %vm413, %v410, -inf
      %418 = vmax.xlane.f32.xlu0 %v417
      %v419 = vpop.xlane.xlu0 %418
      %v420 = vsel %vm413, %v411, -inf
      %421 = vmax.xlane.f32.xlu0 %v420
      %v422 = vpop.xlane.xlu0 %421
      %v423 = vsel %vm413, %v412, -inf
      %424 = vmax.xlane.f32.xlu0 %v423
      %v425 = vpop.xlane.xlu0 %424
      %v426 = vsub.f32 %v409, %v416
      %v427 = vsub.f32 %v410, %v419
      %v428 = vsub.f32 %v411, %v422
      %v429 = vsub.f32 %v412, %v425
      %v430 = vmul.f32 %v426, 1.442695
      %v431 = vpow.pop %v430
      %v432 = vmul.f32 %v427, 1.442695
      %v433 = vpow.pop %v432
      %v434 = vmul.f32 %v428, 1.442695
      %v435 = vpow.pop %v434
      %v436 = vmul.f32 %v429, 1.442695
      %v437 = vpow.pop %v436
      %v438 = vsel %vm413, %v431, 0.0
      %439 = vadd.xlane.f32.xlu0 %v438
      %v440 = vpop.xlane.xlu0 %439
      %v441 = vsel %vm413, %v433, 0.0
      %442 = vadd.xlane.f32.xlu0 %v441
      %v443 = vpop.xlane.xlu0 %442
      %v444 = vsel %vm413, %v435, 0.0
      %445 = vadd.xlane.f32.xlu0 %v444
      %v446 = vpop.xlane.xlu0 %445
      %v447 = vsel %vm413, %v437, 0.0
      %448 = vadd.xlane.f32.xlu0 %v447
      %v449 = vpop.xlane.xlu0 %448
      %v450 = vpack.c.bf16 %v431, %v431
      %v451 = vpack.c.bf16 %v433, %v433
      %v452 = vpack.c.bf16 %v435, %v435
      %v453 = vpack.c.bf16 %v437, %v437
      %v455 = vsel %vm413, %v450, 0
      %vm457 = vcmask 1041408
      %vm458 = vcmask 1042432
      %v459 = vsel %vm457, 4294967295, 65535
      %v460 = vsel %vm458, %v459, 0
      %v462 = vand.u32 %v220, %v460
      %464 = vmatprep.subr.bf16.mxu0 0
      %465 = vmatpush1.bf16.msra.mxu0 0
      %466 = vmatprep.subr.bf16.mxu0 0
      %467 = vmatpush1.bf16.msra.mxu0 0
      %468 = vmatprep.subr.bf16.mxu0 0
      %469 = vmatpush1.bf16.msra.mxu0 0
      %470 = vmatprep.subr.bf16.mxu0 0
      %471 = vmatpush1.bf16.msra.mxu0 0
      %472 = vmatprep.subr.bf16.mxu0 0
      %473 = vmatpush1.bf16.msra.mxu0 0
      %474 = vmatprep.subr.bf16.mxu0 0
      %475 = vmatpush1.bf16.msra.mxu0 0
      %476 = vmatprep.subr.bf16.mxu0 0
      %477 = vmatpush1.bf16.msra.mxu0 0
      %478 = vmatprep.subr.bf16.mxu0 0
      %479 = vmatpush1.bf16.msra.mxu0 %v462
      %480 = vmatprep.subr.bf16.mxu0 0
      %481 = vmatpush2.bf16.msra.mxu0 0
      %482 = vmatprep.subr.bf16.mxu0 0
      %483 = vmatpush2.bf16.msra.mxu0 0
      %484 = vmatprep.subr.bf16.mxu0 0
      %485 = vmatpush2.bf16.msra.mxu0 0
      %486 = vmatprep.subr.bf16.mxu0 0
      %487 = vmatpush2.bf16.msra.mxu0 0
      %488 = vmatprep.subr.bf16.mxu0 0
      %489 = vmatpush2.bf16.msra.mxu0 0
      %490 = vmatprep.subr.bf16.mxu0 0
      %491 = vmatpush2.bf16.msra.mxu0 0
      %492 = vmatprep.subr.bf16.mxu0 0
      %493 = vmatpush2.bf16.msra.mxu0 0
      %494 = vmatprep.subr.bf16.mxu0 0
      %495 = vmatpush2.bf16.msra.mxu0 0
      %496 = vmatprep.mubr.bf16.mxu0 0
      %497 = vmatmul.mubr.bf16.gmra.mxu0 %v455
      %v498 = vpop.f32.mrf.mxu0
      %v499 = vadd.f32 0.0, %v498
      %v500 = vpop.f32.mrf.mxu0
      %v501 = vpop.f32.mrf.mxu0
      %v502 = vpop.f32.mrf.mxu0
      %503 = vdwg.mxu0
      %v505 = vsel %vm413, %v451, 0
      %v508 = vand.u32 %v221, %v460
      %510 = vmatprep.subr.bf16.mxu0 0
      %511 = vmatpush1.bf16.msra.mxu0 0
      %512 = vmatprep.subr.bf16.mxu0 0
      %513 = vmatpush1.bf16.msra.mxu0 0
      %514 = vmatprep.subr.bf16.mxu0 0
      %515 = vmatpush1.bf16.msra.mxu0 0
      %516 = vmatprep.subr.bf16.mxu0 0
      %517 = vmatpush1.bf16.msra.mxu0 0
      %518 = vmatprep.subr.bf16.mxu0 0
      %519 = vmatpush1.bf16.msra.mxu0 0
      %520 = vmatprep.subr.bf16.mxu0 0
      %521 = vmatpush1.bf16.msra.mxu0 0
      %522 = vmatprep.subr.bf16.mxu0 0
      %523 = vmatpush1.bf16.msra.mxu0 0
      %524 = vmatprep.subr.bf16.mxu0 0
      %525 = vmatpush1.bf16.msra.mxu0 %v508
      %526 = vmatprep.subr.bf16.mxu0 0
      %527 = vmatpush2.bf16.msra.mxu0 0
      %528 = vmatprep.subr.bf16.mxu0 0
      %529 = vmatpush2.bf16.msra.mxu0 0
      %530 = vmatprep.subr.bf16.mxu0 0
      %531 = vmatpush2.bf16.msra.mxu0 0
      %532 = vmatprep.subr.bf16.mxu0 0
      %533 = vmatpush2.bf16.msra.mxu0 0
      %534 = vmatprep.subr.bf16.mxu0 0
      %535 = vmatpush2.bf16.msra.mxu0 0
      %536 = vmatprep.subr.bf16.mxu0 0
      %537 = vmatpush2.bf16.msra.mxu0 0
      %538 = vmatprep.subr.bf16.mxu0 0
      %539 = vmatpush2.bf16.msra.mxu0 0
      %540 = vmatprep.subr.bf16.mxu0 0
      %541 = vmatpush2.bf16.msra.mxu0 0
      %542 = vmatprep.mubr.bf16.mxu0 0
      %543 = vmatmul.mubr.bf16.gmra.mxu0 %v505
      %v544 = vpop.f32.mrf.mxu0
      %v545 = vadd.f32 0.0, %v544
      %v546 = vpop.f32.mrf.mxu0
      %v547 = vpop.f32.mrf.mxu0
      %v548 = vpop.f32.mrf.mxu0
      %549 = vdwg.mxu0
      %v551 = vsel %vm413, %v452, 0
      %v554 = vand.u32 %v222, %v460
      %556 = vmatprep.subr.bf16.mxu0 0
      %557 = vmatpush1.bf16.msra.mxu0 0
      %558 = vmatprep.subr.bf16.mxu0 0
      %559 = vmatpush1.bf16.msra.mxu0 0
      %560 = vmatprep.subr.bf16.mxu0 0
      %561 = vmatpush1.bf16.msra.mxu0 0
      %562 = vmatprep.subr.bf16.mxu0 0
      %563 = vmatpush1.bf16.msra.mxu0 0
      %564 = vmatprep.subr.bf16.mxu0 0
      %565 = vmatpush1.bf16.msra.mxu0 0
      %566 = vmatprep.subr.bf16.mxu0 0
      %567 = vmatpush1.bf16.msra.mxu0 0
      %568 = vmatprep.subr.bf16.mxu0 0
      %569 = vmatpush1.bf16.msra.mxu0 0
      %570 = vmatprep.subr.bf16.mxu0 0
      %571 = vmatpush1.bf16.msra.mxu0 %v554
      %572 = vmatprep.subr.bf16.mxu0 0
      %573 = vmatpush2.bf16.msra.mxu0 0
      %574 = vmatprep.subr.bf16.mxu0 0
      %575 = vmatpush2.bf16.msra.mxu0 0
      %576 = vmatprep.subr.bf16.mxu0 0
      %577 = vmatpush2.bf16.msra.mxu0 0
      %578 = vmatprep.subr.bf16.mxu0 0
      %579 = vmatpush2.bf16.msra.mxu0 0
      %580 = vmatprep.subr.bf16.mxu0 0
      %581 = vmatpush2.bf16.msra.mxu0 0
      %582 = vmatprep.subr.bf16.mxu0 0
      %583 = vmatpush2.bf16.msra.mxu0 0
      %584 = vmatprep.subr.bf16.mxu0 0
      %585 = vmatpush2.bf16.msra.mxu0 0
      %586 = vmatprep.subr.bf16.mxu0 0
      %587 = vmatpush2.bf16.msra.mxu0 0
      %588 = vmatprep.mubr.bf16.mxu0 0
      %589 = vmatmul.mubr.bf16.gmra.mxu0 %v551
      %v590 = vpop.f32.mrf.mxu0
      %v591 = vadd.f32 0.0, %v590
      %v592 = vpop.f32.mrf.mxu0
      %v593 = vpop.f32.mrf.mxu0
      %v594 = vpop.f32.mrf.mxu0
      %595 = vdwg.mxu0
      %v597 = vsel %vm413, %v453, 0
      %v600 = vand.u32 %v223, %v460
      %602 = vmatprep.subr.bf16.mxu0 0
      %603 = vmatpush1.bf16.msra.mxu0 0
      %604 = vmatprep.subr.bf16.mxu0 0
      %605 = vmatpush1.bf16.msra.mxu0 0
      %606 = vmatprep.subr.bf16.mxu0 0
      %607 = vmatpush1.bf16.msra.mxu0 0
      %608 = vmatprep.subr.bf16.mxu0 0
      %609 = vmatpush1.bf16.msra.mxu0 0
      %610 = vmatprep.subr.bf16.mxu0 0
      %611 = vmatpush1.bf16.msra.mxu0 0
      %612 = vmatprep.subr.bf16.mxu0 0
      %613 = vmatpush1.bf16.msra.mxu0 0
      %614 = vmatprep.subr.bf16.mxu0 0
      %615 = vmatpush1.bf16.msra.mxu0 0
      %616 = vmatprep.subr.bf16.mxu0 0
      %617 = vmatpush1.bf16.msra.mxu0 %v600
      %618 = vmatprep.subr.bf16.mxu0 0
      %619 = vmatpush2.bf16.msra.mxu0 0
      %620 = vmatprep.subr.bf16.mxu0 0
      %621 = vmatpush2.bf16.msra.mxu0 0
      %622 = vmatprep.subr.bf16.mxu0 0
      %623 = vmatpush2.bf16.msra.mxu0 0
      %624 = vmatprep.subr.bf16.mxu0 0
      %625 = vmatpush2.bf16.msra.mxu0 0
      %626 = vmatprep.subr.bf16.mxu0 0
      %627 = vmatpush2.bf16.msra.mxu0 0
      %628 = vmatprep.subr.bf16.mxu0 0
      %629 = vmatpush2.bf16.msra.mxu0 0
      %630 = vmatprep.subr.bf16.mxu0 0
      %631 = vmatpush2.bf16.msra.mxu0 0
      %632 = vmatprep.subr.bf16.mxu0 0
      %633 = vmatpush2.bf16.msra.mxu0 0
      %634 = vmatprep.mubr.bf16.mxu0 0
      %635 = vmatmul.mubr.bf16.gmra.mxu0 %v597
      %v636 = vpop.f32.mrf.mxu0
      %v637 = vadd.f32 0.0, %v636
      %v638 = vpop.f32.mrf.mxu0
      %v639 = vpop.f32.mrf.mxu0
      %v640 = vpop.f32.mrf.mxu0
      %641 = vdwg.mxu0
      %v642 = vrcp.pop %v440
      %v643 = vrcp.pop %v443
      %v644 = vrcp.pop %v446
      %v645 = vrcp.pop %v449
      %v646 = vmul.f32 %v499, %v642
      %v647 = vmul.f32 %v545, %v643
      %v648 = vmul.f32 %v591, %v644
      %v649 = vmul.f32 %v637, %v645
      %v650 = vpack.c.bf16 %v646, %v646
      %v651 = vpack.c.bf16 %v647, %v647
      %v652 = vpack.c.bf16 %v648, %v648
      %v653 = vpack.c.bf16 %v649, %v649
      %vm654 = vcmask 60416
      %655 = vst.msk [vmem:[%s210] sm:$0xf] %vm654, %v650
      %656 = vst.msk [vmem:[%s210 + $0x4] sm:$0xf] %vm654, %v651
      %657 = vst.msk [vmem:[%s210 + $0x8] sm:$0xf] %vm654, %v652
      %658 = vst.msk [vmem:[%s210 + $0xc] sm:$0xf] %vm654, %v653
      %p659 = scmp.lt.s32.totalorder %s14, 1
      %s660 = scalar_select %p659, %s14, 1
      %s661 = smul.addr %s660, 4
      %s662 = smul.addr %s661, 4
      %s663 = scalar_lea.vmem %s3, %s662
      // Predicated region
      $region33: #{captioner_forward.46} parent=31 // pred_check
        %p664 = pneg %p110
      $region34: #{captioner_forward.46} parent=31 // pred_check_branch
        %666 = sbr.rel (%p664) target = $region36
      $region35: #{captioner_forward.46} parent=31 // pred_region
        _
      $region36: #{captioner_forward.46} parent=31 // pred_fallthru
        _
    $region32: #{captioner_forward.46} parent=5 // pred_fallthru
      _
    %p667 = scmp.le.s32.totalorder 2, %s9
    // Predicated region
    $region37: #{captioner_forward.46} parent=5 // pred_check
      %p668 = pneg %p667
    $region38: #{captioner_forward.46} parent=5 // pred_check_branch
      %670 = sbr.rel (%p668) target = $region40
    $region39: #{captioner_forward.46} parent=5 // pred_region
      %s671 = ssub.s32 %s9, 2
      // Predicated region
      $region41: #{captioner_forward.46} parent=39 // pred_check
        %p672 = pneg %p116
      $region42: #{captioner_forward.46} parent=39 // pred_check_branch
        %674 = sbr.rel (%p672) target = $region44
      $region43: #{captioner_forward.46} parent=39 // pred_region
        %p675 = scmp.lt.s32.totalorder %s15, 1
        %s676 = scalar_select %p675, %s15, 1
        %s677 = smul.addr %s676, 4
        %s678 = smul.addr %s677, 4
        %s679 = scalar_lea.vmem %s3, %s678
      $region44: #{captioner_forward.46} parent=39 // pred_fallthru
        _
    $region40: #{captioner_forward.46} parent=5 // pred_fallthru
      _
  $region6: #{captioner_forward.46} parent=0 // loop_footer
    %s13 = sadd.s32 1, %s9
  $region7: #{captioner_forward.46} parent=0 // loop_footer_branch
    %8 = sbr.rel target = $region3
  $region8: #{captioner_forward.46} parent=0 // loop_exit
    _

// kernel: captioner_forward.49
$region0: #{captioner_forward.49}
  #allocation0 [shape = 'u32[]', space=smem, size = 0x4, offset = 0x4, fixed_abs, tag = 'smem constant byte address 0x4 - core index']
  #allocation1 [shape = 'u32[144,128]{1,0:T(1,128)}', space=vmem, size = 0x12000, scoped, tag = 'internal scratch']
  #allocation2 [shape = 'f32[16,32]{1,0:T(8,128)}', space=vmem, size = 0x2000, scoped, tag = 'scratch operand']
  %s0 = inlined_call_operand.vmem [shape: bf16[16,128], index: 0, kind: input, shape index: {}]
  %s1 = inlined_call_operand.vmem [shape: bf16[128,32], index: 1, kind: input, shape index: {}]
  %s2 = inlined_call_operand.vmem [shape: f32[1,32], index: 2, kind: input, shape index: {}]
  %s3 = inlined_call_operand.vmem [shape: bf16[16,32], index: 3, kind: input, shape index: {}]
  %s4 = inlined_call_operand.vmem [shape: f32[1,32], index: 4, kind: input, shape index: {}]
  %s5 = inlined_call_operand.vmem [shape: f32[1,32], index: 5, kind: input, shape index: {}]
  %s6 = inlined_call_operand.vmem [shape: bf16[16,32], index: 6, kind: output, shape index: {}]
  %s7 = sld [smem:[#allocation0]]
  $region42: #{captioner_forward.49} parent=0
    _
  %s9 = ssub.s32 1, %s7
  %s10 = scalar_select 0, %s9, %s7
  // Predicated region
  $region2: #{captioner_forward.49} parent=0 // pred_check
    _
  $region3: #{captioner_forward.49} parent=0 // pred_check_branch
    %12 = sbr.rel (0) target = $region5
  $region4: #{captioner_forward.49} parent=0 // pred_region
    _
  $region5: #{captioner_forward.49} parent=0 // pred_fallthru
    _
  // Predicated region
  $region6: #{captioner_forward.49} parent=0 // pred_check
    _
  $region7: #{captioner_forward.49} parent=0 // pred_check_branch
    %14 = sbr.rel (0) target = $region9
  $region8: #{captioner_forward.49} parent=0 // pred_region
    _
  $region9: #{captioner_forward.49} parent=0 // pred_fallthru
    _
  // Predicated region
  $region10: #{captioner_forward.49} parent=0 // pred_check
    _
  $region11: #{captioner_forward.49} parent=0 // pred_check_branch
    %16 = sbr.rel (0) target = $region13
  $region12: #{captioner_forward.49} parent=0 // pred_region
    _
  $region13: #{captioner_forward.49} parent=0 // pred_fallthru
    _
  // Predicated region
  $region14: #{captioner_forward.49} parent=0 // pred_check
    _
  $region15: #{captioner_forward.49} parent=0 // pred_check_branch
    %18 = sbr.rel (0) target = $region17
  $region16: #{captioner_forward.49} parent=0 // pred_region
    _
  $region17: #{captioner_forward.49} parent=0 // pred_fallthru
    _
  // Predicated region
  $region18: #{captioner_forward.49} parent=0 // pred_check
    _
  $region19: #{captioner_forward.49} parent=0 // pred_check_branch
    %20 = sbr.rel (0) target = $region21
  $region20: #{captioner_forward.49} parent=0 // pred_region
    _
  $region21: #{captioner_forward.49} parent=0 // pred_fallthru
    _
  // Predicated region
  $region22: #{captioner_forward.49} parent=0 // pred_check
    _
  $region23: #{captioner_forward.49} parent=0 // pred_check_branch
    %22 = sbr.rel (0) target = $region25
  $region24: #{captioner_forward.49} parent=0 // pred_region
    _
  $region25: #{captioner_forward.49} parent=0 // pred_fallthru
    _
  %p24 = scmp.eq.s32.totalorder 0, 0
  // Predicated region
  $region26: #{captioner_forward.49} parent=0 // pred_check
    %p25 = pneg %p24
  $region27: #{captioner_forward.49} parent=0 // pred_check_branch
    %27 = sbr.rel (%p25) target = $region29
  $region28: #{captioner_forward.49} parent=0 // pred_region
    %vm28 = vcmask 261120
    %29 = vst.msk [vmem:[#allocation2] sm:$0xff] %vm28, 0.0
    %30 = vst.msk [vmem:[#allocation2 + $0x8] sm:$0xff] %vm28, 0.0
  $region29: #{captioner_forward.49} parent=0 // pred_fallthru
    _
  %v31 = vld [vmem:[#allocation2] sm:$0xff]
  %v32 = vld [vmem:[#allocation2 + $0x8] sm:$0xff]
  %v33 = vld [vmem:[%s0] sm:$0xf]
  %v34 = vld [vmem:[%s0 + $0x4] sm:$0xf]
  %v35 = vld [vmem:[%s1] sm:$0xf]
  %v36 = vld [vmem:[%s1 + $0x4] sm:$0xf]
  %v37 = vld [vmem:[%s1 + $0x8] sm:$0xf]
  %v38 = vld [vmem:[%s1 + $0xc] sm:$0xf]
  %v39 = vld [vmem:[%s1 + $0x10] sm:$0xf]
  %v40 = vld [vmem:[%s1 + $0x14] sm:$0xf]
  %v41 = vld [vmem:[%s1 + $0x18] sm:$0xf]
  %v42 = vld [vmem:[%s1 + $0x1c] sm:$0xf]
  %v43 = vld [vmem:[%s1 + $0x20] sm:$0xf]
  %v44 = vld [vmem:[%s1 + $0x24] sm:$0xf]
  %v45 = vld [vmem:[%s1 + $0x28] sm:$0xf]
  %v46 = vld [vmem:[%s1 + $0x2c] sm:$0xf]
  %v47 = vld [vmem:[%s1 + $0x30] sm:$0xf]
  %v48 = vld [vmem:[%s1 + $0x34] sm:$0xf]
  %v49 = vld [vmem:[%s1 + $0x38] sm:$0xf]
  %v50 = vld [vmem:[%s1 + $0x3c] sm:$0xf]
  %v53 = vunpack.c.l.b16 %v33
  %v54 = vunpack.c.l.b16 %v34
  %v55 = vpack.c.b16 %v54, %v53
  %v73 = vunpack.c.l.b16 %v35
  %v74 = vunpack.c.l.b16 %v36
  %v75 = vunpack.c.l.b16 %v37
  %v76 = vunpack.c.l.b16 %v38
  %v77 = vunpack.c.l.b16 %v39
  %v78 = vunpack.c.l.b16 %v40
  %v79 = vunpack.c.l.b16 %v41
  %v80 = vunpack.c.l.b16 %v42
  %v81 = vunpack.c.l.b16 %v43
  %v82 = vunpack.c.l.b16 %v44
  %v83 = vunpack.c.l.b16 %v45
  %v84 = vunpack.c.l.b16 %v46
  %v85 = vunpack.c.l.b16 %v47
  %v86 = vunpack.c.l.b16 %v48
  %v87 = vunpack.c.l.b16 %v49
  %v88 = vunpack.c.l.b16 %v50
  %v89 = vpack.c.b16 %v74, %v73
  %v90 = vpack.c.b16 %v76, %v75
  %v91 = vpack.c.b16 %v78, %v77
  %v92 = vpack.c.b16 %v80, %v79
  %v93 = vpack.c.b16 %v82, %v81
  %v94 = vpack.c.b16 %v84, %v83
  %v95 = vpack.c.b16 %v86, %v85
  %v96 = vpack.c.b16 %v88, %v87
  %105 = vmatprep.subr.bf16.mxu0 0
  %106 = vmatpush1.bf16.msra.mxu0 %v96
  %107 = vmatprep.subr.bf16.mxu0 0
  %108 = vmatpush1.bf16.msra.mxu0 %v95
  %109 = vmatprep.subr.bf16.mxu0 0
  %110 = vmatpush1.bf16.msra.mxu0 %v94
  %111 = vmatprep.subr.bf16.mxu0 0
  %112 = vmatpush1.bf16.msra.mxu0 %v93
  %113 = vmatprep.subr.bf16.mxu0 0
  %114 = vmatpush1.bf16.msra.mxu0 %v92
  %115 = vmatprep.subr.bf16.mxu0 0
  %116 = vmatpush1.bf16.msra.mxu0 %v91
  %117 = vmatprep.subr.bf16.mxu0 0
  %118 = vmatpush1.bf16.msra.mxu0 %v90
  %119 = vmatprep.subr.bf16.mxu0 0
  %120 = vmatpush1.bf16.msra.mxu0 %v89
  %121 = vmatprep.subr.bf16.mxu0 0
  %122 = vmatpush2.bf16.msra.mxu0 0
  %123 = vmatprep.subr.bf16.mxu0 0
  %124 = vmatpush2.bf16.msra.mxu0 0
  %125 = vmatprep.subr.bf16.mxu0 0
  %126 = vmatpush2.bf16.msra.mxu0 0
  %127 = vmatprep.subr.bf16.mxu0 0
  %128 = vmatpush2.bf16.msra.mxu0 0
  %129 = vmatprep.subr.bf16.mxu0 0
  %130 = vmatpush2.bf16.msra.mxu0 0
  %131 = vmatprep.subr.bf16.mxu0 0
  %132 = vmatpush2.bf16.msra.mxu0 0
  %133 = vmatprep.subr.bf16.mxu0 0
  %134 = vmatpush2.bf16.msra.mxu0 0
  %135 = vmatprep.subr.bf16.mxu0 0
  %136 = vmatpush2.bf16.msra.mxu0 0
  %137 = vmatprep.mubr.bf16.mxu0 0
  %138 = vmatmul.mubr.bf16.gmra.mxu0 %v55
  %v139 = vpop.f32.mrf.mxu0
  %v140 = vadd.f32 0.0, %v139
  %v141 = vpop.f32.mrf.mxu0
  %v142 = vpop.f32.mrf.mxu0
  %v143 = vadd.f32 0.0, %v142
  %v144 = vpop.f32.mrf.mxu0
  %145 = vdwg.mxu0
  %v146 = vadd.f32 %v31, %v140
  %v147 = vadd.f32 %v32, %v143
  %vm148 = vcmask 261120
  %149 = vst.msk [vmem:[#allocation2] sm:$0xff] %vm148, %v146
  %150 = vst.msk [vmem:[#allocation2 + $0x8] sm:$0xff] %vm148, %v147
  // Predicated region
  $region30: #{captioner_forward.49} parent=0 // pred_check
    %p151 = pneg %p24
  $region31: #{captioner_forward.49} parent=0 // pred_check_branch
    %153 = sbr.rel (%p151) target = $region33
  $region32: #{captioner_forward.49} parent=0 // pred_region
    %v154 = vld [vmem:[#allocation2] sm:$0xff]
    %v155 = vld [vmem:[#allocation2 + $0x8] sm:$0xff]
    %v156 = vld [vmem:[%s2] sm:$0x1]
    %v158 = vlaneseq
    %v159 = vshrl.u32 %v158, 7
    %v160 = vsub.s32 0, %v159
    %v161 = vrot.slane %v156, %v160
    %v163 = vadd.f32 %v154, %v161
    %v164 = vadd.f32 %v155, %v161
    %v165 = vld [vmem:[%s3] sm:$0xf]
    %v166 = vld [vmem:[%s3 + $0x4] sm:$0xf]
    %v167 = vunpack.c.l.bf16 %v165
    %v168 = vunpack.c.l.bf16 %v166
    %v169 = vadd.f32 %v163, %v167
    %v170 = vadd.f32 %v164, %v168
    %v171 = vsel %vm148, %v169, 0.0
    %172 = vadd.xlane.f32.xlu0 %v171
    %v173 = vpop.xlane.xlu0 %172
    %v174 = vsel %vm148, %v170, 0.0
    %175 = vadd.xlane.f32.xlu0 %v174
    %v176 = vpop.xlane.xlu0 %175
    %v177 = vrcp.pop 32.0
    %v178 = vmul.f32 %v173, %v177
    %v179 = vmul.f32 %v176, %v177
    %v180 = vsub.f32 %v169, %v178
    %v181 = vsub.f32 %v170, %v179
    %v182 = vmul.f32 %v180, %v180
    %v183 = vmul.f32 %v181, %v181
    %v184 = vsel %vm148, %v182, 0.0
    %185 = vadd.xlane.f32.xlu0 %v184
    %v186 = vpop.xlane.xlu0 %185
    %v187 = vsel %vm148, %v183, 0.0
    %188 = vadd.xlane.f32.xlu0 %v187
    %v189 = vpop.xlane.xlu0 %188
    %v190 = vmul.f32 %v186, %v177
    %v191 = vmul.f32 %v189, %v177
    %v192 = vadd.f32 %v190, 1e-05
    %v193 = vadd.f32 %v191, 1e-05
    %v194 = vrsqrt.pop %v192
    %v195 = vrsqrt.pop %v193
    %v196 = vmul.f32 %v180, %v194
    %v197 = vmul.f32 %v181, %v195
    %v198 = vld [vmem:[%s4] sm:$0x1]
    %v200 = vlaneseq
    %v201 = vshrl.u32 %v200, 7
    %v202 = vsub.s32 0, %v201
    %v203 = vrot.slane %v198, %v202
    %v205 = vmul.f32 %v196, %v203
    %v206 = vmul.f32 %v197, %v203
    %v207 = vld [vmem:[%s5] sm:$0x1]
    %v209 = vlaneseq
    %v210 = vshrl.u32 %v209, 7
    %v211 = vsub.s32 0, %v210
    %v212 = vrot.slane %v207, %v211
    %v214 = vadd.f32 %v205, %v212
    %v215 = vadd.f32 %v206, %v212
    %v216 = vpack.c.bf16 %v215, %v214
    %v218 = vunpack.c.l.b16 %v216
    %v219 = vunpack.c.h.b16 %v216
    %v220 = vpack.c.b16 %v218, %v218
    %v221 = vpack.c.b16 %v219, %v219
    %vm224 = vcmask 257024
    %225 = vst.msk [vmem:[%s6] sm:$0xf] %vm224, %v220
    %226 = vst.msk [vmem:[%s6 + $0x4] sm:$0xf] %vm224, %v221
  $region33: #{captioner_forward.49} parent=0 // pred_fallthru
    _
  // Predicated region
  $region34: #{captioner_forward.49} parent=0 // pred_check
    _
  $region35: #{captioner_forward.49} parent=0 // pred_check_branch
    %228 = sbr.rel (0) target = $region37
  $region36: #{captioner_forward.49} parent=0 // pred_region
    _
  $region37: #{captioner_forward.49} parent=0 // pred_fallthru
    _
  // Predicated region
  $region38: #{captioner_forward.49} parent=0 // pred_check
    _
  $region39: #{captioner_forward.49} parent=0 // pred_check_branch
    %230 = sbr.rel (0) target = $region41
  $region40: #{captioner_forward.49} parent=0 // pred_region
    _
  $region41: #{captioner_forward.49} parent=0 // pred_fallthru
    _

// kernel: captioner_forward.59
$region0: #{captioner_forward.59}
  #allocation0 [shape = 'u32[]', space=smem, size = 0x4, offset = 0x4, fixed_abs, tag = 'smem constant byte address 0x4 - core index']
  #allocation1 [shape = 'u32[144,128]{1,0:T(1,128)}', space=vmem, size = 0x12000, scoped, tag = 'internal scratch']
  #allocation2 [shape = 'f32[16,50]{1,0:T(8,128)}', space=vmem, size = 0x2000, scoped, tag = 'scratch operand']
  %s0 = inlined_call_operand.vmem [shape: bf16[16,32], index: 0, kind: input, shape index: {}]
  %s1 = inlined_call_operand.vmem [shape: bf16[32,50], index: 1, kind: input, shape index: {}]
  %s2 = inlined_call_operand.vmem [shape: f32[1,50], index: 2, kind: input, shape index: {}]
  %s3 = inlined_call_operand.hbm [shape: f32[16,50], index: 3, kind: output, shape index: {}]
  %s4 = sld [smem:[#allocation0]]
  $region30: #{captioner_forward.59} parent=0
    _
  %s6 = ssub.s32 1, %s4
  %s7 = scalar_select 0, %s6, %s4
  $region1: #{captioner_forward.59} parent=0
    #allocation3 [shape = 'u8[8192]{0}', space=vmem, size = 0x2000, scoped, tag = 'output window, operand 0, single buffered']
    #allocation4 [shape = 's32[1]{0}', space=sflag, size = 0x4, scoped, tag = 'scoped memory for captioner_forward.59']
    %8 = vsyncpa [#allocation4], 0
    // Predicated region
    $region2: #{captioner_forward.59} parent=1 // pred_check
      _
    $region3: #{captioner_forward.59} parent=1 // pred_check_branch
      %10 = sbr.rel (0) target = $region5
    $region4: #{captioner_forward.59} parent=1 // pred_region
      _
    $region5: #{captioner_forward.59} parent=1 // pred_fallthru
      _
    // Predicated region
    $region6: #{captioner_forward.59} parent=1 // pred_check
      _
    $region7: #{captioner_forward.59} parent=1 // pred_check_branch
      %12 = sbr.rel (0) target = $region9
    $region8: #{captioner_forward.59} parent=1 // pred_region
      _
    $region9: #{captioner_forward.59} parent=1 // pred_fallthru
      _
    // Predicated region
    $region10: #{captioner_forward.59} parent=1 // pred_check
      _
    $region11: #{captioner_forward.59} parent=1 // pred_check_branch
      %14 = sbr.rel (0) target = $region13
    $region12: #{captioner_forward.59} parent=1 // pred_region
      _
    $region13: #{captioner_forward.59} parent=1 // pred_fallthru
      _
    %p16 = scmp.eq.s32.totalorder 0, 0
    // Predicated region
    $region14: #{captioner_forward.59} parent=1 // pred_check
      %p17 = pneg %p16
    $region15: #{captioner_forward.59} parent=1 // pred_check_branch
      %19 = sbr.rel (%p17) target = $region17
    $region16: #{captioner_forward.59} parent=1 // pred_region
      %vm20 = vcmask 408576
      %21 = vst.msk [vmem:[#allocation2] sm:$0xff] %vm20, 0.0
      %22 = vst.msk [vmem:[#allocation2 + $0x8] sm:$0xff] %vm20, 0.0
    $region17: #{captioner_forward.59} parent=1 // pred_fallthru
      _
    %v23 = vld [vmem:[#allocation2] sm:$0xff]
    %v24 = vld [vmem:[#allocation2 + $0x8] sm:$0xff]
    %v25 = vld [vmem:[%s0] sm:$0xf]
    %v26 = vld [vmem:[%s0 + $0x4] sm:$0xf]
    %v27 = vld [vmem:[%s1] sm:$0xf]
    %v28 = vld [vmem:[%s1 + $0x4] sm:$0xf]
    %v29 = vld [vmem:[%s1 + $0x8] sm:$0xf]
    %v30 = vld [vmem:[%s1 + $0xc] sm:$0xf]
    %v33 = vunpack.c.l.b16 %v25
    %v34 = vunpack.c.l.b16 %v26
    %v35 = vpack.c.b16 %v34, %v33
    %v40 = vunpack.c.l.b16 %v27
    %v41 = vunpack.c.l.b16 %v28
    %v42 = vunpack.c.l.b16 %v29
    %v43 = vunpack.c.l.b16 %v30
    %v44 = vpack.c.b16 %v41, %v40
    %v45 = vpack.c.b16 %v43, %v42
    %vm48 = vcmask 261120
    %v50 = vsel %vm48, %v35, 0
    %52 = vmatprep.subr.bf16.mxu0 0
    %53 = vmatpush1.bf16.msra.mxu0 0
    %54 = vmatprep.subr.bf16.mxu0 0
    %55 = vmatpush1.bf16.msra.mxu0 0
    %56 = vmatprep.subr.bf16.mxu0 0
    %57 = vmatpush1.bf16.msra.mxu0 0
    %58 = vmatprep.subr.bf16.mxu0 0
    %59 = vmatpush1.bf16.msra.mxu0 0
    %60 = vmatprep.subr.bf16.mxu0 0
    %61 = vmatpush1.bf16.msra.mxu0 0
    %62 = vmatprep.subr.bf16.mxu0 0
    %63 = vmatpush1.bf16.msra.mxu0 0
    %64 = vmatprep.subr.bf16.mxu0 0
    %65 = vmatpush1.bf16.msra.mxu0 %v45
    %66 = vmatprep.subr.bf16.mxu0 0
    %67 = vmatpush1.bf16.msra.mxu0 %v44
    %68 = vmatprep.subr.bf16.mxu0 0
    %69 = vmatpush2.bf16.msra.mxu0 0
    %70 = vmatprep.subr.bf16.mxu0 0
    %71 = vmatpush2.bf16.msra.mxu0 0
    %72 = vmatprep.subr.bf16.mxu0 0
    %73 = vmatpush2.bf16.msra.mxu0 0
    %74 = vmatprep.subr.bf16.mxu0 0
    %75 = vmatpush2.bf16.msra.mxu0 0
    %76 = vmatprep.subr.bf16.mxu0 0
    %77 = vmatpush2.bf16.msra.mxu0 0
    %78 = vmatprep.subr.bf16.mxu0 0
    %79 = vmatpush2.bf16.msra.mxu0 0
    %80 = vmatprep.subr.bf16.mxu0 0
    %81 = vmatpush2.bf16.msra.mxu0 0
    %82 = vmatprep.subr.bf16.mxu0 0
    %83 = vmatpush2.bf16.msra.mxu0 0
    %84 = vmatprep.mubr.bf16.mxu0 0
    %85 = vmatmul.mubr.bf16.gmra.mxu0 %v50
    %v86 = vpop.f32.mrf.mxu0
    %v87 = vadd.f32 0.0, %v86
    %v88 = vpop.f32.mrf.mxu0
    %v89 = vpop.f32.mrf.mxu0
    %v90 = vadd.f32 0.0, %v89
    %v91 = vpop.f32.mrf.mxu0
    %92 = vdwg.mxu0
    %v93 = vadd.f32 %v23, %v87
    %v94 = vadd.f32 %v24, %v90
    %vm95 = vcmask 408576
    %96 = vst.msk [vmem:[#allocation2] sm:$0xff] %vm95, %v93
    %97 = vst.msk [vmem:[#allocation2 + $0x8] sm:$0xff] %vm95, %v94
    // Predicated region
    $region18: #{captioner_forward.59} parent=1 // pred_check
      %p98 = pneg %p16
    $region19: #{captioner_forward.59} parent=1 // pred_check_branch
      %100 = sbr.rel (%p98) target = $region21
    $region20: #{captioner_forward.59} parent=1 // pred_region
      %v101 = vld [vmem:[#allocation2] sm:$0xff]
      %v102 = vld [vmem:[#allocation2 + $0x8] sm:$0xff]
      %v103 = vld [vmem:[%s2] sm:$0x1]
      %v105 = vlaneseq
      %v106 = vshrl.u32 %v105, 7
      %v107 = vsub.s32 0, %v106
      %v108 = vrot.slane %v103, %v107
      %v110 = vadd.f32 %v101, %v108
      %v111 = vadd.f32 %v102, %v108
      %112 = vst.msk [vmem:[#allocation3] sm:$0xff] %vm95, %v110
      %113 = vst.msk [vmem:[#allocation3 + $0x8] sm:$0xff] %vm95, %v111
    $region21: #{captioner_forward.59} parent=1 // pred_fallthru
      _
    // Predicated region
    $region22: #{captioner_forward.59} parent=1 // pred_check
      _
    $region23: #{captioner_forward.59} parent=1 // pred_check_branch
      %115 = sbr.rel (0) target = $region25
    $region24: #{captioner_forward.59} parent=1 // pred_region
      %s117 = ssub.s32 256, 256
      %118 = vsyncadd [#allocation4], %s117
      %s119 = sshll.u32 [#allocation3], 4
      %s120 = int_to_ptr.vmem [resolvable:$true] %s119
      %125 = dma.vmem_to_hbm [thread:$0]  %s120, 256, %s3, [#allocation4], 128, 128, 8
    $region25: #{captioner_forward.59} parent=1 // pred_fallthru
      _
    // Predicated region
    $region26: #{captioner_forward.59} parent=1 // pred_check
      _
    $region27: #{captioner_forward.59} parent=1 // pred_check_branch
      %127 = sbr.rel (0) target = $region29
    $region28: #{captioner_forward.59} parent=1 // pred_region
      %128 = dma.done [#allocation4], 256
    $region29: #{captioner_forward.59} parent=1 // pred_fallthru
      _
    %129 = vsyncpa [#allocation4], 1

</llo_original>
